<compile_context>
chip_gen: v7x
topology: tpu7x:2x2x1
jax: 0.10.0
libtpu: 0.0.40
codegen_flags: <defaults>
</compile_context>

<pallas_src>
import numpy as np
import jax
import jax.numpy as jnp
from jax.experimental import pallas as pl
from jax.experimental.pallas import tpu as pltpu

# ---- small, module-consistent sizes (module takes these as constructor args) ----
NUM_AR = 8          # num_ar_features
NUM_FLAG = 8        # num_flag_features
NUM_VAR = 4         # num_var_features
SEQ_LEN = 8         # sequence_length
OUTPUT_DIM = NUM_AR # output_dim == num_ar_features
NUM_HOURS = 3       # num_hours_to_forecast
BN_EPS = 1e-5

AR_DIM = SEQ_LEN * NUM_AR              # 64
FLAG_DIM = SEQ_LEN * NUM_FLAG          # 64
VAR_DIM = SEQ_LEN * NUM_VAR            # 32
IN_DIM = AR_DIM + FLAG_DIM + VAR_DIM   # 160
PRED_OFFSET = (SEQ_LEN - 1) * NUM_AR   # 56: offset of the "previous prediction" slot

H_AR, H_FLAG, H_VAR = 150, 100, 50     # branch widths (fixed in BasePredictor)
BR_DIM = H_AR + H_FLAG + H_VAR         # 300
H1, H2 = 256, 128                      # combined widths (fixed in BasePredictor)

# lane-aligned (multiple-of-128) padded widths
IN_PAD = 256      # concat(ar, flag, var): 160 -> 256
BR_PAD = 384      # concat of branch outputs: 300 -> 384
OUT_PAD = 128     # final output: 8 -> 128 (lane-dense stores)
FB_PAD = 256      # feedback only touches AR-branch columns 0:150 -> padded to 256
WIN_ROWS = 8      # hour>=1 window rows padded to a full sublane tile


# ----------------------------- Pallas kernel -----------------------------------
def fused_ar_kernel(x0_ref, win_ref, w384_ref, w256_ref, w128_ref, bias_ref, out_ref):
    """All NUM_HOURS autoregressive steps for one batch tile.

    x0_ref  : (TB, IN_PAD) f32          hour-0 per-batch input (lane padded).
    win_ref : (WIN_ROWS, IN_PAD) f32    batch-invariant hour>=1 window rows (pred slot 0).
    w384_ref: (IN_PAD, BR_PAD) bf16     block-diagonal branch weight.
    w256_ref: (512, 256) bf16           rows 0:384 = W1 (BN folded), 384:512 = feedback.
    w128_ref: (640, 128) bf16           rows [0:256,256:384,384:512,512:640] = W2..W5.
    bias_ref: (8, BR_PAD) f32           rows 0..5 = b_in, b1..b5 (BN folded, zero padded).
    out_ref : (TB, NUM_HOURS*OUT_PAD) f32; hour h lives in columns [h*128:(h+1)*128].
    """
    f32, bf16 = jnp.float32, jnp.bfloat16
    tb = x0_ref.shape[0]

    def dot(a, w):
        # bf16 MXU operands, f32 accumulation
        return jnp.dot(a.astype(bf16), w, preferred_element_type=f32)

    # bias rows hoisted out of the statically unrolled hour loop (loaded once)
    b_in = bias_ref[0:1, :]                         # (1, 384)
    b1 = bias_ref[1:2, 0:H1]                        # (1, 256)
    b2 = bias_ref[2:3, 0:H2]                        # (1, 128)
    b3 = bias_ref[3:4, 0:H2]
    b4 = bias_ref[4:5, 0:H2]
    b5 = bias_ref[5:6, 0:OUT_PAD]

    def mlp_tail(pre):
        """combined_layers, starting from the branch pre-activation (bias included)."""
        z = jnp.maximum(pre, 0.0)                                           # branch ReLU
        z = jnp.maximum(dot(z, w256_ref[0:BR_PAD, :]) + b1, 0.0)            # 384 -> 256 (BN folded)
        z = jnp.maximum(dot(z, w128_ref[0:H1, :]) + b2, 0.0)                # 256 -> 128
        z = jnp.maximum(dot(z, w128_ref[H1:H1 + H2, :]) + b3, 0.0)          # 128 -> 128
        z = jnp.maximum(dot(z, w128_ref[H1 + H2:H1 + 2 * H2, :]) + b4, 0.0) # 128 -> 128
        return dot(z, w128_ref[H1 + 2 * H2:H1 + 3 * H2, :]) + b5            # final Linear (padded)

    # batch-invariant branch pre-activations of the hour>=1 windows: one tiny dot
    win_pre = dot(win_ref[...], w384_ref[...]) + b_in                       # (WIN_ROWS, 384)

    # hour 0: real per-batch inputs
    y = mlp_tail(dot(x0_ref[...], w384_ref[...]) + b_in)                    # (TB, 128) f32
    out_ref[:, 0:OUT_PAD] = y

    for h in range(1, NUM_HOURS):                    # static unroll (NUM_HOURS is tiny)
        # feedback of the previous prediction into the last AR time step; only the
        # first FB_PAD branch columns (the AR branch) can be non-zero.
        fb = dot(y, w256_ref[BR_PAD:BR_PAD + OUT_PAD, :])                   # (TB, 256)
        wp = win_pre[h - 1:h, :]                                            # (1, 384)
        pre = jnp.concatenate(
            [fb + wp[:, 0:FB_PAD],
             jnp.broadcast_to(wp[:, FB_PAD:BR_PAD], (tb, BR_PAD - FB_PAD))],
            axis=-1)                                                        # (TB, 384)
        y = mlp_tail(pre)
        out_ref[:, h * OUT_PAD:(h + 1) * OUT_PAD] = y


def _default_batch_tile(B):
    # >= 2 grid tiles so v7x's two TensorCores both get work; cap at 256 so the MXU
    # M dimension fills on v6e/v7x (128+ already saturates v5e's 128x128 MXUs).
    for t in (256, 128, 64, 32, 16, 8):
        if B % t == 0 and B // t >= 2:
            return t
    return B


def fused_forward_pallas(packed, x0, windows, batch_tile=None):
    """One pallas_call for the whole autoregressive forecast."""
    B = x0.shape[0]
    if batch_tile is None:
        batch_tile = _default_batch_tile(B)
    assert B % batch_tile == 0

    def const_spec(a):   # whole array, same block for every grid step -> DMA'd once
        return pl.BlockSpec(a.shape, lambda i: (0,) * a.ndim)

    return pl.pallas_call(
        fused_ar_kernel,
        out_shape=jax.ShapeDtypeStruct((B, NUM_HOURS * OUT_PAD), jnp.float32),
        grid=(B // batch_tile,),
        in_specs=[pl.BlockSpec((batch_tile, IN_PAD), lambda i: (i, 0)),
                  const_spec(windows),
                  const_spec(packed["slab384"]),
                  const_spec(packed["slab256"]),
                  const_spec(packed["slab128"]),
                  const_spec(packed["biases"])],
        out_specs=pl.BlockSpec((batch_tile, NUM_HOURS * OUT_PAD), lambda i: (i, 0)),
        compiler_params=pltpu.CompilerParams(dimension_semantics=("parallel",)),
    )(x0, windows, packed["slab384"], packed["slab256"], packed["slab128"],
      packed["biases"])


# --------------------------- parameter initialization --------------------------
def xavier_uniform(key, fan_in, fan_out):
    limit = float(np.sqrt(6.0 / (fan_in + fan_out)))
    return jax.random.uniform(key, (fan_in, fan_out), jnp.float32, -limit, limit)


def folded_bn(key, n):
    # deterministic (but non-trivial) gamma/beta/running stats in eval mode
    k1, k2, k3, k4 = jax.random.split(key, 4)
    gamma = jax.random.uniform(k1, (n,), jnp.float32, 0.5, 1.5)
    beta = 0.1 * jax.random.normal(k2, (n,), jnp.float32)
    mean = 0.1 * jax.random.normal(k3, (n,), jnp.float32)
    var = jax.random.uniform(k4, (n,), jnp.float32, 0.5, 1.5)
    scale = gamma / jnp.sqrt(var + BN_EPS)
    shift = beta - mean * scale
    return scale, shift


def init_params(key):
    """Raw parameters in the original per-layer layout (weights are (in, out))."""
    ks = jax.random.split(key, 16)
    z = lambda n: jnp.zeros((n,), jnp.float32)
    p = {}
    p["w_ar"] = xavier_uniform(ks[0], AR_DIM, H_AR);   p["b_ar"] = z(H_AR)
    p["s_ar"], p["t_ar"] = folded_bn(ks[1], H_AR)
    p["w_fl"] = xavier_uniform(ks[2], FLAG_DIM, H_FLAG); p["b_fl"] = z(H_FLAG)
    p["s_fl"], p["t_fl"] = folded_bn(ks[3], H_FLAG)
    p["w_vr"] = xavier_uniform(ks[4], VAR_DIM, H_VAR); p["b_vr"] = z(H_VAR)
    p["s_vr"], p["t_vr"] = folded_bn(ks[5], H_VAR)
    p["w1"] = xavier_uniform(ks[6], BR_DIM, H1);       p["b1"] = z(H1)
    p["s1"], p["t1"] = folded_bn(ks[7], H1)
    p["w2"] = xavier_uniform(ks[8], H1, H2);           p["b2"] = z(H2)
    p["s2"], p["t2"] = folded_bn(ks[9], H2)
    p["w3"] = xavier_uniform(ks[10], H2, H2);          p["b3"] = z(H2)
    p["s3"], p["t3"] = folded_bn(ks[11], H2)
    p["w4"] = xavier_uniform(ks[12], H2, H2);          p["b4"] = z(H2)
    p["s4"], p["t4"] = folded_bn(ks[13], H2)
    p["w5"] = xavier_uniform(ks[14], H2, OUTPUT_DIM);  p["b5"] = z(OUTPUT_DIM)
    return p


def pack_params(p):
    """Fold eval-mode BN into the next layer, pad to lane-aligned widths, and pack
    everything into 3 bf16 weight slabs (by trailing width) + 1 small f32 bias slab."""
    f32, bf16 = jnp.float32, jnp.bfloat16

    # block-diagonal branch weight: rows = [ar | flag | var | pad], cols = [150|100|50|pad]
    w_in = jnp.zeros((IN_PAD, BR_PAD), f32)
    w_in = w_in.at[0:AR_DIM, 0:H_AR].set(p["w_ar"])
    w_in = w_in.at[AR_DIM:AR_DIM + FLAG_DIM, H_AR:H_AR + H_FLAG].set(p["w_fl"])
    w_in = w_in.at[AR_DIM + FLAG_DIM:IN_DIM, H_AR + H_FLAG:BR_DIM].set(p["w_vr"])

    b_in = jnp.zeros((BR_PAD,), f32)
    b_in = b_in.at[0:H_AR].set(p["b_ar"])
    b_in = b_in.at[H_AR:H_AR + H_FLAG].set(p["b_fl"])
    b_in = b_in.at[H_AR + H_FLAG:BR_DIM].set(p["b_vr"])

    # BN_branch folded into W1; BN1..BN4 folded into W2..W5
    s_br = jnp.concatenate([p["s_ar"], p["s_fl"], p["s_vr"]])
    t_br = jnp.concatenate([p["t_ar"], p["t_fl"], p["t_vr"]])
    w1 = jnp.zeros((BR_PAD, H1), f32).at[0:BR_DIM, :].set(s_br[:, None] * p["w1"])
    b1 = t_br @ p["w1"] + p["b1"]

    w2 = p["s1"][:, None] * p["w2"]; b2 = p["t1"] @ p["w2"] + p["b2"]
    w3 = p["s2"][:, None] * p["w3"]; b3 = p["t2"] @ p["w3"] + p["b3"]
    w4 = p["s3"][:, None] * p["w4"]; b4 = p["t3"] @ p["w4"] + p["b4"]

    w5 = jnp.zeros((H2, OUT_PAD), f32).at[:, 0:OUTPUT_DIM].set(p["s4"][:, None] * p["w5"])
    b5 = jnp.zeros((OUT_PAD,), f32).at[0:OUTPUT_DIM].set(p["t4"] @ p["w5"] + p["b5"])

    # feedback weight: rows of the AR branch weight that multiply the fed-back prediction
    # (last time step). Only the AR-branch columns (0:150) can be non-zero -> width 256.
    w_fb = jnp.zeros((OUT_PAD, FB_PAD), f32).at[0:NUM_AR, 0:H_AR].set(
        p["w_ar"][PRED_OFFSET:AR_DIM, :])

    # --- pack into slabs grouped by trailing width ---
    slab384 = w_in.astype(bf16)                                       # (256, 384)
    slab256 = jnp.concatenate([w1, w_fb], axis=0).astype(bf16)        # (512, 256)
    slab128 = jnp.concatenate([w2, w3, w4, w5], axis=0).astype(bf16)  # (640, 128)

    biases = jnp.zeros((8, BR_PAD), f32)                              # f32 bias slab
    biases = biases.at[0, :].set(b_in)
    biases = biases.at[1, 0:H1].set(b1)
    biases = biases.at[2, 0:H2].set(b2)
    biases = biases.at[3, 0:H2].set(b3)
    biases = biases.at[4, 0:H2].set(b4)
    biases = biases.at[5, 0:OUT_PAD].set(b5)

    return dict(slab384=slab384, slab256=slab256, slab128=slab128, biases=biases)


# --------------------- wrapper-side data-window precompute ---------------------
def _ar_prefix_window(X_data, idx):
    """First (SEQ_LEN-1) AR rows for update_inputs(idx); the prediction fills the last row."""
    dl = X_data.shape[0]
    # NOTE: idx == len(X_data) is treated as out-of-bounds, exactly matching the PyTorch code.
    if (idx - SEQ_LEN + 1 < 0) or (idx >= dl):
        rows = jnp.zeros((SEQ_LEN - 1, NUM_AR), jnp.float32)
    else:
        rows = X_data[idx - SEQ_LEN + 1: idx, :NUM_AR]
    return rows.reshape(-1)


def _feature_window(data, num_features, idx):
    """get_features() from update_inputs (the trailing pad branch is unreachable there too)."""
    dl = data.shape[0]
    if (idx >= dl) or (idx + SEQ_LEN > dl):
        feats = jnp.zeros((SEQ_LEN, num_features), jnp.float32)
    else:
        feats = data[idx: idx + SEQ_LEN, :num_features]
    return feats.reshape(-1)


def autoregressive_forward_pallas(packed, initial_input_ar, initial_input_flag,
                                  initial_input_var, X_data, F_data, V_data,
                                  sequence_start_idx, batch_tile=None):
    B = initial_input_ar.shape[0]
    assert initial_input_ar.shape[1] == AR_DIM
    assert initial_input_flag.shape[1] == FLAG_DIM
    assert initial_input_var.shape[1] == VAR_DIM
    f32 = jnp.float32

    # hour 0: real per-batch inputs, concatenated and lane-padded
    x0 = jnp.concatenate(
        [initial_input_ar, initial_input_flag, initial_input_var,
         jnp.zeros((B, IN_PAD - IN_DIM), f32)], axis=1)

    # hours >= 1: batch-invariant window rows (NOT broadcast across the batch);
    # the prediction slot (cols 56:64) stays zero and is filled in-kernel (feedback dot).
    win_rows = []
    flags = [initial_input_flag[:, -NUM_FLAG:]]
    for h in range(1, NUM_HOURS):
        idx = sequence_start_idx + SEQ_LEN + (h - 1)   # current_idx used by update_inputs
        prefix = _ar_prefix_window(X_data, idx)
        flag_w = _feature_window(F_data, NUM_FLAG, idx)
        var_w = _feature_window(V_data, NUM_VAR, idx)
        win_rows.append(jnp.concatenate(
            [prefix,
             jnp.zeros((NUM_AR,), f32),                # prediction slot (filled in-kernel)
             flag_w, var_w,
             jnp.zeros((IN_PAD - IN_DIM,), f32)]))
        flags.append(jnp.broadcast_to(flag_w[-NUM_FLAG:][None, :], (B, NUM_FLAG)))

    windows = jnp.zeros((WIN_ROWS, IN_PAD), f32)
    if win_rows:
        windows = windows.at[0:NUM_HOURS - 1, :].set(jnp.stack(win_rows, axis=0))

    out = fused_forward_pallas(packed, x0, windows, batch_tile)   # (B, NUM_HOURS*128)
    preds = out.reshape(B, NUM_HOURS, OUT_PAD)[:, :, :OUTPUT_DIM]
    return preds, jnp.stack(flags, axis=1)


# ---------------- pure-JAX reference of the original (eval-mode) module ---------
def base_predictor_ref(ar, flag, var, p):
    def lrb(x, w, b, s, t):
        h = jnp.maximum(x @ w + b, 0.0)
        return h * s + t
    a = lrb(ar, p["w_ar"], p["b_ar"], p["s_ar"], p["t_ar"])
    f = lrb(flag, p["w_fl"], p["b_fl"], p["s_fl"], p["t_fl"])
    v = lrb(var, p["w_vr"], p["b_vr"], p["s_vr"], p["t_vr"])
    h = jnp.concatenate([a, f, v], axis=1)
    h = lrb(h, p["w1"], p["b1"], p["s1"], p["t1"])
    h = lrb(h, p["w2"], p["b2"], p["s2"], p["t2"])
    h = lrb(h, p["w3"], p["b3"], p["s3"], p["t3"])
    h = lrb(h, p["w4"], p["b4"], p["s4"], p["t4"])
    return h @ p["w5"] + p["b5"]


def update_inputs(pred, X_data, F_data, V_data, current_idx, batch_size):
    """Mirror of AutoregressivePredictor.update_inputs; current_idx is a Python int."""
    seq_len = SEQ_LEN
    data_len = X_data.shape[0]

    ar_oob = (current_idx - seq_len + 1 < 0) or (current_idx >= data_len)
    if ar_oob:
        ar_seq = jnp.zeros((batch_size, seq_len - 1, NUM_AR), jnp.float32)
    else:
        rows = X_data[current_idx - seq_len + 1:current_idx, :NUM_AR]
        ar_seq = jnp.broadcast_to(rows[None], (batch_size,) + rows.shape)
    if ar_seq.shape[1] < seq_len - 1:
        pad = jnp.zeros((batch_size, seq_len - 1 - ar_seq.shape[1], NUM_AR), jnp.float32)
        ar_seq = jnp.concatenate([pad, ar_seq], axis=1)
    ar_new_seq = jnp.concatenate([ar_seq, pred[:, None, :]], axis=1)
    ar_batch = ar_new_seq.reshape(batch_size, -1)

    def get_features(data, num_features):
        dl = data.shape[0]
        oob = (current_idx >= dl) or (current_idx + seq_len > dl)
        if oob:
            feats = jnp.zeros((batch_size, seq_len, num_features), jnp.float32)
        else:
            rows = data[current_idx:current_idx + seq_len, :num_features]
            feats = jnp.broadcast_to(rows[None], (batch_size,) + rows.shape)
        if feats.shape[1] < seq_len:
            available = max(0, dl - current_idx)
            pad = jnp.zeros((batch_size, seq_len - available, num_features), jnp.float32)
            feats = jnp.concatenate([feats, pad], axis=1)
        return feats.reshape(batch_size, -1)

    flag_batch = get_features(F_data, NUM_FLAG)
    var_batch = get_features(V_data, NUM_VAR)
    return ar_batch, flag_batch, var_batch


def autoregressive_forward_ref(params, ar0, flag0, var0, X_data, F_data, V_data,
                               sequence_start_idx):
    batch_size = ar0.shape[0]
    cur_ar, cur_flag, cur_var = ar0, flag0, var0
    current_idx = sequence_start_idx + SEQ_LEN
    preds, flags = [], []
    for _ in range(NUM_HOURS):
        pred = base_predictor_ref(cur_ar, cur_flag, cur_var, params)
        preds.append(pred)
        flags.append(cur_flag[:, -NUM_FLAG:])
        cur_ar, cur_flag, cur_var = update_inputs(
            pred, X_data, F_data, V_data, current_idx, batch_size)
        current_idx += 1
    return jnp.stack(preds, axis=1), jnp.stack(flags, axis=1)


# ------------------------------------ main --------------------------------------
if __name__ == "__main__":
    key = jax.random.PRNGKey(0)
    k_param, k_ar, k_fl, k_vr, k_X, k_F, k_V = jax.random.split(key, 7)

    params = init_params(k_param)
    packed = pack_params(params)

    B = 16
    DATA_LEN = 40
    SEQ_START = 2

    initial_input_ar = jax.random.normal(k_ar, (B, AR_DIM), jnp.float32)
    initial_input_flag = jax.random.normal(k_fl, (B, FLAG_DIM), jnp.float32)
    initial_input_var = jax.random.normal(k_vr, (B, VAR_DIM), jnp.float32)
    X_data = jax.random.normal(k_X, (DATA_LEN, NUM_AR), jnp.float32)
    F_data = jax.random.normal(k_F, (DATA_LEN, NUM_FLAG), jnp.float32)
    V_data = jax.random.normal(k_V, (DATA_LEN, NUM_VAR), jnp.float32)

    preds, flags = autoregressive_forward_pallas(
        packed, initial_input_ar, initial_input_flag, initial_input_var,
        X_data, F_data, V_data, SEQ_START)
    preds, flags = jax.block_until_ready((preds, flags))

    assert preds.shape == (B, NUM_HOURS, OUTPUT_DIM), preds.shape
    assert flags.shape == (B, NUM_HOURS, NUM_FLAG), flags.shape

    # correctness check against a pure-JAX f32 reference of the original eval-mode module
    # (tolerance loosened for the bf16 MXU operands: 7 chained bf16 matmuls + AR feedback)
    preds_ref, flags_ref = autoregressive_forward_ref(
        params, initial_input_ar, initial_input_flag, initial_input_var,
        X_data, F_data, V_data, SEQ_START)
    np.testing.assert_allclose(np.asarray(preds), np.asarray(preds_ref),
                               rtol=5e-2, atol=5e-2)
    np.testing.assert_allclose(np.asarray(flags), np.asarray(flags_ref),
                               rtol=1e-6, atol=1e-6)

    print("KERNEL_OK")
</pallas_src>

<mosaic_0001>
module attributes {stable_mosaic.version = 11 : i64} {
  func.func @fused_ar_kernel(%arg0: i32, %arg1: memref<8x256xf32, #tpu.memory_space<vmem>>, %arg2: memref<8x256xf32, #tpu.memory_space<vmem>>, %arg3: memref<256x384xbf16, #tpu.memory_space<vmem>>, %arg4: memref<512x256xbf16, #tpu.memory_space<vmem>>, %arg5: memref<640x128xbf16, #tpu.memory_space<vmem>>, %arg6: memref<8x384xf32, #tpu.memory_space<vmem>>, %arg7: memref<8x384xf32, #tpu.memory_space<vmem>>) attributes {dimension_semantics = [#tpu.dimension_semantics<parallel>], iteration_bounds = array<i64: 2>, scalar_prefetch = 0 : i64, scratch_operands = 0 : i64, tpu.core_type = #tpu.core_type<tc>, window_params = [{transform_indices = @transform_0, window_bounds = array<i64: 8, 256>}, {pipeline_mode = #tpu.pipeline_mode<synchronous>, transform_indices = @transform_1, window_bounds = array<i64: 8, 256>}, {pipeline_mode = #tpu.pipeline_mode<synchronous>, transform_indices = @transform_2, window_bounds = array<i64: 256, 384>}, {pipeline_mode = #tpu.pipeline_mode<synchronous>, transform_indices = @transform_3, window_bounds = array<i64: 512, 256>}, {pipeline_mode = #tpu.pipeline_mode<synchronous>, transform_indices = @transform_4, window_bounds = array<i64: 640, 128>}, {pipeline_mode = #tpu.pipeline_mode<synchronous>, transform_indices = @transform_5, window_bounds = array<i64: 8, 384>}, {transform_indices = @transform_6, window_bounds = array<i64: 8, 384>}]} {
    %c0 = arith.constant 0 : index
    %c0_0 = arith.constant 0 : index
    %0 = vector.load %arg6[%c0, %c0_0] : memref<8x384xf32, #tpu.memory_space<vmem>>, vector<1x384xf32>
    %c1 = arith.constant 1 : index
    %c0_1 = arith.constant 0 : index
    %1 = vector.load %arg6[%c1, %c0_1] : memref<8x384xf32, #tpu.memory_space<vmem>>, vector<1x256xf32>
    %c2 = arith.constant 2 : index
    %c0_2 = arith.constant 0 : index
    %2 = vector.load %arg6[%c2, %c0_2] : memref<8x384xf32, #tpu.memory_space<vmem>>, vector<1x128xf32>
    %c3 = arith.constant 3 : index
    %c0_3 = arith.constant 0 : index
    %3 = vector.load %arg6[%c3, %c0_3] : memref<8x384xf32, #tpu.memory_space<vmem>>, vector<1x128xf32>
    %c4 = arith.constant 4 : index
    %c0_4 = arith.constant 0 : index
    %4 = vector.load %arg6[%c4, %c0_4] : memref<8x384xf32, #tpu.memory_space<vmem>>, vector<1x128xf32>
    %c5 = arith.constant 5 : index
    %c0_5 = arith.constant 0 : index
    %5 = vector.load %arg6[%c5, %c0_5] : memref<8x384xf32, #tpu.memory_space<vmem>>, vector<1x128xf32>
    %c0_6 = arith.constant 0 : index
    %c0_7 = arith.constant 0 : index
    %6 = vector.load %arg2[%c0_6, %c0_7] : memref<8x256xf32, #tpu.memory_space<vmem>>, vector<8x256xf32>
    %c0_8 = arith.constant 0 : index
    %c0_9 = arith.constant 0 : index
    %7 = vector.load %arg3[%c0_8, %c0_9] : memref<256x384xbf16, #tpu.memory_space<vmem>>, vector<256x384xbf16>
    %8 = arith.truncf %6 : vector<8x256xf32> to vector<8x256xbf16>
    %cst = arith.constant dense<0.000000e+00> : vector<8x384xf32>
    %9 = tpu.matmul %8, %7, %cst {dimension_numbers = #tpu.dot_dimension_numbers<[1], [0], [0], [1], [0, 0, 1, 1], [], []>} : vector<8x256xbf16>, vector<256x384xbf16>, vector<8x384xf32> -> vector<8x384xf32>
    %10 = vector.broadcast %0 : vector<1x384xf32> to vector<8x384xf32>
    %11 = arith.addf %9, %10 : vector<8x384xf32>
    %c0_10 = arith.constant 0 : index
    %c0_11 = arith.constant 0 : index
    %12 = vector.load %arg1[%c0_10, %c0_11] : memref<8x256xf32, #tpu.memory_space<vmem>>, vector<8x256xf32>
    %c0_12 = arith.constant 0 : index
    %c0_13 = arith.constant 0 : index
    %13 = vector.load %arg3[%c0_12, %c0_13] : memref<256x384xbf16, #tpu.memory_space<vmem>>, vector<256x384xbf16>
    %14 = arith.truncf %12 : vector<8x256xf32> to vector<8x256xbf16>
    %cst_14 = arith.constant dense<0.000000e+00> : vector<8x384xf32>
    %15 = tpu.matmul %14, %13, %cst_14 {dimension_numbers = #tpu.dot_dimension_numbers<[1], [0], [0], [1], [0, 0, 1, 1], [], []>} : vector<8x256xbf16>, vector<256x384xbf16>, vector<8x384xf32> -> vector<8x384xf32>
    %16 = vector.broadcast %0 : vector<1x384xf32> to vector<8x384xf32>
    %17 = arith.addf %15, %16 : vector<8x384xf32>
    %cst_15 = arith.constant 0.000000e+00 : f32
    %18 = vector.broadcast %cst_15 : f32 to vector<8x384xf32>
    %19 = arith.maximumf %17, %18 : vector<8x384xf32>
    %c0_16 = arith.constant 0 : index
    %c0_17 = arith.constant 0 : index
    %20 = vector.load %arg4[%c0_16, %c0_17] : memref<512x256xbf16, #tpu.memory_space<vmem>>, vector<384x256xbf16>
    %21 = arith.truncf %19 : vector<8x384xf32> to vector<8x384xbf16>
    %cst_18 = arith.constant dense<0.000000e+00> : vector<8x256xf32>
    %22 = tpu.matmul %21, %20, %cst_18 {dimension_numbers = #tpu.dot_dimension_numbers<[1], [0], [0], [1], [0, 0, 1, 1], [], []>} : vector<8x384xbf16>, vector<384x256xbf16>, vector<8x256xf32> -> vector<8x256xf32>
    %23 = vector.broadcast %1 : vector<1x256xf32> to vector<8x256xf32>
    %24 = arith.addf %22, %23 : vector<8x256xf32>
    %cst_19 = arith.constant 0.000000e+00 : f32
    %25 = vector.broadcast %cst_19 : f32 to vector<8x256xf32>
    %26 = arith.maximumf %24, %25 : vector<8x256xf32>
    %c0_20 = arith.constant 0 : index
    %c0_21 = arith.constant 0 : index
    %27 = vector.load %arg5[%c0_20, %c0_21] : memref<640x128xbf16, #tpu.memory_space<vmem>>, vector<256x128xbf16>
    %28 = arith.truncf %26 : vector<8x256xf32> to vector<8x256xbf16>
    %cst_22 = arith.constant dense<0.000000e+00> : vector<8x128xf32>
    %29 = tpu.matmul %28, %27, %cst_22 {dimension_numbers = #tpu.dot_dimension_numbers<[1], [0], [0], [1], [0, 0, 1, 1], [], []>} : vector<8x256xbf16>, vector<256x128xbf16>, vector<8x128xf32> -> vector<8x128xf32>
    %30 = vector.broadcast %2 : vector<1x128xf32> to vector<8x128xf32>
    %31 = arith.addf %29, %30 : vector<8x128xf32>
    %cst_23 = arith.constant 0.000000e+00 : f32
    %32 = vector.broadcast %cst_23 : f32 to vector<8x128xf32>
    %33 = arith.maximumf %31, %32 : vector<8x128xf32>
    %c256 = arith.constant 256 : index
    %c0_24 = arith.constant 0 : index
    %34 = vector.load %arg5[%c256, %c0_24] : memref<640x128xbf16, #tpu.memory_space<vmem>>, vector<128x128xbf16>
    %35 = arith.truncf %33 : vector<8x128xf32> to vector<8x128xbf16>
    %cst_25 = arith.constant dense<0.000000e+00> : vector<8x128xf32>
    %36 = tpu.matmul %35, %34, %cst_25 {dimension_numbers = #tpu.dot_dimension_numbers<[1], [0], [0], [1], [0, 0, 1, 1], [], []>} : vector<8x128xbf16>, vector<128x128xbf16>, vector<8x128xf32> -> vector<8x128xf32>
    %37 = vector.broadcast %3 : vector<1x128xf32> to vector<8x128xf32>
    %38 = arith.addf %36, %37 : vector<8x128xf32>
    %cst_26 = arith.constant 0.000000e+00 : f32
    %39 = vector.broadcast %cst_26 : f32 to vector<8x128xf32>
    %40 = arith.maximumf %38, %39 : vector<8x128xf32>
    %c384 = arith.constant 384 : index
    %c0_27 = arith.constant 0 : index
    %41 = vector.load %arg5[%c384, %c0_27] : memref<640x128xbf16, #tpu.memory_space<vmem>>, vector<128x128xbf16>
    %42 = arith.truncf %40 : vector<8x128xf32> to vector<8x128xbf16>
    %cst_28 = arith.constant dense<0.000000e+00> : vector<8x128xf32>
    %43 = tpu.matmul %42, %41, %cst_28 {dimension_numbers = #tpu.dot_dimension_numbers<[1], [0], [0], [1], [0, 0, 1, 1], [], []>} : vector<8x128xbf16>, vector<128x128xbf16>, vector<8x128xf32> -> vector<8x128xf32>
    %44 = vector.broadcast %4 : vector<1x128xf32> to vector<8x128xf32>
    %45 = arith.addf %43, %44 : vector<8x128xf32>
    %cst_29 = arith.constant 0.000000e+00 : f32
    %46 = vector.broadcast %cst_29 : f32 to vector<8x128xf32>
    %47 = arith.maximumf %45, %46 : vector<8x128xf32>
    %c512 = arith.constant 512 : index
    %c0_30 = arith.constant 0 : index
    %48 = vector.load %arg5[%c512, %c0_30] : memref<640x128xbf16, #tpu.memory_space<vmem>>, vector<128x128xbf16>
    %49 = arith.truncf %47 : vector<8x128xf32> to vector<8x128xbf16>
    %cst_31 = arith.constant dense<0.000000e+00> : vector<8x128xf32>
    %50 = tpu.matmul %49, %48, %cst_31 {dimension_numbers = #tpu.dot_dimension_numbers<[1], [0], [0], [1], [0, 0, 1, 1], [], []>} : vector<8x128xbf16>, vector<128x128xbf16>, vector<8x128xf32> -> vector<8x128xf32>
    %51 = vector.broadcast %5 : vector<1x128xf32> to vector<8x128xf32>
    %52 = arith.addf %50, %51 : vector<8x128xf32>
    %c0_32 = arith.constant 0 : index
    %c0_33 = arith.constant 0 : index
    %53 = vector.load %arg7[%c0_32, %c0_33] : memref<8x384xf32, #tpu.memory_space<vmem>>, vector<8x128xf32>
    tpu.vector_store %arg7[%c0_32, %c0_33], %52 {strides = array<i32>} : memref<8x384xf32, #tpu.memory_space<vmem>>, vector<8x128xf32>,
    %c384_34 = arith.constant 384 : index
    %c0_35 = arith.constant 0 : index
    %54 = vector.load %arg4[%c384_34, %c0_35] : memref<512x256xbf16, #tpu.memory_space<vmem>>, vector<128x256xbf16>
    %55 = arith.truncf %52 : vector<8x128xf32> to vector<8x128xbf16>
    %cst_36 = arith.constant dense<0.000000e+00> : vector<8x256xf32>
    %56 = tpu.matmul %55, %54, %cst_36 {dimension_numbers = #tpu.dot_dimension_numbers<[1], [0], [0], [1], [0, 0, 1, 1], [], []>} : vector<8x128xbf16>, vector<128x256xbf16>, vector<8x256xf32> -> vector<8x256xf32>
    %57 = vector.extract_strided_slice %11 {offsets = [0, 0], sizes = [1, 384], strides = [1, 1]} : vector<8x384xf32> to vector<1x384xf32>
    %58 = vector.extract_strided_slice %57 {offsets = [0, 0], sizes = [1, 256], strides = [1, 1]} : vector<1x384xf32> to vector<1x256xf32>
    %59 = vector.broadcast %58 : vector<1x256xf32> to vector<8x256xf32>
    %60 = arith.addf %56, %59 : vector<8x256xf32>
    %61 = vector.extract_strided_slice %57 {offsets = [0, 256], sizes = [1, 128], strides = [1, 1]} : vector<1x384xf32> to vector<1x128xf32>
    %62 = vector.shape_cast %61 : vector<1x128xf32> to vector<1x128xf32>
    %63 = vector.broadcast %62 : vector<1x128xf32> to vector<8x128xf32>
    %64 = tpu.concatenate %60, %63 in 1 : vector<8x256xf32>, vector<8x128xf32> -> vector<8x384xf32>
    %cst_37 = arith.constant 0.000000e+00 : f32
    %65 = vector.broadcast %cst_37 : f32 to vector<8x384xf32>
    %66 = arith.maximumf %64, %65 : vector<8x384xf32>
    %c0_38 = arith.constant 0 : index
    %c0_39 = arith.constant 0 : index
    %67 = vector.load %arg4[%c0_38, %c0_39] : memref<512x256xbf16, #tpu.memory_space<vmem>>, vector<384x256xbf16>
    %68 = arith.truncf %66 : vector<8x384xf32> to vector<8x384xbf16>
    %cst_40 = arith.constant dense<0.000000e+00> : vector<8x256xf32>
    %69 = tpu.matmul %68, %67, %cst_40 {dimension_numbers = #tpu.dot_dimension_numbers<[1], [0], [0], [1], [0, 0, 1, 1], [], []>} : vector<8x384xbf16>, vector<384x256xbf16>, vector<8x256xf32> -> vector<8x256xf32>
    %70 = vector.broadcast %1 : vector<1x256xf32> to vector<8x256xf32>
    %71 = arith.addf %69, %70 : vector<8x256xf32>
    %cst_41 = arith.constant 0.000000e+00 : f32
    %72 = vector.broadcast %cst_41 : f32 to vector<8x256xf32>
    %73 = arith.maximumf %71, %72 : vector<8x256xf32>
    %c0_42 = arith.constant 0 : index
    %c0_43 = arith.constant 0 : index
    %74 = vector.load %arg5[%c0_42, %c0_43] : memref<640x128xbf16, #tpu.memory_space<vmem>>, vector<256x128xbf16>
    %75 = arith.truncf %73 : vector<8x256xf32> to vector<8x256xbf16>
    %cst_44 = arith.constant dense<0.000000e+00> : vector<8x128xf32>
    %76 = tpu.matmul %75, %74, %cst_44 {dimension_numbers = #tpu.dot_dimension_numbers<[1], [0], [0], [1], [0, 0, 1, 1], [], []>} : vector<8x256xbf16>, vector<256x128xbf16>, vector<8x128xf32> -> vector<8x128xf32>
    %77 = vector.broadcast %2 : vector<1x128xf32> to vector<8x128xf32>
    %78 = arith.addf %76, %77 : vector<8x128xf32>
    %cst_45 = arith.constant 0.000000e+00 : f32
    %79 = vector.broadcast %cst_45 : f32 to vector<8x128xf32>
    %80 = arith.maximumf %78, %79 : vector<8x128xf32>
    %c256_46 = arith.constant 256 : index
    %c0_47 = arith.constant 0 : index
    %81 = vector.load %arg5[%c256_46, %c0_47] : memref<640x128xbf16, #tpu.memory_space<vmem>>, vector<128x128xbf16>
    %82 = arith.truncf %80 : vector<8x128xf32> to vector<8x128xbf16>
    %cst_48 = arith.constant dense<0.000000e+00> : vector<8x128xf32>
    %83 = tpu.matmul %82, %81, %cst_48 {dimension_numbers = #tpu.dot_dimension_numbers<[1], [0], [0], [1], [0, 0, 1, 1], [], []>} : vector<8x128xbf16>, vector<128x128xbf16>, vector<8x128xf32> -> vector<8x128xf32>
    %84 = vector.broadcast %3 : vector<1x128xf32> to vector<8x128xf32>
    %85 = arith.addf %83, %84 : vector<8x128xf32>
    %cst_49 = arith.constant 0.000000e+00 : f32
    %86 = vector.broadcast %cst_49 : f32 to vector<8x128xf32>
    %87 = arith.maximumf %85, %86 : vector<8x128xf32>
    %c384_50 = arith.constant 384 : index
    %c0_51 = arith.constant 0 : index
    %88 = vector.load %arg5[%c384_50, %c0_51] : memref<640x128xbf16, #tpu.memory_space<vmem>>, vector<128x128xbf16>
    %89 = arith.truncf %87 : vector<8x128xf32> to vector<8x128xbf16>
    %cst_52 = arith.constant dense<0.000000e+00> : vector<8x128xf32>
    %90 = tpu.matmul %89, %88, %cst_52 {dimension_numbers = #tpu.dot_dimension_numbers<[1], [0], [0], [1], [0, 0, 1, 1], [], []>} : vector<8x128xbf16>, vector<128x128xbf16>, vector<8x128xf32> -> vector<8x128xf32>
    %91 = vector.broadcast %4 : vector<1x128xf32> to vector<8x128xf32>
    %92 = arith.addf %90, %91 : vector<8x128xf32>
    %cst_53 = arith.constant 0.000000e+00 : f32
    %93 = vector.broadcast %cst_53 : f32 to vector<8x128xf32>
    %94 = arith.maximumf %92, %93 : vector<8x128xf32>
    %c512_54 = arith.constant 512 : index
    %c0_55 = arith.constant 0 : index
    %95 = vector.load %arg5[%c512_54, %c0_55] : memref<640x128xbf16, #tpu.memory_space<vmem>>, vector<128x128xbf16>
    %96 = arith.truncf %94 : vector<8x128xf32> to vector<8x128xbf16>
    %cst_56 = arith.constant dense<0.000000e+00> : vector<8x128xf32>
    %97 = tpu.matmul %96, %95, %cst_56 {dimension_numbers = #tpu.dot_dimension_numbers<[1], [0], [0], [1], [0, 0, 1, 1], [], []>} : vector<8x128xbf16>, vector<128x128xbf16>, vector<8x128xf32> -> vector<8x128xf32>
    %98 = vector.broadcast %5 : vector<1x128xf32> to vector<8x128xf32>
    %99 = arith.addf %97, %98 : vector<8x128xf32>
    %c0_57 = arith.constant 0 : index
    %c128 = arith.constant 128 : index
    %100 = vector.load %arg7[%c0_57, %c128] : memref<8x384xf32, #tpu.memory_space<vmem>>, vector<8x128xf32>
    tpu.vector_store %arg7[%c0_57, %c128], %99 {strides = array<i32>} : memref<8x384xf32, #tpu.memory_space<vmem>>, vector<8x128xf32>,
    %c384_58 = arith.constant 384 : index
    %c0_59 = arith.constant 0 : index
    %101 = vector.load %arg4[%c384_58, %c0_59] : memref<512x256xbf16, #tpu.memory_space<vmem>>, vector<128x256xbf16>
    %102 = arith.truncf %99 : vector<8x128xf32> to vector<8x128xbf16>
    %cst_60 = arith.constant dense<0.000000e+00> : vector<8x256xf32>
    %103 = tpu.matmul %102, %101, %cst_60 {dimension_numbers = #tpu.dot_dimension_numbers<[1], [0], [0], [1], [0, 0, 1, 1], [], []>} : vector<8x128xbf16>, vector<128x256xbf16>, vector<8x256xf32> -> vector<8x256xf32>
    %104 = vector.extract_strided_slice %11 {offsets = [1, 0], sizes = [1, 384], strides = [1, 1]} : vector<8x384xf32> to vector<1x384xf32>
    %105 = vector.extract_strided_slice %104 {offsets = [0, 0], sizes = [1, 256], strides = [1, 1]} : vector<1x384xf32> to vector<1x256xf32>
    %106 = vector.broadcast %105 : vector<1x256xf32> to vector<8x256xf32>
    %107 = arith.addf %103, %106 : vector<8x256xf32>
    %108 = vector.extract_strided_slice %104 {offsets = [0, 256], sizes = [1, 128], strides = [1, 1]} : vector<1x384xf32> to vector<1x128xf32>
    %109 = vector.shape_cast %108 : vector<1x128xf32> to vector<1x128xf32>
    %110 = vector.broadcast %109 : vector<1x128xf32> to vector<8x128xf32>
    %111 = tpu.concatenate %107, %110 in 1 : vector<8x256xf32>, vector<8x128xf32> -> vector<8x384xf32>
    %cst_61 = arith.constant 0.000000e+00 : f32
    %112 = vector.broadcast %cst_61 : f32 to vector<8x384xf32>
    %113 = arith.maximumf %111, %112 : vector<8x384xf32>
    %c0_62 = arith.constant 0 : index
    %c0_63 = arith.constant 0 : index
    %114 = vector.load %arg4[%c0_62, %c0_63] : memref<512x256xbf16, #tpu.memory_space<vmem>>, vector<384x256xbf16>
    %115 = arith.truncf %113 : vector<8x384xf32> to vector<8x384xbf16>
    %cst_64 = arith.constant dense<0.000000e+00> : vector<8x256xf32>
    %116 = tpu.matmul %115, %114, %cst_64 {dimension_numbers = #tpu.dot_dimension_numbers<[1], [0], [0], [1], [0, 0, 1, 1], [], []>} : vector<8x384xbf16>, vector<384x256xbf16>, vector<8x256xf32> -> vector<8x256xf32>
    %117 = vector.broadcast %1 : vector<1x256xf32> to vector<8x256xf32>
    %118 = arith.addf %116, %117 : vector<8x256xf32>
    %cst_65 = arith.constant 0.000000e+00 : f32
    %119 = vector.broadcast %cst_65 : f32 to vector<8x256xf32>
    %120 = arith.maximumf %118, %119 : vector<8x256xf32>
    %c0_66 = arith.constant 0 : index
    %c0_67 = arith.constant 0 : index
    %121 = vector.load %arg5[%c0_66, %c0_67] : memref<640x128xbf16, #tpu.memory_space<vmem>>, vector<256x128xbf16>
    %122 = arith.truncf %120 : vector<8x256xf32> to vector<8x256xbf16>
    %cst_68 = arith.constant dense<0.000000e+00> : vector<8x128xf32>
    %123 = tpu.matmul %122, %121, %cst_68 {dimension_numbers = #tpu.dot_dimension_numbers<[1], [0], [0], [1], [0, 0, 1, 1], [], []>} : vector<8x256xbf16>, vector<256x128xbf16>, vector<8x128xf32> -> vector<8x128xf32>
    %124 = vector.broadcast %2 : vector<1x128xf32> to vector<8x128xf32>
    %125 = arith.addf %123, %124 : vector<8x128xf32>
    %cst_69 = arith.constant 0.000000e+00 : f32
    %126 = vector.broadcast %cst_69 : f32 to vector<8x128xf32>
    %127 = arith.maximumf %125, %126 : vector<8x128xf32>
    %c256_70 = arith.constant 256 : index
    %c0_71 = arith.constant 0 : index
    %128 = vector.load %arg5[%c256_70, %c0_71] : memref<640x128xbf16, #tpu.memory_space<vmem>>, vector<128x128xbf16>
    %129 = arith.truncf %127 : vector<8x128xf32> to vector<8x128xbf16>
    %cst_72 = arith.constant dense<0.000000e+00> : vector<8x128xf32>
    %130 = tpu.matmul %129, %128, %cst_72 {dimension_numbers = #tpu.dot_dimension_numbers<[1], [0], [0], [1], [0, 0, 1, 1], [], []>} : vector<8x128xbf16>, vector<128x128xbf16>, vector<8x128xf32> -> vector<8x128xf32>
    %131 = vector.broadcast %3 : vector<1x128xf32> to vector<8x128xf32>
    %132 = arith.addf %130, %131 : vector<8x128xf32>
    %cst_73 = arith.constant 0.000000e+00 : f32
    %133 = vector.broadcast %cst_73 : f32 to vector<8x128xf32>
    %134 = arith.maximumf %132, %133 : vector<8x128xf32>
    %c384_74 = arith.constant 384 : index
    %c0_75 = arith.constant 0 : index
    %135 = vector.load %arg5[%c384_74, %c0_75] : memref<640x128xbf16, #tpu.memory_space<vmem>>, vector<128x128xbf16>
    %136 = arith.truncf %134 : vector<8x128xf32> to vector<8x128xbf16>
    %cst_76 = arith.constant dense<0.000000e+00> : vector<8x128xf32>
    %137 = tpu.matmul %136, %135, %cst_76 {dimension_numbers = #tpu.dot_dimension_numbers<[1], [0], [0], [1], [0, 0, 1, 1], [], []>} : vector<8x128xbf16>, vector<128x128xbf16>, vector<8x128xf32> -> vector<8x128xf32>
    %138 = vector.broadcast %4 : vector<1x128xf32> to vector<8x128xf32>
    %139 = arith.addf %137, %138 : vector<8x128xf32>
    %cst_77 = arith.constant 0.000000e+00 : f32
    %140 = vector.broadcast %cst_77 : f32 to vector<8x128xf32>
    %141 = arith.maximumf %139, %140 : vector<8x128xf32>
    %c512_78 = arith.constant 512 : index
    %c0_79 = arith.constant 0 : index
    %142 = vector.load %arg5[%c512_78, %c0_79] : memref<640x128xbf16, #tpu.memory_space<vmem>>, vector<128x128xbf16>
    %143 = arith.truncf %141 : vector<8x128xf32> to vector<8x128xbf16>
    %cst_80 = arith.constant dense<0.000000e+00> : vector<8x128xf32>
    %144 = tpu.matmul %143, %142, %cst_80 {dimension_numbers = #tpu.dot_dimension_numbers<[1], [0], [0], [1], [0, 0, 1, 1], [], []>} : vector<8x128xbf16>, vector<128x128xbf16>, vector<8x128xf32> -> vector<8x128xf32>
    %145 = vector.broadcast %5 : vector<1x128xf32> to vector<8x128xf32>
    %146 = arith.addf %144, %145 : vector<8x128xf32>
    %c0_81 = arith.constant 0 : index
    %c256_82 = arith.constant 256 : index
    %147 = vector.load %arg7[%c0_81, %c256_82] : memref<8x384xf32, #tpu.memory_space<vmem>>, vector<8x128xf32>
    tpu.vector_store %arg7[%c0_81, %c256_82], %146 {strides = array<i32>} : memref<8x384xf32, #tpu.memory_space<vmem>>, vector<8x128xf32>,
    return
  }
  func.func @transform_0(%arg0: i32) -> (i32, i32) {
    %c0_i32 = arith.constant 0 : i32
    %c0_i32_0 = arith.constant 0 : i32
    return %arg0, %c0_i32 : i32, i32
  }
  func.func @transform_1(%arg0: i32) -> (i32, i32) {
    %c0_i32 = arith.constant 0 : i32
    %c0_i32_0 = arith.constant 0 : i32
    %c0_i32_1 = arith.constant 0 : i32
    return %c0_i32, %c0_i32_0 : i32, i32
  }
  func.func @transform_2(%arg0: i32) -> (i32, i32) {
    %c0_i32 = arith.constant 0 : i32
    %c0_i32_0 = arith.constant 0 : i32
    %c0_i32_1 = arith.constant 0 : i32
    return %c0_i32, %c0_i32_0 : i32, i32
  }
  func.func @transform_3(%arg0: i32) -> (i32, i32) {
    %c0_i32 = arith.constant 0 : i32
    %c0_i32_0 = arith.constant 0 : i32
    %c0_i32_1 = arith.constant 0 : i32
    return %c0_i32, %c0_i32_0 : i32, i32
  }
  func.func @transform_4(%arg0: i32) -> (i32, i32) {
    %c0_i32 = arith.constant 0 : i32
    %c0_i32_0 = arith.constant 0 : i32
    %c0_i32_1 = arith.constant 0 : i32
    return %c0_i32, %c0_i32_0 : i32, i32
  }
  func.func @transform_5(%arg0: i32) -> (i32, i32) {
    %c0_i32 = arith.constant 0 : i32
    %c0_i32_0 = arith.constant 0 : i32
    %c0_i32_1 = arith.constant 0 : i32
    return %c0_i32, %c0_i32_0 : i32, i32
  }
  func.func @transform_6(%arg0: i32) -> (i32, i32) {
    %c0_i32 = arith.constant 0 : i32
    %c0_i32_0 = arith.constant 0 : i32
    return %arg0, %c0_i32 : i32, i32
  }
}

</mosaic_0001>

<llo_original>
// kernel: tpu_custom_call.1
$region0: #{tpu_custom_call.1}
  #allocation0 [shape = 'u32[]', space=smem, size = 0x4, offset = 0x4, fixed_abs, tag = 'smem constant byte address 0x4 - core index']
  #allocation1 [shape = 'u32[144,128]{1,0:T(1,128)}', space=vmem, size = 0x12000, scoped, tag = 'internal scratch']
  %s0 = inlined_call_operand.hbm [shape: f32[16,256], index: 0, kind: input, shape index: {}]
  %s1 = inlined_call_operand.hbm [shape: f32[8,256], index: 1, kind: input, shape index: {}]
  %s2 = inlined_call_operand.hbm [shape: bf16[256,384], index: 2, kind: input, shape index: {}]
  %s3 = inlined_call_operand.hbm [shape: bf16[512,256], index: 3, kind: input, shape index: {}]
  %s4 = inlined_call_operand.hbm [shape: bf16[640,128], index: 4, kind: input, shape index: {}]
  %s5 = inlined_call_operand.hbm [shape: f32[8,384], index: 5, kind: input, shape index: {}]
  %s6 = inlined_call_operand.hbm [shape: f32[16,384], index: 6, kind: output, shape index: {}]
  %s7 = sld [smem:[#allocation0]]
  $region81: #{tpu_custom_call.1} parent=0
    _
  %s9 = ssub.s32 1, %s7
  %s10 = scalar_select 0, %s9, %s7
  $region1: #{tpu_custom_call.1} parent=0
    #allocation2 [shape = 'u8[16384]{0}', space=vmem, size = 0x4000, scoped, tag = 'input window, operand 0']
    #allocation3 [shape = 's32[2]{0}', space=sflag, size = 0x8, scoped, tag = 'scoped memory for tpu_custom_call.1']
    #allocation4 [shape = 's32[2]{0}', space=sflag, size = 0x8, scoped, tag = 'scoped memory for tpu_custom_call.1']
    #allocation5 [shape = 'u8[8192]{0}', space=vmem, size = 0x2000, scoped, tag = 'input window, operand 1, single buffered']
    #allocation6 [shape = 's32[1]{0}', space=sflag, size = 0x4, scoped, tag = 'scoped memory for tpu_custom_call.1']
    #allocation7 [shape = 'u8[196608]{0}', space=vmem, size = 0x30000, scoped, tag = 'input window, operand 2, single buffered']
    #allocation8 [shape = 'u8[262144]{0}', space=vmem, size = 0x40000, scoped, tag = 'input window, operand 3, single buffered']
    #allocation9 [shape = 's32[1]{0}', space=sflag, size = 0x4, scoped, tag = 'scoped memory for tpu_custom_call.1']
    #allocation10 [shape = 'u8[163840]{0}', space=vmem, size = 0x28000, scoped, tag = 'input window, operand 4, single buffered']
    #allocation11 [shape = 'u8[12288]{0}', space=vmem, size = 0x3000, scoped, tag = 'input window, operand 5, single buffered']
    #allocation12 [shape = 's32[1]{0}', space=sflag, size = 0x4, scoped, tag = 'scoped memory for tpu_custom_call.1']
    #allocation13 [shape = 'u8[24576]{0}', space=vmem, size = 0x6000, scoped, tag = 'output window, operand 0']
    %11 = vsyncpa [#allocation3], 0
    %s12 = scalar_lea.sflag [#allocation3], 1
    %13 = vsyncpa %s12, 0
    %14 = vsyncpa [#allocation6], 0
    %15 = vsyncpa [#allocation9], 0
    %16 = vsyncpa [#allocation12], 0
    %17 = vsyncpa [#allocation4], 0
    %s18 = scalar_lea.sflag [#allocation4], 1
    %19 = vsyncpa %s18, 0
    loop: start=0, step=1, limit=4
    $region2: #{tpu_custom_call.1} parent=1 // loop_pre_header
      _
    $region3: #{tpu_custom_call.1} parent=1 // loop_header
      %s21 = sphi 0, %s25
      %p22 = scmp.ge.s32.totalorder %s21, 4
      %s31 = sphi 0, %s33
      %s34 = sphi 0, %s31
      %s35 = sphi 0, %s34
      %s51 = sphi 0, %s35
      %s55 = sphi 0, %s55
      %s57 = sphi 0, %s55
      %s58 = sphi 0, %s57
      %s72 = sphi 0, %s58
      %s76 = sphi 0, %s76
      %s78 = sphi 0, %s76
      %s79 = sphi 0, %s78
      %s93 = sphi 0, %s79
      %s97 = sphi 0, %s97
      %s99 = sphi 0, %s97
      %s100 = sphi 0, %s99
      %s114 = sphi 0, %s100
      %s118 = sphi 0, %s118
      %s120 = sphi 0, %s118
      %s121 = sphi 0, %s120
      %s135 = sphi 0, %s121
      %s139 = sphi 0, %s139
      %s141 = sphi 0, %s139
      %s142 = sphi 0, %s141
      %s156 = sphi 0, %s142
      %s162 = sphi 0, %s164
      %s165 = sphi 0, %s162
      %s166 = sphi 0, %s165
      %s182 = sphi 0, %s166
    $region4: #{tpu_custom_call.1} parent=1 // loop_header_branch
      %24 = sbr.rel (%p22) target = $region8
    $region5: #{tpu_custom_call.1} parent=1 // loop_body
      %s26 = ssub.s32 %s21, 1
      %s27 = ssub.s32 %s21, 2
      %s28 = sadd.s32 %s21, 1
      %s29 = ssub.s32 %s21, %s28
      %p30 = scmp.eq.s32.totalorder %s29, 0
      %s32 = sadd.s32 %s31, 1
      %s33 = scalar_select %p30, %s31, %s32
      %p36 = pneg %p30
      %p37 = scmp.eq.s32.totalorder %s21, 1
      %p38 = por %p36, %p37
      %p39 = scmp.ne.s32.totalorder %s31, %s34
      %p40 = scmp.eq.s32.totalorder %s21, 0
      %p41 = por %p39, %p40
      %p42 = scmp.ne.s32.totalorder %s31, %s34
      %p43 = scmp.eq.s32.totalorder %s26, 1
      %p44 = por %p42, %p43
      %p45 = scmp.ne.s32.totalorder %s34, %s35
      %p46 = scmp.eq.s32.totalorder %s26, 0
      %p47 = por %p45, %p46
      %p48 = scmp.ne.s32.totalorder %s34, %s35
      %p49 = scmp.eq.s32.totalorder %s27, 1
      %p50 = por %p48, %p49
      %p52 = scmp.ne.s32.totalorder %s35, %s51
      %p53 = scmp.eq.s32.totalorder %s27, 0
      %p54 = por %p52, %p53
      %s56 = sadd.s32 %s55, 1
      %p59 = scmp.eq.s32.totalorder %s21, 1
      %p60 = scmp.ne.s32.totalorder %s55, %s57
      %p61 = scmp.eq.s32.totalorder %s21, 0
      %p62 = por %p60, %p61
      %p63 = scmp.ne.s32.totalorder %s55, %s57
      %p64 = scmp.eq.s32.totalorder %s26, 1
      %p65 = por %p63, %p64
      %p66 = scmp.ne.s32.totalorder %s57, %s58
      %p67 = scmp.eq.s32.totalorder %s26, 0
      %p68 = por %p66, %p67
      %p69 = scmp.ne.s32.totalorder %s57, %s58
      %p70 = scmp.eq.s32.totalorder %s27, 1
      %p71 = por %p69, %p70
      %p73 = scmp.ne.s32.totalorder %s58, %s72
      %p74 = scmp.eq.s32.totalorder %s27, 0
      %p75 = por %p73, %p74
      %s77 = sadd.s32 %s76, 1
      %p80 = scmp.eq.s32.totalorder %s21, 1
      %p81 = scmp.ne.s32.totalorder %s76, %s78
      %p82 = scmp.eq.s32.totalorder %s21, 0
      %p83 = por %p81, %p82
      %p84 = scmp.ne.s32.totalorder %s76, %s78
      %p85 = scmp.eq.s32.totalorder %s26, 1
      %p86 = por %p84, %p85
      %p87 = scmp.ne.s32.totalorder %s78, %s79
      %p88 = scmp.eq.s32.totalorder %s26, 0
      %p89 = por %p87, %p88
      %p90 = scmp.ne.s32.totalorder %s78, %s79
      %p91 = scmp.eq.s32.totalorder %s27, 1
      %p92 = por %p90, %p91
      %p94 = scmp.ne.s32.totalorder %s79, %s93
      %p95 = scmp.eq.s32.totalorder %s27, 0
      %p96 = por %p94, %p95
      %s98 = sadd.s32 %s97, 1
      %p101 = scmp.eq.s32.totalorder %s21, 1
      %p102 = scmp.ne.s32.totalorder %s97, %s99
      %p103 = scmp.eq.s32.totalorder %s21, 0
      %p104 = por %p102, %p103
      %p105 = scmp.ne.s32.totalorder %s97, %s99
      %p106 = scmp.eq.s32.totalorder %s26, 1
      %p107 = por %p105, %p106
      %p108 = scmp.ne.s32.totalorder %s99, %s100
      %p109 = scmp.eq.s32.totalorder %s26, 0
      %p110 = por %p108, %p109
      %p111 = scmp.ne.s32.totalorder %s99, %s100
      %p112 = scmp.eq.s32.totalorder %s27, 1
      %p113 = por %p111, %p112
      %p115 = scmp.ne.s32.totalorder %s100, %s114
      %p116 = scmp.eq.s32.totalorder %s27, 0
      %p117 = por %p115, %p116
      %s119 = sadd.s32 %s118, 1
      %p122 = scmp.eq.s32.totalorder %s21, 1
      %p123 = scmp.ne.s32.totalorder %s118, %s120
      %p124 = scmp.eq.s32.totalorder %s21, 0
      %p125 = por %p123, %p124
      %p126 = scmp.ne.s32.totalorder %s118, %s120
      %p127 = scmp.eq.s32.totalorder %s26, 1
      %p128 = por %p126, %p127
      %p129 = scmp.ne.s32.totalorder %s120, %s121
      %p130 = scmp.eq.s32.totalorder %s26, 0
      %p131 = por %p129, %p130
      %p132 = scmp.ne.s32.totalorder %s120, %s121
      %p133 = scmp.eq.s32.totalorder %s27, 1
      %p134 = por %p132, %p133
      %p136 = scmp.ne.s32.totalorder %s121, %s135
      %p137 = scmp.eq.s32.totalorder %s27, 0
      %p138 = por %p136, %p137
      %s140 = sadd.s32 %s139, 1
      %p143 = scmp.eq.s32.totalorder %s21, 1
      %p144 = scmp.ne.s32.totalorder %s139, %s141
      %p145 = scmp.eq.s32.totalorder %s21, 0
      %p146 = por %p144, %p145
      %p147 = scmp.ne.s32.totalorder %s139, %s141
      %p148 = scmp.eq.s32.totalorder %s26, 1
      %p149 = por %p147, %p148
      %p150 = scmp.ne.s32.totalorder %s141, %s142
      %p151 = scmp.eq.s32.totalorder %s26, 0
      %p152 = por %p150, %p151
      %p153 = scmp.ne.s32.totalorder %s141, %s142
      %p154 = scmp.eq.s32.totalorder %s27, 1
      %p155 = por %p153, %p154
      %p157 = scmp.ne.s32.totalorder %s142, %s156
      %p158 = scmp.eq.s32.totalorder %s27, 0
      %p159 = por %p157, %p158
      %s160 = ssub.s32 %s21, %s28
      %p161 = scmp.eq.s32.totalorder %s160, 0
      %s163 = sadd.s32 %s162, 1
      %s164 = scalar_select %p161, %s162, %s163
      %p167 = pneg %p161
      %p168 = scmp.eq.s32.totalorder %s21, 1
      %p169 = por %p167, %p168
      %p170 = scmp.ne.s32.totalorder %s162, %s165
      %p171 = scmp.eq.s32.totalorder %s21, 0
      %p172 = por %p170, %p171
      %p173 = scmp.ne.s32.totalorder %s162, %s165
      %p174 = scmp.eq.s32.totalorder %s26, 1
      %p175 = por %p173, %p174
      %p176 = scmp.ne.s32.totalorder %s165, %s166
      %p177 = scmp.eq.s32.totalorder %s26, 0
      %p178 = por %p176, %p177
      %p179 = scmp.ne.s32.totalorder %s165, %s166
      %p180 = scmp.eq.s32.totalorder %s27, 1
      %p181 = por %p179, %p180
      %p183 = scmp.ne.s32.totalorder %s166, %s182
      %p184 = scmp.eq.s32.totalorder %s27, 0
      %p185 = por %p183, %p184
      %p186 = scmp.le.s32.totalorder 1, %s21
      %p187 = scmp.lt.s32.totalorder %s21, 3
      %p188 = pnand %p186, %p187
      %p189 = pneg %p188
      // Predicated region
      $region9: #{tpu_custom_call.1} parent=5 // pred_check
        _
      $region10: #{tpu_custom_call.1} parent=5 // pred_check_branch
        %191 = sbr.rel (%p188) target = $region12
      $region11: #{tpu_custom_call.1} parent=5 // pred_region
        %s192 = ssub.s32 %s21, 1
        // Predicated region
        $region13: #{tpu_custom_call.1} parent=11 // pred_check
          %p193 = pneg %p68
        $region14: #{tpu_custom_call.1} parent=11 // pred_check_branch
          %195 = sbr.rel (%p193) target = $region16
        $region15: #{tpu_custom_call.1} parent=11 // pred_region
          %s197 = ssub.s32 256, 256
          %198 = vsyncadd [#allocation6], %s197
          %s200 = sshll.u32 [#allocation5], 4
          %s201 = int_to_ptr.vmem [resolvable:$true] %s200
          %203 = dma.hbm_to_vmem [thread:$0]  %s1, 256, %s201, [#allocation6]
        $region16: #{tpu_custom_call.1} parent=11 // pred_fallthru
          _
        // Predicated region
        $region17: #{tpu_custom_call.1} parent=11 // pred_check
          %p204 = pneg %p89
        $region18: #{tpu_custom_call.1} parent=11 // pred_check_branch
          %206 = sbr.rel (%p204) target = $region20
        $region19: #{tpu_custom_call.1} parent=11 // pred_region
          %s208 = ssub.s32 6144, 6144
          %209 = vsyncadd [#allocation6], %s208
          %s210 = sshll.u32 [#allocation7], 4
          %s211 = int_to_ptr.vmem [resolvable:$true] %s210
          %216 = dma.hbm_to_vmem [thread:$0]  %s2, 6144, %s211, [#allocation6], 192, 192, 12
        $region20: #{tpu_custom_call.1} parent=11 // pred_fallthru
          _
        // Predicated region
        $region21: #{tpu_custom_call.1} parent=11 // pred_check
          %p217 = pneg %p110
        $region22: #{tpu_custom_call.1} parent=11 // pred_check_branch
          %219 = sbr.rel (%p217) target = $region24
        $region23: #{tpu_custom_call.1} parent=11 // pred_region
          %s221 = ssub.s32 8192, 8192
          %222 = vsyncadd [#allocation9], %s221
          %s223 = sshll.u32 [#allocation8], 4
          %s224 = int_to_ptr.vmem [resolvable:$true] %s223
          %229 = dma.hbm_to_vmem [thread:$0]  %s3, 8192, %s224, [#allocation9], 128, 128, 8
        $region24: #{tpu_custom_call.1} parent=11 // pred_fallthru
          _
        // Predicated region
        $region25: #{tpu_custom_call.1} parent=11 // pred_check
          %p230 = pneg %p131
        $region26: #{tpu_custom_call.1} parent=11 // pred_check_branch
          %232 = sbr.rel (%p230) target = $region28
        $region27: #{tpu_custom_call.1} parent=11 // pred_region
          %s234 = ssub.s32 5120, 5120
          %235 = vsyncadd [#allocation9], %s234
          %s236 = sshll.u32 [#allocation10], 4
          %s237 = int_to_ptr.vmem [resolvable:$true] %s236
          %242 = dma.hbm_to_vmem [thread:$0]  %s4, 5120, %s237, [#allocation9], 64, 64, 4
        $region28: #{tpu_custom_call.1} parent=11 // pred_fallthru
          _
        // Predicated region
        $region29: #{tpu_custom_call.1} parent=11 // pred_check
          %p243 = pneg %p152
        $region30: #{tpu_custom_call.1} parent=11 // pred_check_branch
          %245 = sbr.rel (%p243) target = $region32
        $region31: #{tpu_custom_call.1} parent=11 // pred_region
          %s247 = ssub.s32 384, 384
          %248 = vsyncadd [#allocation12], %s247
          %s250 = sshll.u32 [#allocation11], 4
          %s251 = int_to_ptr.vmem [resolvable:$true] %s250
          %253 = dma.hbm_to_vmem [thread:$0]  %s5, 384, %s251, [#allocation12]
        $region32: #{tpu_custom_call.1} parent=11 // pred_fallthru
          _
      $region12: #{tpu_custom_call.1} parent=5 // pred_fallthru
        _
      %p254 = scmp.lt.s32.totalorder %s21, 2
      // Predicated region
      $region33: #{tpu_custom_call.1} parent=5 // pred_check
        %p255 = pneg %p254
      $region34: #{tpu_custom_call.1} parent=5 // pred_check_branch
        %257 = sbr.rel (%p255) target = $region36
      $region35: #{tpu_custom_call.1} parent=5 // pred_region
        // Predicated region
        $region37: #{tpu_custom_call.1} parent=35 // pred_check
          %p258 = pneg %p41
        $region38: #{tpu_custom_call.1} parent=35 // pred_check_branch
          %260 = sbr.rel (%p258) target = $region40
        $region39: #{tpu_custom_call.1} parent=35 // pred_region
          %s261 = sand.u32 %s31, 1
          %s262 = scalar_lea.sflag [#allocation3], %s261
          %s263 = sand.u32 %s31, 1
          %s264 = smul.addr %s263, 16
          %s265 = scalar_lea.vmem [#allocation2], %s264
          %s267 = ssub.s32 256, 256
          %268 = vsyncadd %s262, %s267
          %s269 = smul.addr %s21, 2
          %s270 = smul.addr %s269, 128
          %s271 = scalar_lea.hbm %s0, %s270
          %s273 = sshll.u32 %s265, 4
          %s274 = int_to_ptr.vmem [resolvable:$true] %s273
          %276 = dma.hbm_to_vmem [thread:$0]  %s271, 256, %s274, %s262
        $region40: #{tpu_custom_call.1} parent=35 // pred_fallthru
          _
      $region36: #{tpu_custom_call.1} parent=5 // pred_fallthru
        _
      %p277 = scmp.le.s32.totalorder 1, %s21
      %p278 = scmp.lt.s32.totalorder %s21, 3
      %p279 = pnand %p277, %p278
      %p280 = pneg %p279
      // Predicated region
      $region41: #{tpu_custom_call.1} parent=5 // pred_check
        _
      $region42: #{tpu_custom_call.1} parent=5 // pred_check_branch
        %282 = sbr.rel (%p279) target = $region44
      $region43: #{tpu_custom_call.1} parent=5 // pred_region
        %s283 = ssub.s32 %s21, 1
        %s284 = sand.u32 %s34, 1
        %s285 = scalar_lea.sflag [#allocation3], %s284
        %s286 = sand.u32 %s34, 1
        %s287 = smul.addr %s286, 16
        %s288 = scalar_lea.vmem [#allocation2], %s287
        // Predicated region
        $region45: #{tpu_custom_call.1} parent=43 // pred_check
          %p289 = pneg %p47
        $region46: #{tpu_custom_call.1} parent=43 // pred_check_branch
          %291 = sbr.rel (%p289) target = $region48
        $region47: #{tpu_custom_call.1} parent=43 // pred_region
          %292 = dma.done %s285, 256
        $region48: #{tpu_custom_call.1} parent=43 // pred_fallthru
          _
        // Predicated region
        $region49: #{tpu_custom_call.1} parent=43 // pred_check
          %p293 = pneg %p68
        $region50: #{tpu_custom_call.1} parent=43 // pred_check_branch
          %295 = sbr.rel (%p293) target = $region52
        $region51: #{tpu_custom_call.1} parent=43 // pred_region
          %296 = dma.done [#allocation6], 256
        $region52: #{tpu_custom_call.1} parent=43 // pred_fallthru
          _
        // Predicated region
        $region53: #{tpu_custom_call.1} parent=43 // pred_check
          %p297 = pneg %p89
        $region54: #{tpu_custom_call.1} parent=43 // pred_check_branch
          %299 = sbr.rel (%p297) target = $region56
        $region55: #{tpu_custom_call.1} parent=43 // pred_region
          %300 = dma.done [#allocation6], 6144
        $region56: #{tpu_custom_call.1} parent=43 // pred_fallthru
          _
        // Predicated region
        $region57: #{tpu_custom_call.1} parent=43 // pred_check
          %p301 = pneg %p110
        $region58: #{tpu_custom_call.1} parent=43 // pred_check_branch
          %303 = sbr.rel (%p301) target = $region60
        $region59: #{tpu_custom_call.1} parent=43 // pred_region
          %304 = dma.done [#allocation9], 8192
        $region60: #{tpu_custom_call.1} parent=43 // pred_fallthru
          _
        // Predicated region
        $region61: #{tpu_custom_call.1} parent=43 // pred_check
          %p305 = pneg %p131
        $region62: #{tpu_custom_call.1} parent=43 // pred_check_branch
          %307 = sbr.rel (%p305) target = $region64
        $region63: #{tpu_custom_call.1} parent=43 // pred_region
          %308 = dma.done [#allocation9], 5120
        $region64: #{tpu_custom_call.1} parent=43 // pred_fallthru
          _
        // Predicated region
        $region65: #{tpu_custom_call.1} parent=43 // pred_check
          %p309 = pneg %p152
        $region66: #{tpu_custom_call.1} parent=43 // pred_check_branch
          %311 = sbr.rel (%p309) target = $region68
        $region67: #{tpu_custom_call.1} parent=43 // pred_region
          %312 = dma.done [#allocation12], 384
        $region68: #{tpu_custom_call.1} parent=43 // pred_fallthru
          _
        %s313 = sand.u32 %s34, 1
        %s314 = scalar_lea.sflag [#allocation3], %s313
        %s315 = sand.u32 %s34, 1
        %s316 = smul.addr %s315, 16
        %s317 = scalar_lea.vmem [#allocation2], %s316
        %p318 = pneg %p47
        %p319 = pneg %p44
        %p320 = pneg %p68
        %p321 = pneg %p65
        %p322 = pneg %p89
        %p323 = pneg %p86
        %p324 = pneg %p110
        %p325 = pneg %p107
        %p326 = pneg %p131
        %p327 = pneg %p128
        %p328 = pneg %p152
        %p329 = pneg %p149
        %p330 = pneg %p178
        %p331 = pneg %p175
        %s332 = sand.u32 %s165, 1
        %s333 = scalar_lea.sflag [#allocation4], %s332
        %s334 = sand.u32 %s165, 1
        %s335 = smul.addr %s334, 24
        %s336 = scalar_lea.vmem [#allocation13], %s335
        %v338 = vld [vmem:[#allocation11] ss:$8 sm:$0x7]
        %s339 = scalar_lea.vmem [#allocation11], 1
        %v340 = vld [vmem:[%s339] ss:$8 sm:$0x3]
        %v341 = vld [vmem:[#allocation11 + $0x2] ss:$0 sm:$0xff]
        %v342 = vld [vmem:[#allocation11 + $0x3] ss:$0 sm:$0xff]
        %v343 = vld [vmem:[#allocation11 + $0x4] ss:$0 sm:$0xff]
        %v344 = vld [vmem:[#allocation11 + $0x5] ss:$0 sm:$0xff]
        %v345 = vld [vmem:[#allocation5] sm:$0xff]
        %v346 = vld [vmem:[#allocation5 + $0x8] sm:$0xff]
        %v347 = vld [vmem:[#allocation7] sm:$0xff]
        %v348 = vld [vmem:[#allocation7 + $0x8] sm:$0xf]
        %v349 = vld [vmem:[#allocation7 + $0xc] sm:$0xff]
        %v350 = vld [vmem:[#allocation7 + $0x14] sm:$0xf]
        %v351 = vld [vmem:[#allocation7 + $0x18] sm:$0xff]
        %v352 = vld [vmem:[#allocation7 + $0x20] sm:$0xf]
        %v353 = vld [vmem:[#allocation7 + $0x24] sm:$0xff]
        %v354 = vld [vmem:[#allocation7 + $0x2c] sm:$0xf]
        %v355 = vld [vmem:[#allocation7 + $0x30] sm:$0xff]
        %v356 = vld [vmem:[#allocation7 + $0x38] sm:$0xf]
        %v357 = vld [vmem:[#allocation7 + $0x3c] sm:$0xff]
        %v358 = vld [vmem:[#allocation7 + $0x44] sm:$0xf]
        %v359 = vld [vmem:[#allocation7 + $0x48] sm:$0xff]
        %v360 = vld [vmem:[#allocation7 + $0x50] sm:$0xf]
        %v361 = vld [vmem:[#allocation7 + $0x54] sm:$0xff]
        %v362 = vld [vmem:[#allocation7 + $0x5c] sm:$0xf]
        %v363 = vld [vmem:[#allocation7 + $0x60] sm:$0xff]
        %v364 = vld [vmem:[#allocation7 + $0x68] sm:$0xf]
        %v365 = vld [vmem:[#allocation7 + $0x6c] sm:$0xff]
        %v366 = vld [vmem:[#allocation7 + $0x74] sm:$0xf]
        %v367 = vld [vmem:[#allocation7 + $0x78] sm:$0xff]
        %v368 = vld [vmem:[#allocation7 + $0x80] sm:$0xf]
        %v369 = vld [vmem:[#allocation7 + $0x84] sm:$0xff]
        %v370 = vld [vmem:[#allocation7 + $0x8c] sm:$0xf]
        %v371 = vld [vmem:[#allocation7 + $0x90] sm:$0xff]
        %v372 = vld [vmem:[#allocation7 + $0x98] sm:$0xf]
        %v373 = vld [vmem:[#allocation7 + $0x9c] sm:$0xff]
        %v374 = vld [vmem:[#allocation7 + $0xa4] sm:$0xf]
        %v375 = vld [vmem:[#allocation7 + $0xa8] sm:$0xff]
        %v376 = vld [vmem:[#allocation7 + $0xb0] sm:$0xf]
        %v377 = vld [vmem:[#allocation7 + $0xb4] sm:$0xff]
        %v378 = vld [vmem:[#allocation7 + $0xbc] sm:$0xf]
        %v379 = vld [vmem:[#allocation7 + $0xc0] sm:$0xff]
        %v380 = vld [vmem:[#allocation7 + $0xc8] sm:$0xf]
        %v381 = vld [vmem:[#allocation7 + $0xcc] sm:$0xff]
        %v382 = vld [vmem:[#allocation7 + $0xd4] sm:$0xf]
        %v383 = vld [vmem:[#allocation7 + $0xd8] sm:$0xff]
        %v384 = vld [vmem:[#allocation7 + $0xe0] sm:$0xf]
        %v385 = vld [vmem:[#allocation7 + $0xe4] sm:$0xff]
        %v386 = vld [vmem:[#allocation7 + $0xec] sm:$0xf]
        %v387 = vld [vmem:[#allocation7 + $0xf0] sm:$0xff]
        %v388 = vld [vmem:[#allocation7 + $0xf8] sm:$0xf]
        %v389 = vld [vmem:[#allocation7 + $0xfc] sm:$0xff]
        %v390 = vld [vmem:[#allocation7 + $0x104] sm:$0xf]
        %v391 = vld [vmem:[#allocation7 + $0x108] sm:$0xff]
        %v392 = vld [vmem:[#allocation7 + $0x110] sm:$0xf]
        %v393 = vld [vmem:[#allocation7 + $0x114] sm:$0xff]
        %v394 = vld [vmem:[#allocation7 + $0x11c] sm:$0xf]
        %v395 = vld [vmem:[#allocation7 + $0x120] sm:$0xff]
        %v396 = vld [vmem:[#allocation7 + $0x128] sm:$0xf]
        %v397 = vld [vmem:[#allocation7 + $0x12c] sm:$0xff]
        %v398 = vld [vmem:[#allocation7 + $0x134] sm:$0xf]
        %v399 = vld [vmem:[#allocation7 + $0x138] sm:$0xff]
        %v400 = vld [vmem:[#allocation7 + $0x140] sm:$0xf]
        %v401 = vld [vmem:[#allocation7 + $0x144] sm:$0xff]
        %v402 = vld [vmem:[#allocation7 + $0x14c] sm:$0xf]
        %v403 = vld [vmem:[#allocation7 + $0x150] sm:$0xff]
        %v404 = vld [vmem:[#allocation7 + $0x158] sm:$0xf]
        %v405 = vld [vmem:[#allocation7 + $0x15c] sm:$0xff]
        %v406 = vld [vmem:[#allocation7 + $0x164] sm:$0xf]
        %v407 = vld [vmem:[#allocation7 + $0x168] sm:$0xff]
        %v408 = vld [vmem:[#allocation7 + $0x170] sm:$0xf]
        %v409 = vld [vmem:[#allocation7 + $0x174] sm:$0xff]
        %v410 = vld [vmem:[#allocation7 + $0x17c] sm:$0xf]
        %v411 = vpack.c.bf16 %v345, %v345
        %v412 = vpack.c.bf16 %v346, %v346
        %v414 = vlaneseq
        %v415 = vshrl.u32 %v414, 7
        %v416 = vsub.s32 0, %v415
        %v417 = vrot.slane %v338, %v416
        %v418 = vlaneseq
        %v419 = vshrl.u32 %v418, 7
        %v420 = vsub.s32 1, %v419
        %v421 = vrot.slane %v338, %v420
        %v422 = vlaneseq
        %v423 = vshrl.u32 %v422, 7
        %v424 = vsub.s32 2, %v423
        %v425 = vrot.slane %v338, %v424
        %v493 = vunpack.c.l.b16 %v347
        %v494 = vunpack.c.h.b16 %v347
        %v495 = vunpack.c.l.b16 %v348
        %v496 = vunpack.c.l.b16 %v349
        %v497 = vunpack.c.h.b16 %v349
        %v498 = vunpack.c.l.b16 %v350
        %v499 = vunpack.c.l.b16 %v351
        %v500 = vunpack.c.h.b16 %v351
        %v501 = vunpack.c.l.b16 %v352
        %v502 = vunpack.c.l.b16 %v353
        %v503 = vunpack.c.h.b16 %v353
        %v504 = vunpack.c.l.b16 %v354
        %v505 = vunpack.c.l.b16 %v355
        %v506 = vunpack.c.h.b16 %v355
        %v507 = vunpack.c.l.b16 %v356
        %v508 = vunpack.c.l.b16 %v357
        %v509 = vunpack.c.h.b16 %v357
        %v510 = vunpack.c.l.b16 %v358
        %v511 = vunpack.c.l.b16 %v359
        %v512 = vunpack.c.h.b16 %v359
        %v513 = vunpack.c.l.b16 %v360
        %v514 = vunpack.c.l.b16 %v361
        %v515 = vunpack.c.h.b16 %v361
        %v516 = vunpack.c.l.b16 %v362
        %v517 = vunpack.c.l.b16 %v363
        %v518 = vunpack.c.h.b16 %v363
        %v519 = vunpack.c.l.b16 %v364
        %v520 = vunpack.c.l.b16 %v365
        %v521 = vunpack.c.h.b16 %v365
        %v522 = vunpack.c.l.b16 %v366
        %v523 = vunpack.c.l.b16 %v367
        %v524 = vunpack.c.h.b16 %v367
        %v525 = vunpack.c.l.b16 %v368
        %v526 = vunpack.c.l.b16 %v369
        %v527 = vunpack.c.h.b16 %v369
        %v528 = vunpack.c.l.b16 %v370
        %v529 = vunpack.c.l.b16 %v371
        %v530 = vunpack.c.h.b16 %v371
        %v531 = vunpack.c.l.b16 %v372
        %v532 = vunpack.c.l.b16 %v373
        %v533 = vunpack.c.h.b16 %v373
        %v534 = vunpack.c.l.b16 %v374
        %v535 = vunpack.c.l.b16 %v375
        %v536 = vunpack.c.h.b16 %v375
        %v537 = vunpack.c.l.b16 %v376
        %v538 = vunpack.c.l.b16 %v377
        %v539 = vunpack.c.h.b16 %v377
        %v540 = vunpack.c.l.b16 %v378
        %v541 = vunpack.c.l.b16 %v379
        %v542 = vunpack.c.h.b16 %v379
        %v543 = vunpack.c.l.b16 %v380
        %v544 = vunpack.c.l.b16 %v381
        %v545 = vunpack.c.h.b16 %v381
        %v546 = vunpack.c.l.b16 %v382
        %v547 = vunpack.c.l.b16 %v383
        %v548 = vunpack.c.h.b16 %v383
        %v549 = vunpack.c.l.b16 %v384
        %v550 = vunpack.c.l.b16 %v385
        %v551 = vunpack.c.h.b16 %v385
        %v552 = vunpack.c.l.b16 %v386
        %v553 = vunpack.c.l.b16 %v387
        %v554 = vunpack.c.h.b16 %v387
        %v555 = vunpack.c.l.b16 %v388
        %v556 = vunpack.c.l.b16 %v389
        %v557 = vunpack.c.h.b16 %v389
        %v558 = vunpack.c.l.b16 %v390
        %v559 = vunpack.c.l.b16 %v391
        %v560 = vunpack.c.h.b16 %v391
        %v561 = vunpack.c.l.b16 %v392
        %v562 = vunpack.c.l.b16 %v393
        %v563 = vunpack.c.h.b16 %v393
        %v564 = vunpack.c.l.b16 %v394
        %v565 = vunpack.c.l.b16 %v395
        %v566 = vunpack.c.h.b16 %v395
        %v567 = vunpack.c.l.b16 %v396
        %v568 = vunpack.c.l.b16 %v397
        %v569 = vunpack.c.h.b16 %v397
        %v570 = vunpack.c.l.b16 %v398
        %v571 = vunpack.c.l.b16 %v399
        %v572 = vunpack.c.h.b16 %v399
        %v573 = vunpack.c.l.b16 %v400
        %v574 = vunpack.c.l.b16 %v401
        %v575 = vunpack.c.h.b16 %v401
        %v576 = vunpack.c.l.b16 %v402
        %v577 = vunpack.c.l.b16 %v403
        %v578 = vunpack.c.h.b16 %v403
        %v579 = vunpack.c.l.b16 %v404
        %v580 = vunpack.c.l.b16 %v405
        %v581 = vunpack.c.h.b16 %v405
        %v582 = vunpack.c.l.b16 %v406
        %v583 = vunpack.c.l.b16 %v407
        %v584 = vunpack.c.h.b16 %v407
        %v585 = vunpack.c.l.b16 %v408
        %v586 = vunpack.c.l.b16 %v409
        %v587 = vunpack.c.h.b16 %v409
        %v588 = vunpack.c.l.b16 %v410
        %v589 = vpack.c.b16 %v496, %v493
        %v590 = vpack.c.b16 %v497, %v494
        %v591 = vpack.c.b16 %v498, %v495
        %v592 = vpack.c.b16 %v502, %v499
        %v593 = vpack.c.b16 %v503, %v500
        %v594 = vpack.c.b16 %v504, %v501
        %v595 = vpack.c.b16 %v508, %v505
        %v596 = vpack.c.b16 %v509, %v506
        %v597 = vpack.c.b16 %v510, %v507
        %v598 = vpack.c.b16 %v514, %v511
        %v599 = vpack.c.b16 %v515, %v512
        %v600 = vpack.c.b16 %v516, %v513
        %v601 = vpack.c.b16 %v520, %v517
        %v602 = vpack.c.b16 %v521, %v518
        %v603 = vpack.c.b16 %v522, %v519
        %v604 = vpack.c.b16 %v526, %v523
        %v605 = vpack.c.b16 %v527, %v524
        %v606 = vpack.c.b16 %v528, %v525
        %v607 = vpack.c.b16 %v532, %v529
        %v608 = vpack.c.b16 %v533, %v530
        %v609 = vpack.c.b16 %v534, %v531
        %v610 = vpack.c.b16 %v538, %v535
        %v611 = vpack.c.b16 %v539, %v536
        %v612 = vpack.c.b16 %v540, %v537
        %v613 = vpack.c.b16 %v544, %v541
        %v614 = vpack.c.b16 %v545, %v542
        %v615 = vpack.c.b16 %v546, %v543
        %v616 = vpack.c.b16 %v550, %v547
        %v617 = vpack.c.b16 %v551, %v548
        %v618 = vpack.c.b16 %v552, %v549
        %v619 = vpack.c.b16 %v556, %v553
        %v620 = vpack.c.b16 %v557, %v554
        %v621 = vpack.c.b16 %v558, %v555
        %v622 = vpack.c.b16 %v562, %v559
        %v623 = vpack.c.b16 %v563, %v560
        %v624 = vpack.c.b16 %v564, %v561
        %v625 = vpack.c.b16 %v568, %v565
        %v626 = vpack.c.b16 %v569, %v566
        %v627 = vpack.c.b16 %v570, %v567
        %v628 = vpack.c.b16 %v574, %v571
        %v629 = vpack.c.b16 %v575, %v572
        %v630 = vpack.c.b16 %v576, %v573
        %v631 = vpack.c.b16 %v580, %v577
        %v632 = vpack.c.b16 %v581, %v578
        %v633 = vpack.c.b16 %v582, %v579
        %v634 = vpack.c.b16 %v586, %v583
        %v635 = vpack.c.b16 %v587, %v584
        %v636 = vpack.c.b16 %v588, %v585
        %685 = vmatprep.subr.bf16.mxu0 %v590
        %686 = vmatpush1.bf16.msra.mxu0 %v589
        %687 = vmatprep.subr.bf16.mxu0 %v593
        %688 = vmatpush1.bf16.msra.mxu0 %v592
        %689 = vmatprep.subr.bf16.mxu0 %v596
        %690 = vmatpush1.bf16.msra.mxu0 %v595
        %691 = vmatprep.subr.bf16.mxu0 %v599
        %692 = vmatpush1.bf16.msra.mxu0 %v598
        %693 = vmatprep.subr.bf16.mxu0 %v602
        %694 = vmatpush1.bf16.msra.mxu0 %v601
        %695 = vmatprep.subr.bf16.mxu0 %v605
        %696 = vmatpush1.bf16.msra.mxu0 %v604
        %697 = vmatprep.subr.bf16.mxu0 %v608
        %698 = vmatpush1.bf16.msra.mxu0 %v607
        %699 = vmatprep.subr.bf16.mxu0 %v611
        %700 = vmatpush1.bf16.msra.mxu0 %v610
        %701 = vmatprep.subr.bf16.mxu0 %v614
        %702 = vmatpush1.bf16.msra.mxu0 %v613
        %703 = vmatprep.subr.bf16.mxu0 %v617
        %704 = vmatpush1.bf16.msra.mxu0 %v616
        %705 = vmatprep.subr.bf16.mxu0 %v620
        %706 = vmatpush1.bf16.msra.mxu0 %v619
        %707 = vmatprep.subr.bf16.mxu0 %v623
        %708 = vmatpush1.bf16.msra.mxu0 %v622
        %709 = vmatprep.subr.bf16.mxu0 %v626
        %710 = vmatpush1.bf16.msra.mxu0 %v625
        %711 = vmatprep.subr.bf16.mxu0 %v629
        %712 = vmatpush1.bf16.msra.mxu0 %v628
        %713 = vmatprep.subr.bf16.mxu0 %v632
        %714 = vmatpush1.bf16.msra.mxu0 %v631
        %715 = vmatprep.subr.bf16.mxu0 %v635
        %716 = vmatpush1.bf16.msra.mxu0 %v634
        %717 = vmatprep.mubr.bf16.mxu0 %v412
        %718 = vmatmul.mubr.bf16.gmra.mrb[0].mxu0 %v411
        %v719 = vpop.f32.mrb[0].mxu0
        %v720 = vadd.f32 %v417, %v719
        %v721 = vpop.f32.mrb[0].mxu0
        %v722 = vadd.f32 %v421, %v721
        %v723 = vpop.f32.mrb[0].mxu0
        %v724 = vpop.f32.mrb[0].mxu0
        %725 = vdwg.mxu0
        %726 = vmatprep.subr.bf16.mxu0 0
        %727 = vmatpush1.bf16.msra.mxu0 %v591
        %728 = vmatprep.subr.bf16.mxu0 0
        %729 = vmatpush1.bf16.msra.mxu0 %v594
        %730 = vmatprep.subr.bf16.mxu0 0
        %731 = vmatpush1.bf16.msra.mxu0 %v597
        %732 = vmatprep.subr.bf16.mxu0 0
        %733 = vmatpush1.bf16.msra.mxu0 %v600
        %734 = vmatprep.subr.bf16.mxu0 0
        %735 = vmatpush1.bf16.msra.mxu0 %v603
        %736 = vmatprep.subr.bf16.mxu0 0
        %737 = vmatpush1.bf16.msra.mxu0 %v606
        %738 = vmatprep.subr.bf16.mxu0 0
        %739 = vmatpush1.bf16.msra.mxu0 %v609
        %740 = vmatprep.subr.bf16.mxu0 0
        %741 = vmatpush1.bf16.msra.mxu0 %v612
        %742 = vmatprep.subr.bf16.mxu0 0
        %743 = vmatpush1.bf16.msra.mxu0 %v615
        %744 = vmatprep.subr.bf16.mxu0 0
        %745 = vmatpush1.bf16.msra.mxu0 %v618
        %746 = vmatprep.subr.bf16.mxu0 0
        %747 = vmatpush1.bf16.msra.mxu0 %v621
        %748 = vmatprep.subr.bf16.mxu0 0
        %749 = vmatpush1.bf16.msra.mxu0 %v624
        %750 = vmatprep.subr.bf16.mxu0 0
        %751 = vmatpush1.bf16.msra.mxu0 %v627
        %752 = vmatprep.subr.bf16.mxu0 0
        %753 = vmatpush1.bf16.msra.mxu0 %v630
        %754 = vmatprep.subr.bf16.mxu0 0
        %755 = vmatpush1.bf16.msra.mxu0 %v633
        %756 = vmatprep.subr.bf16.mxu0 0
        %757 = vmatpush1.bf16.msra.mxu0 %v636
        %758 = vmatprep.mubr.bf16.mxu0 %v412
        %759 = vmatmul.mubr.bf16.gmra.mrb[0].mxu0 %v411
        %v760 = vpop.f32.mrb[0].mxu0
        %v761 = vadd.f32 %v425, %v760
        %v762 = vpop.f32.mrb[0].mxu0
        %v763 = vpop.f32.mrb[0].mxu0
        %v764 = vpop.f32.mrb[0].mxu0
        %765 = vdwg.mxu0
        %v766 = vld [vmem:[%s288] sm:$0xff]
        %v767 = vld [vmem:[%s288 + $0x8] sm:$0xff]
        %v768 = vpack.c.bf16 %v766, %v766
        %v769 = vpack.c.bf16 %v767, %v767
        %770 = vmatprep.subr.bf16.mxu0 %v590
        %771 = vmatpush1.bf16.msra.mxu0 %v589
        %772 = vmatprep.subr.bf16.mxu0 %v593
        %773 = vmatpush1.bf16.msra.mxu0 %v592
        %774 = vmatprep.subr.bf16.mxu0 %v596
        %775 = vmatpush1.bf16.msra.mxu0 %v595
        %776 = vmatprep.subr.bf16.mxu0 %v599
        %777 = vmatpush1.bf16.msra.mxu0 %v598
        %778 = vmatprep.subr.bf16.mxu0 %v602
        %779 = vmatpush1.bf16.msra.mxu0 %v601
        %780 = vmatprep.subr.bf16.mxu0 %v605
        %781 = vmatpush1.bf16.msra.mxu0 %v604
        %782 = vmatprep.subr.bf16.mxu0 %v608
        %783 = vmatpush1.bf16.msra.mxu0 %v607
        %784 = vmatprep.subr.bf16.mxu0 %v611
        %785 = vmatpush1.bf16.msra.mxu0 %v610
        %786 = vmatprep.subr.bf16.mxu0 %v614
        %787 = vmatpush1.bf16.msra.mxu0 %v613
        %788 = vmatprep.subr.bf16.mxu0 %v617
        %789 = vmatpush1.bf16.msra.mxu0 %v616
        %790 = vmatprep.subr.bf16.mxu0 %v620
        %791 = vmatpush1.bf16.msra.mxu0 %v619
        %792 = vmatprep.subr.bf16.mxu0 %v623
        %793 = vmatpush1.bf16.msra.mxu0 %v622
        %794 = vmatprep.subr.bf16.mxu0 %v626
        %795 = vmatpush1.bf16.msra.mxu0 %v625
        %796 = vmatprep.subr.bf16.mxu0 %v629
        %797 = vmatpush1.bf16.msra.mxu0 %v628
        %798 = vmatprep.subr.bf16.mxu0 %v632
        %799 = vmatpush1.bf16.msra.mxu0 %v631
        %800 = vmatprep.subr.bf16.mxu0 %v635
        %801 = vmatpush1.bf16.msra.mxu0 %v634
        %802 = vmatprep.mubr.bf16.mxu0 %v769
        %803 = vmatmul.mubr.bf16.gmra.mrb[0].mxu0 %v768
        %v804 = vpop.f32.mrb[0].mxu0
        %v805 = vadd.f32 %v417, %v804
        %v806 = vpop.f32.mrb[0].mxu0
        %v807 = vadd.f32 %v421, %v806
        %v808 = vpop.f32.mrb[0].mxu0
        %v809 = vpop.f32.mrb[0].mxu0
        %810 = vdwg.mxu0
        %811 = vmatprep.subr.bf16.mxu0 0
        %812 = vmatpush1.bf16.msra.mxu0 %v591
        %813 = vmatprep.subr.bf16.mxu0 0
        %814 = vmatpush1.bf16.msra.mxu0 %v594
        %815 = vmatprep.subr.bf16.mxu0 0
        %816 = vmatpush1.bf16.msra.mxu0 %v597
        %817 = vmatprep.subr.bf16.mxu0 0
        %818 = vmatpush1.bf16.msra.mxu0 %v600
        %819 = vmatprep.subr.bf16.mxu0 0
        %820 = vmatpush1.bf16.msra.mxu0 %v603
        %821 = vmatprep.subr.bf16.mxu0 0
        %822 = vmatpush1.bf16.msra.mxu0 %v606
        %823 = vmatprep.subr.bf16.mxu0 0
        %824 = vmatpush1.bf16.msra.mxu0 %v609
        %825 = vmatprep.subr.bf16.mxu0 0
        %826 = vmatpush1.bf16.msra.mxu0 %v612
        %827 = vmatprep.subr.bf16.mxu0 0
        %828 = vmatpush1.bf16.msra.mxu0 %v615
        %829 = vmatprep.subr.bf16.mxu0 0
        %830 = vmatpush1.bf16.msra.mxu0 %v618
        %831 = vmatprep.subr.bf16.mxu0 0
        %832 = vmatpush1.bf16.msra.mxu0 %v621
        %833 = vmatprep.subr.bf16.mxu0 0
        %834 = vmatpush1.bf16.msra.mxu0 %v624
        %835 = vmatprep.subr.bf16.mxu0 0
        %836 = vmatpush1.bf16.msra.mxu0 %v627
        %837 = vmatprep.subr.bf16.mxu0 0
        %838 = vmatpush1.bf16.msra.mxu0 %v630
        %839 = vmatprep.subr.bf16.mxu0 0
        %840 = vmatpush1.bf16.msra.mxu0 %v633
        %841 = vmatprep.subr.bf16.mxu0 0
        %842 = vmatpush1.bf16.msra.mxu0 %v636
        %843 = vmatprep.mubr.bf16.mxu0 %v769
        %844 = vmatmul.mubr.bf16.gmra.mrb[0].mxu0 %v768
        %v845 = vpop.f32.mrb[0].mxu0
        %v846 = vadd.f32 %v425, %v845
        %v847 = vpop.f32.mrb[0].mxu0
        %v848 = vpop.f32.mrb[0].mxu0
        %v849 = vpop.f32.mrb[0].mxu0
        %850 = vdwg.mxu0
        %v851 = vmax.f32 %v805, 0.0
        %v852 = vmax.f32 %v807, 0.0
        %v853 = vmax.f32 %v846, 0.0
        %v854 = vld [vmem:[#allocation8] sm:$0xff]
        %v855 = vld [vmem:[#allocation8 + $0x8] sm:$0xff]
        %v856 = vld [vmem:[#allocation8 + $0x10] sm:$0xff]
        %v857 = vld [vmem:[#allocation8 + $0x18] sm:$0xff]
        %v858 = vld [vmem:[#allocation8 + $0x20] sm:$0xff]
        %v859 = vld [vmem:[#allocation8 + $0x28] sm:$0xff]
        %v860 = vld [vmem:[#allocation8 + $0x30] sm:$0xff]
        %v861 = vld [vmem:[#allocation8 + $0x38] sm:$0xff]
        %v862 = vld [vmem:[#allocation8 + $0x40] sm:$0xff]
        %v863 = vld [vmem:[#allocation8 + $0x48] sm:$0xff]
        %v864 = vld [vmem:[#allocation8 + $0x50] sm:$0xff]
        %v865 = vld [vmem:[#allocation8 + $0x58] sm:$0xff]
        %v866 = vld [vmem:[#allocation8 + $0x60] sm:$0xff]
        %v867 = vld [vmem:[#allocation8 + $0x68] sm:$0xff]
        %v868 = vld [vmem:[#allocation8 + $0x70] sm:$0xff]
        %v869 = vld [vmem:[#allocation8 + $0x78] sm:$0xff]
        %v870 = vld [vmem:[#allocation8 + $0x80] sm:$0xff]
        %v871 = vld [vmem:[#allocation8 + $0x88] sm:$0xff]
        %v872 = vld [vmem:[#allocation8 + $0x90] sm:$0xff]
        %v873 = vld [vmem:[#allocation8 + $0x98] sm:$0xff]
        %v874 = vld [vmem:[#allocation8 + $0xa0] sm:$0xff]
        %v875 = vld [vmem:[#allocation8 + $0xa8] sm:$0xff]
        %v876 = vld [vmem:[#allocation8 + $0xb0] sm:$0xff]
        %v877 = vld [vmem:[#allocation8 + $0xb8] sm:$0xff]
        %v878 = vld [vmem:[#allocation8 + $0xc0] sm:$0xff]
        %v879 = vld [vmem:[#allocation8 + $0xc8] sm:$0xff]
        %v880 = vld [vmem:[#allocation8 + $0xd0] sm:$0xff]
        %v881 = vld [vmem:[#allocation8 + $0xd8] sm:$0xff]
        %v882 = vld [vmem:[#allocation8 + $0xe0] sm:$0xff]
        %v883 = vld [vmem:[#allocation8 + $0xe8] sm:$0xff]
        %v884 = vld [vmem:[#allocation8 + $0xf0] sm:$0xff]
        %v885 = vld [vmem:[#allocation8 + $0xf8] sm:$0xff]
        %v886 = vld [vmem:[#allocation8 + $0x100] sm:$0xff]
        %v887 = vld [vmem:[#allocation8 + $0x108] sm:$0xff]
        %v888 = vld [vmem:[#allocation8 + $0x110] sm:$0xff]
        %v889 = vld [vmem:[#allocation8 + $0x118] sm:$0xff]
        %v890 = vld [vmem:[#allocation8 + $0x120] sm:$0xff]
        %v891 = vld [vmem:[#allocation8 + $0x128] sm:$0xff]
        %v892 = vld [vmem:[#allocation8 + $0x130] sm:$0xff]
        %v893 = vld [vmem:[#allocation8 + $0x138] sm:$0xff]
        %v894 = vld [vmem:[#allocation8 + $0x140] sm:$0xff]
        %v895 = vld [vmem:[#allocation8 + $0x148] sm:$0xff]
        %v896 = vld [vmem:[#allocation8 + $0x150] sm:$0xff]
        %v897 = vld [vmem:[#allocation8 + $0x158] sm:$0xff]
        %v898 = vld [vmem:[#allocation8 + $0x160] sm:$0xff]
        %v899 = vld [vmem:[#allocation8 + $0x168] sm:$0xff]
        %v900 = vld [vmem:[#allocation8 + $0x170] sm:$0xff]
        %v901 = vld [vmem:[#allocation8 + $0x178] sm:$0xff]
        %v902 = vpack.c.bf16 %v851, %v851
        %v903 = vpack.c.bf16 %v852, %v852
        %v904 = vpack.c.bf16 %v853, %v853
        %v906 = vlaneseq
        %v907 = vshrl.u32 %v906, 7
        %v908 = vsub.s32 0, %v907
        %v909 = vrot.slane %v340, %v908
        %v910 = vlaneseq
        %v911 = vshrl.u32 %v910, 7
        %v912 = vsub.s32 1, %v911
        %v913 = vrot.slane %v340, %v912
        %v964 = vunpack.c.l.b16 %v854
        %v965 = vunpack.c.h.b16 %v854
        %v966 = vunpack.c.l.b16 %v855
        %v967 = vunpack.c.h.b16 %v855
        %v968 = vunpack.c.l.b16 %v856
        %v969 = vunpack.c.h.b16 %v856
        %v970 = vunpack.c.l.b16 %v857
        %v971 = vunpack.c.h.b16 %v857
        %v972 = vunpack.c.l.b16 %v858
        %v973 = vunpack.c.h.b16 %v858
        %v974 = vunpack.c.l.b16 %v859
        %v975 = vunpack.c.h.b16 %v859
        %v976 = vunpack.c.l.b16 %v860
        %v977 = vunpack.c.h.b16 %v860
        %v978 = vunpack.c.l.b16 %v861
        %v979 = vunpack.c.h.b16 %v861
        %v980 = vunpack.c.l.b16 %v862
        %v981 = vunpack.c.h.b16 %v862
        %v982 = vunpack.c.l.b16 %v863
        %v983 = vunpack.c.h.b16 %v863
        %v984 = vunpack.c.l.b16 %v864
        %v985 = vunpack.c.h.b16 %v864
        %v986 = vunpack.c.l.b16 %v865
        %v987 = vunpack.c.h.b16 %v865
        %v988 = vunpack.c.l.b16 %v866
        %v989 = vunpack.c.h.b16 %v866
        %v990 = vunpack.c.l.b16 %v867
        %v991 = vunpack.c.h.b16 %v867
        %v992 = vunpack.c.l.b16 %v868
        %v993 = vunpack.c.h.b16 %v868
        %v994 = vunpack.c.l.b16 %v869
        %v995 = vunpack.c.h.b16 %v869
        %v996 = vunpack.c.l.b16 %v870
        %v997 = vunpack.c.h.b16 %v870
        %v998 = vunpack.c.l.b16 %v871
        %v999 = vunpack.c.h.b16 %v871
        %v1000 = vunpack.c.l.b16 %v872
        %v1001 = vunpack.c.h.b16 %v872
        %v1002 = vunpack.c.l.b16 %v873
        %v1003 = vunpack.c.h.b16 %v873
        %v1004 = vunpack.c.l.b16 %v874
        %v1005 = vunpack.c.h.b16 %v874
        %v1006 = vunpack.c.l.b16 %v875
        %v1007 = vunpack.c.h.b16 %v875
        %v1008 = vunpack.c.l.b16 %v876
        %v1009 = vunpack.c.h.b16 %v876
        %v1010 = vunpack.c.l.b16 %v877
        %v1011 = vunpack.c.h.b16 %v877
        %v1012 = vunpack.c.l.b16 %v878
        %v1013 = vunpack.c.h.b16 %v878
        %v1014 = vunpack.c.l.b16 %v879
        %v1015 = vunpack.c.h.b16 %v879
        %v1016 = vunpack.c.l.b16 %v880
        %v1017 = vunpack.c.h.b16 %v880
        %v1018 = vunpack.c.l.b16 %v881
        %v1019 = vunpack.c.h.b16 %v881
        %v1020 = vunpack.c.l.b16 %v882
        %v1021 = vunpack.c.h.b16 %v882
        %v1022 = vunpack.c.l.b16 %v883
        %v1023 = vunpack.c.h.b16 %v883
        %v1024 = vunpack.c.l.b16 %v884
        %v1025 = vunpack.c.h.b16 %v884
        %v1026 = vunpack.c.l.b16 %v885
        %v1027 = vunpack.c.h.b16 %v885
        %v1028 = vunpack.c.l.b16 %v886
        %v1029 = vunpack.c.h.b16 %v886
        %v1030 = vunpack.c.l.b16 %v887
        %v1031 = vunpack.c.h.b16 %v887
        %v1032 = vunpack.c.l.b16 %v888
        %v1033 = vunpack.c.h.b16 %v888
        %v1034 = vunpack.c.l.b16 %v889
        %v1035 = vunpack.c.h.b16 %v889
        %v1036 = vunpack.c.l.b16 %v890
        %v1037 = vunpack.c.h.b16 %v890
        %v1038 = vunpack.c.l.b16 %v891
        %v1039 = vunpack.c.h.b16 %v891
        %v1040 = vunpack.c.l.b16 %v892
        %v1041 = vunpack.c.h.b16 %v892
        %v1042 = vunpack.c.l.b16 %v893
        %v1043 = vunpack.c.h.b16 %v893
        %v1044 = vunpack.c.l.b16 %v894
        %v1045 = vunpack.c.h.b16 %v894
        %v1046 = vunpack.c.l.b16 %v895
        %v1047 = vunpack.c.h.b16 %v895
        %v1048 = vunpack.c.l.b16 %v896
        %v1049 = vunpack.c.h.b16 %v896
        %v1050 = vunpack.c.l.b16 %v897
        %v1051 = vunpack.c.h.b16 %v897
        %v1052 = vunpack.c.l.b16 %v898
        %v1053 = vunpack.c.h.b16 %v898
        %v1054 = vunpack.c.l.b16 %v899
        %v1055 = vunpack.c.h.b16 %v899
        %v1056 = vunpack.c.l.b16 %v900
        %v1057 = vunpack.c.h.b16 %v900
        %v1058 = vunpack.c.l.b16 %v901
        %v1059 = vunpack.c.h.b16 %v901
        %v1060 = vpack.c.b16 %v966, %v964
        %v1061 = vpack.c.b16 %v967, %v965
        %v1062 = vpack.c.b16 %v970, %v968
        %v1063 = vpack.c.b16 %v971, %v969
        %v1064 = vpack.c.b16 %v974, %v972
        %v1065 = vpack.c.b16 %v975, %v973
        %v1066 = vpack.c.b16 %v978, %v976
        %v1067 = vpack.c.b16 %v979, %v977
        %v1068 = vpack.c.b16 %v982, %v980
        %v1069 = vpack.c.b16 %v983, %v981
        %v1070 = vpack.c.b16 %v986, %v984
        %v1071 = vpack.c.b16 %v987, %v985
        %v1072 = vpack.c.b16 %v990, %v988
        %v1073 = vpack.c.b16 %v991, %v989
        %v1074 = vpack.c.b16 %v994, %v992
        %v1075 = vpack.c.b16 %v995, %v993
        %v1076 = vpack.c.b16 %v998, %v996
        %v1077 = vpack.c.b16 %v999, %v997
        %v1078 = vpack.c.b16 %v1002, %v1000
        %v1079 = vpack.c.b16 %v1003, %v1001
        %v1080 = vpack.c.b16 %v1006, %v1004
        %v1081 = vpack.c.b16 %v1007, %v1005
        %v1082 = vpack.c.b16 %v1010, %v1008
        %v1083 = vpack.c.b16 %v1011, %v1009
        %v1084 = vpack.c.b16 %v1014, %v1012
        %v1085 = vpack.c.b16 %v1015, %v1013
        %v1086 = vpack.c.b16 %v1018, %v1016
        %v1087 = vpack.c.b16 %v1019, %v1017
        %v1088 = vpack.c.b16 %v1022, %v1020
        %v1089 = vpack.c.b16 %v1023, %v1021
        %v1090 = vpack.c.b16 %v1026, %v1024
        %v1091 = vpack.c.b16 %v1027, %v1025
        %v1092 = vpack.c.b16 %v1030, %v1028
        %v1093 = vpack.c.b16 %v1031, %v1029
        %v1094 = vpack.c.b16 %v1034, %v1032
        %v1095 = vpack.c.b16 %v1035, %v1033
        %v1096 = vpack.c.b16 %v1038, %v1036
        %v1097 = vpack.c.b16 %v1039, %v1037
        %v1098 = vpack.c.b16 %v1042, %v1040
        %v1099 = vpack.c.b16 %v1043, %v1041
        %v1100 = vpack.c.b16 %v1046, %v1044
        %v1101 = vpack.c.b16 %v1047, %v1045
        %v1102 = vpack.c.b16 %v1050, %v1048
        %v1103 = vpack.c.b16 %v1051, %v1049
        %v1104 = vpack.c.b16 %v1054, %v1052
        %v1105 = vpack.c.b16 %v1055, %v1053
        %v1106 = vpack.c.b16 %v1058, %v1056
        %v1107 = vpack.c.b16 %v1059, %v1057
        %1156 = vmatprep.subr.bf16.mxu0 %v1061
        %1157 = vmatpush1.bf16.msra.mxu0 %v1060
        %1158 = vmatprep.subr.bf16.mxu0 %v1063
        %1159 = vmatpush1.bf16.msra.mxu0 %v1062
        %1160 = vmatprep.subr.bf16.mxu0 %v1065
        %1161 = vmatpush1.bf16.msra.mxu0 %v1064
        %1162 = vmatprep.subr.bf16.mxu0 %v1067
        %1163 = vmatpush1.bf16.msra.mxu0 %v1066
        %1164 = vmatprep.subr.bf16.mxu0 %v1069
        %1165 = vmatpush1.bf16.msra.mxu0 %v1068
        %1166 = vmatprep.subr.bf16.mxu0 %v1071
        %1167 = vmatpush1.bf16.msra.mxu0 %v1070
        %1168 = vmatprep.subr.bf16.mxu0 %v1073
        %1169 = vmatpush1.bf16.msra.mxu0 %v1072
        %1170 = vmatprep.subr.bf16.mxu0 %v1075
        %1171 = vmatpush1.bf16.msra.mxu0 %v1074
        %1172 = vmatprep.subr.bf16.mxu0 %v1077
        %1173 = vmatpush1.bf16.msra.mxu0 %v1076
        %1174 = vmatprep.subr.bf16.mxu0 %v1079
        %1175 = vmatpush1.bf16.msra.mxu0 %v1078
        %1176 = vmatprep.subr.bf16.mxu0 %v1081
        %1177 = vmatpush1.bf16.msra.mxu0 %v1080
        %1178 = vmatprep.subr.bf16.mxu0 %v1083
        %1179 = vmatpush1.bf16.msra.mxu0 %v1082
        %1180 = vmatprep.subr.bf16.mxu0 %v1085
        %1181 = vmatpush1.bf16.msra.mxu0 %v1084
        %1182 = vmatprep.subr.bf16.mxu0 %v1087
        %1183 = vmatpush1.bf16.msra.mxu0 %v1086
        %1184 = vmatprep.subr.bf16.mxu0 %v1089
        %1185 = vmatpush1.bf16.msra.mxu0 %v1088
        %1186 = vmatprep.subr.bf16.mxu0 %v1091
        %1187 = vmatpush1.bf16.msra.mxu0 %v1090
        %1188 = vmatprep.mubr.bf16.mxu0 %v903
        %1189 = vmatmul.mubr.bf16.gmra.mrb[0].mxu0 %v902
        %v1190 = vpop.f32.mrb[0].mxu0
        %v1191 = vadd.f32 %v909, %v1190
        %v1192 = vpop.f32.mrb[0].mxu0
        %v1193 = vadd.f32 %v913, %v1192
        %v1194 = vpop.f32.mrb[0].mxu0
        %v1195 = vpop.f32.mrb[0].mxu0
        %1196 = vdwg.mxu0
        %1197 = vmatprep.subr.bf16.mxu0 %v1093
        %1198 = vmatpush1.bf16.msra.mxu0 %v1092
        %1199 = vmatprep.subr.bf16.mxu0 %v1095
        %1200 = vmatpush1.bf16.msra.mxu0 %v1094
        %1201 = vmatprep.subr.bf16.mxu0 %v1097
        %1202 = vmatpush1.bf16.msra.mxu0 %v1096
        %1203 = vmatprep.subr.bf16.mxu0 %v1099
        %1204 = vmatpush1.bf16.msra.mxu0 %v1098
        %1205 = vmatprep.subr.bf16.mxu0 %v1101
        %1206 = vmatpush1.bf16.msra.mxu0 %v1100
        %1207 = vmatprep.subr.bf16.mxu0 %v1103
        %1208 = vmatpush1.bf16.msra.mxu0 %v1102
        %1209 = vmatprep.subr.bf16.mxu0 %v1105
        %1210 = vmatpush1.bf16.msra.mxu0 %v1104
        %1211 = vmatprep.subr.bf16.mxu0 %v1107
        %1212 = vmatpush1.bf16.msra.mxu0 %v1106
        %1213 = vmatprep.subr.bf16.mxu0 0
        %1214 = vmatpush1.bf16.msra.mxu0 0
        %1215 = vmatprep.subr.bf16.mxu0 0
        %1216 = vmatpush1.bf16.msra.mxu0 0
        %1217 = vmatprep.subr.bf16.mxu0 0
        %1218 = vmatpush1.bf16.msra.mxu0 0
        %1219 = vmatprep.subr.bf16.mxu0 0
        %1220 = vmatpush1.bf16.msra.mxu0 0
        %1221 = vmatprep.subr.bf16.mxu0 0
        %1222 = vmatpush1.bf16.msra.mxu0 0
        %1223 = vmatprep.subr.bf16.mxu0 0
        %1224 = vmatpush1.bf16.msra.mxu0 0
        %1225 = vmatprep.subr.bf16.mxu0 0
        %1226 = vmatpush1.bf16.msra.mxu0 0
        %1227 = vmatprep.subr.bf16.mxu0 0
        %1228 = vmatpush1.bf16.msra.mxu0 0
        %1229 = vmatprep.mubr.bf16.mxu0 0
        %1230 = vmatmul.mubr.bf16.gmra.mrb[0].mxu0 %v904
        %v1231 = vpop.f32.mrb[0].mxu0
        %v1232 = vadd.f32 %v1191, %v1231
        %v1233 = vpop.f32.mrb[0].mxu0
        %v1234 = vadd.f32 %v1193, %v1233
        %v1235 = vpop.f32.mrb[0].mxu0
        %v1236 = vpop.f32.mrb[0].mxu0
        %1237 = vdwg.mxu0
        %v1238 = vmax.f32 %v1232, 0.0
        %v1239 = vmax.f32 %v1234, 0.0
        %v1240 = vld [vmem:[#allocation10] sm:$0xf]
        %v1241 = vld [vmem:[#allocation10 + $0x4] sm:$0xf]
        %v1242 = vld [vmem:[#allocation10 + $0x8] sm:$0xf]
        %v1243 = vld [vmem:[#allocation10 + $0xc] sm:$0xf]
        %v1244 = vld [vmem:[#allocation10 + $0x10] sm:$0xf]
        %v1245 = vld [vmem:[#allocation10 + $0x14] sm:$0xf]
        %v1246 = vld [vmem:[#allocation10 + $0x18] sm:$0xf]
        %v1247 = vld [vmem:[#allocation10 + $0x1c] sm:$0xf]
        %v1248 = vld [vmem:[#allocation10 + $0x20] sm:$0xf]
        %v1249 = vld [vmem:[#allocation10 + $0x24] sm:$0xf]
        %v1250 = vld [vmem:[#allocation10 + $0x28] sm:$0xf]
        %v1251 = vld [vmem:[#allocation10 + $0x2c] sm:$0xf]
        %v1252 = vld [vmem:[#allocation10 + $0x30] sm:$0xf]
        %v1253 = vld [vmem:[#allocation10 + $0x34] sm:$0xf]
        %v1254 = vld [vmem:[#allocation10 + $0x38] sm:$0xf]
        %v1255 = vld [vmem:[#allocation10 + $0x3c] sm:$0xf]
        %v1256 = vld [vmem:[#allocation10 + $0x40] sm:$0xf]
        %v1257 = vld [vmem:[#allocation10 + $0x44] sm:$0xf]
        %v1258 = vld [vmem:[#allocation10 + $0x48] sm:$0xf]
        %v1259 = vld [vmem:[#allocation10 + $0x4c] sm:$0xf]
        %v1260 = vld [vmem:[#allocation10 + $0x50] sm:$0xf]
        %v1261 = vld [vmem:[#allocation10 + $0x54] sm:$0xf]
        %v1262 = vld [vmem:[#allocation10 + $0x58] sm:$0xf]
        %v1263 = vld [vmem:[#allocation10 + $0x5c] sm:$0xf]
        %v1264 = vld [vmem:[#allocation10 + $0x60] sm:$0xf]
        %v1265 = vld [vmem:[#allocation10 + $0x64] sm:$0xf]
        %v1266 = vld [vmem:[#allocation10 + $0x68] sm:$0xf]
        %v1267 = vld [vmem:[#allocation10 + $0x6c] sm:$0xf]
        %v1268 = vld [vmem:[#allocation10 + $0x70] sm:$0xf]
        %v1269 = vld [vmem:[#allocation10 + $0x74] sm:$0xf]
        %v1270 = vld [vmem:[#allocation10 + $0x78] sm:$0xf]
        %v1271 = vld [vmem:[#allocation10 + $0x7c] sm:$0xf]
        %v1272 = vpack.c.bf16 %v1238, %v1238
        %v1273 = vpack.c.bf16 %v1239, %v1239
        %v1306 = vunpack.c.l.b16 %v1240
        %v1307 = vunpack.c.l.b16 %v1241
        %v1308 = vunpack.c.l.b16 %v1242
        %v1309 = vunpack.c.l.b16 %v1243
        %v1310 = vunpack.c.l.b16 %v1244
        %v1311 = vunpack.c.l.b16 %v1245
        %v1312 = vunpack.c.l.b16 %v1246
        %v1313 = vunpack.c.l.b16 %v1247
        %v1314 = vunpack.c.l.b16 %v1248
        %v1315 = vunpack.c.l.b16 %v1249
        %v1316 = vunpack.c.l.b16 %v1250
        %v1317 = vunpack.c.l.b16 %v1251
        %v1318 = vunpack.c.l.b16 %v1252
        %v1319 = vunpack.c.l.b16 %v1253
        %v1320 = vunpack.c.l.b16 %v1254
        %v1321 = vunpack.c.l.b16 %v1255
        %v1322 = vunpack.c.l.b16 %v1256
        %v1323 = vunpack.c.l.b16 %v1257
        %v1324 = vunpack.c.l.b16 %v1258
        %v1325 = vunpack.c.l.b16 %v1259
        %v1326 = vunpack.c.l.b16 %v1260
        %v1327 = vunpack.c.l.b16 %v1261
        %v1328 = vunpack.c.l.b16 %v1262
        %v1329 = vunpack.c.l.b16 %v1263
        %v1330 = vunpack.c.l.b16 %v1264
        %v1331 = vunpack.c.l.b16 %v1265
        %v1332 = vunpack.c.l.b16 %v1266
        %v1333 = vunpack.c.l.b16 %v1267
        %v1334 = vunpack.c.l.b16 %v1268
        %v1335 = vunpack.c.l.b16 %v1269
        %v1336 = vunpack.c.l.b16 %v1270
        %v1337 = vunpack.c.l.b16 %v1271
        %v1338 = vpack.c.b16 %v1307, %v1306
        %v1339 = vpack.c.b16 %v1309, %v1308
        %v1340 = vpack.c.b16 %v1311, %v1310
        %v1341 = vpack.c.b16 %v1313, %v1312
        %v1342 = vpack.c.b16 %v1315, %v1314
        %v1343 = vpack.c.b16 %v1317, %v1316
        %v1344 = vpack.c.b16 %v1319, %v1318
        %v1345 = vpack.c.b16 %v1321, %v1320
        %v1346 = vpack.c.b16 %v1323, %v1322
        %v1347 = vpack.c.b16 %v1325, %v1324
        %v1348 = vpack.c.b16 %v1327, %v1326
        %v1349 = vpack.c.b16 %v1329, %v1328
        %v1350 = vpack.c.b16 %v1331, %v1330
        %v1351 = vpack.c.b16 %v1333, %v1332
        %v1352 = vpack.c.b16 %v1335, %v1334
        %v1353 = vpack.c.b16 %v1337, %v1336
        %1370 = vmatprep.subr.bf16.mxu0 0
        %1371 = vmatpush1.bf16.msra.mxu0 %v1338
        %1372 = vmatprep.subr.bf16.mxu0 0
        %1373 = vmatpush1.bf16.msra.mxu0 %v1339
        %1374 = vmatprep.subr.bf16.mxu0 0
        %1375 = vmatpush1.bf16.msra.mxu0 %v1340
        %1376 = vmatprep.subr.bf16.mxu0 0
        %1377 = vmatpush1.bf16.msra.mxu0 %v1341
        %1378 = vmatprep.subr.bf16.mxu0 0
        %1379 = vmatpush1.bf16.msra.mxu0 %v1342
        %1380 = vmatprep.subr.bf16.mxu0 0
        %1381 = vmatpush1.bf16.msra.mxu0 %v1343
        %1382 = vmatprep.subr.bf16.mxu0 0
        %1383 = vmatpush1.bf16.msra.mxu0 %v1344
        %1384 = vmatprep.subr.bf16.mxu0 0
        %1385 = vmatpush1.bf16.msra.mxu0 %v1345
        %1386 = vmatprep.subr.bf16.mxu0 0
        %1387 = vmatpush1.bf16.msra.mxu0 %v1346
        %1388 = vmatprep.subr.bf16.mxu0 0
        %1389 = vmatpush1.bf16.msra.mxu0 %v1347
        %1390 = vmatprep.subr.bf16.mxu0 0
        %1391 = vmatpush1.bf16.msra.mxu0 %v1348
        %1392 = vmatprep.subr.bf16.mxu0 0
        %1393 = vmatpush1.bf16.msra.mxu0 %v1349
        %1394 = vmatprep.subr.bf16.mxu0 0
        %1395 = vmatpush1.bf16.msra.mxu0 %v1350
        %1396 = vmatprep.subr.bf16.mxu0 0
        %1397 = vmatpush1.bf16.msra.mxu0 %v1351
        %1398 = vmatprep.subr.bf16.mxu0 0
        %1399 = vmatpush1.bf16.msra.mxu0 %v1352
        %1400 = vmatprep.subr.bf16.mxu0 0
        %1401 = vmatpush1.bf16.msra.mxu0 %v1353
        %1402 = vmatprep.mubr.bf16.mxu0 %v1273
        %1403 = vmatmul.mubr.bf16.gmra.mrb[0].mxu0 %v1272
        %v1404 = vpop.f32.mrb[0].mxu0
        %v1405 = vadd.f32 %v341, %v1404
        %v1406 = vpop.f32.mrb[0].mxu0
        %v1407 = vpop.f32.mrb[0].mxu0
        %v1408 = vpop.f32.mrb[0].mxu0
        %1409 = vdwg.mxu0
        %v1410 = vmax.f32 %v1405, 0.0
        %v1411 = vld [vmem:[#allocation10 + $0x80] sm:$0xf]
        %v1412 = vld [vmem:[#allocation10 + $0x84] sm:$0xf]
        %v1413 = vld [vmem:[#allocation10 + $0x88] sm:$0xf]
        %v1414 = vld [vmem:[#allocation10 + $0x8c] sm:$0xf]
        %v1415 = vld [vmem:[#allocation10 + $0x90] sm:$0xf]
        %v1416 = vld [vmem:[#allocation10 + $0x94] sm:$0xf]
        %v1417 = vld [vmem:[#allocation10 + $0x98] sm:$0xf]
        %v1418 = vld [vmem:[#allocation10 + $0x9c] sm:$0xf]
        %v1419 = vld [vmem:[#allocation10 + $0xa0] sm:$0xf]
        %v1420 = vld [vmem:[#allocation10 + $0xa4] sm:$0xf]
        %v1421 = vld [vmem:[#allocation10 + $0xa8] sm:$0xf]
        %v1422 = vld [vmem:[#allocation10 + $0xac] sm:$0xf]
        %v1423 = vld [vmem:[#allocation10 + $0xb0] sm:$0xf]
        %v1424 = vld [vmem:[#allocation10 + $0xb4] sm:$0xf]
        %v1425 = vld [vmem:[#allocation10 + $0xb8] sm:$0xf]
        %v1426 = vld [vmem:[#allocation10 + $0xbc] sm:$0xf]
        %v1427 = vpack.c.bf16 %v1410, %v1410
        %v1444 = vunpack.c.l.b16 %v1411
        %v1445 = vunpack.c.l.b16 %v1412
        %v1446 = vunpack.c.l.b16 %v1413
        %v1447 = vunpack.c.l.b16 %v1414
        %v1448 = vunpack.c.l.b16 %v1415
        %v1449 = vunpack.c.l.b16 %v1416
        %v1450 = vunpack.c.l.b16 %v1417
        %v1451 = vunpack.c.l.b16 %v1418
        %v1452 = vunpack.c.l.b16 %v1419
        %v1453 = vunpack.c.l.b16 %v1420
        %v1454 = vunpack.c.l.b16 %v1421
        %v1455 = vunpack.c.l.b16 %v1422
        %v1456 = vunpack.c.l.b16 %v1423
        %v1457 = vunpack.c.l.b16 %v1424
        %v1458 = vunpack.c.l.b16 %v1425
        %v1459 = vunpack.c.l.b16 %v1426
        %v1460 = vpack.c.b16 %v1445, %v1444
        %v1461 = vpack.c.b16 %v1447, %v1446
        %v1462 = vpack.c.b16 %v1449, %v1448
        %v1463 = vpack.c.b16 %v1451, %v1450
        %v1464 = vpack.c.b16 %v1453, %v1452
        %v1465 = vpack.c.b16 %v1455, %v1454
        %v1466 = vpack.c.b16 %v1457, %v1456
        %v1467 = vpack.c.b16 %v1459, %v1458
        %1476 = vmatprep.subr.bf16.mxu0 0
        %1477 = vmatpush1.bf16.msra.mxu0 %v1460
        %1478 = vmatprep.subr.bf16.mxu0 0
        %1479 = vmatpush1.bf16.msra.mxu0 %v1461
        %1480 = vmatprep.subr.bf16.mxu0 0
        %1481 = vmatpush1.bf16.msra.mxu0 %v1462
        %1482 = vmatprep.subr.bf16.mxu0 0
        %1483 = vmatpush1.bf16.msra.mxu0 %v1463
        %1484 = vmatprep.subr.bf16.mxu0 0
        %1485 = vmatpush1.bf16.msra.mxu0 %v1464
        %1486 = vmatprep.subr.bf16.mxu0 0
        %1487 = vmatpush1.bf16.msra.mxu0 %v1465
        %1488 = vmatprep.subr.bf16.mxu0 0
        %1489 = vmatpush1.bf16.msra.mxu0 %v1466
        %1490 = vmatprep.subr.bf16.mxu0 0
        %1491 = vmatpush1.bf16.msra.mxu0 %v1467
        %1492 = vmatprep.subr.bf16.mxu0 0
        %1493 = vmatpush1.bf16.msra.mxu0 0
        %1494 = vmatprep.subr.bf16.mxu0 0
        %1495 = vmatpush1.bf16.msra.mxu0 0
        %1496 = vmatprep.subr.bf16.mxu0 0
        %1497 = vmatpush1.bf16.msra.mxu0 0
        %1498 = vmatprep.subr.bf16.mxu0 0
        %1499 = vmatpush1.bf16.msra.mxu0 0
        %1500 = vmatprep.subr.bf16.mxu0 0
        %1501 = vmatpush1.bf16.msra.mxu0 0
        %1502 = vmatprep.subr.bf16.mxu0 0
        %1503 = vmatpush1.bf16.msra.mxu0 0
        %1504 = vmatprep.subr.bf16.mxu0 0
        %1505 = vmatpush1.bf16.msra.mxu0 0
        %1506 = vmatprep.subr.bf16.mxu0 0
        %1507 = vmatpush1.bf16.msra.mxu0 0
        %1508 = vmatprep.mubr.bf16.mxu0 0
        %1509 = vmatmul.mubr.bf16.gmra.mrb[0].mxu0 %v1427
        %v1510 = vpop.f32.mrb[0].mxu0
        %v1511 = vadd.f32 %v342, %v1510
        %v1512 = vpop.f32.mrb[0].mxu0
        %v1513 = vpop.f32.mrb[0].mxu0
        %v1514 = vpop.f32.mrb[0].mxu0
        %1515 = vdwg.mxu0
        %v1516 = vmax.f32 %v1511, 0.0
        %v1517 = vld [vmem:[#allocation10 + $0xc0] sm:$0xf]
        %v1518 = vld [vmem:[#allocation10 + $0xc4] sm:$0xf]
        %v1519 = vld [vmem:[#allocation10 + $0xc8] sm:$0xf]
        %v1520 = vld [vmem:[#allocation10 + $0xcc] sm:$0xf]
        %v1521 = vld [vmem:[#allocation10 + $0xd0] sm:$0xf]
        %v1522 = vld [vmem:[#allocation10 + $0xd4] sm:$0xf]
        %v1523 = vld [vmem:[#allocation10 + $0xd8] sm:$0xf]
        %v1524 = vld [vmem:[#allocation10 + $0xdc] sm:$0xf]
        %v1525 = vld [vmem:[#allocation10 + $0xe0] sm:$0xf]
        %v1526 = vld [vmem:[#allocation10 + $0xe4] sm:$0xf]
        %v1527 = vld [vmem:[#allocation10 + $0xe8] sm:$0xf]
        %v1528 = vld [vmem:[#allocation10 + $0xec] sm:$0xf]
        %v1529 = vld [vmem:[#allocation10 + $0xf0] sm:$0xf]
        %v1530 = vld [vmem:[#allocation10 + $0xf4] sm:$0xf]
        %v1531 = vld [vmem:[#allocation10 + $0xf8] sm:$0xf]
        %v1532 = vld [vmem:[#allocation10 + $0xfc] sm:$0xf]
        %v1533 = vpack.c.bf16 %v1516, %v1516
        %v1550 = vunpack.c.l.b16 %v1517
        %v1551 = vunpack.c.l.b16 %v1518
        %v1552 = vunpack.c.l.b16 %v1519
        %v1553 = vunpack.c.l.b16 %v1520
        %v1554 = vunpack.c.l.b16 %v1521
        %v1555 = vunpack.c.l.b16 %v1522
        %v1556 = vunpack.c.l.b16 %v1523
        %v1557 = vunpack.c.l.b16 %v1524
        %v1558 = vunpack.c.l.b16 %v1525
        %v1559 = vunpack.c.l.b16 %v1526
        %v1560 = vunpack.c.l.b16 %v1527
        %v1561 = vunpack.c.l.b16 %v1528
        %v1562 = vunpack.c.l.b16 %v1529
        %v1563 = vunpack.c.l.b16 %v1530
        %v1564 = vunpack.c.l.b16 %v1531
        %v1565 = vunpack.c.l.b16 %v1532
        %v1566 = vpack.c.b16 %v1551, %v1550
        %v1567 = vpack.c.b16 %v1553, %v1552
        %v1568 = vpack.c.b16 %v1555, %v1554
        %v1569 = vpack.c.b16 %v1557, %v1556
        %v1570 = vpack.c.b16 %v1559, %v1558
        %v1571 = vpack.c.b16 %v1561, %v1560
        %v1572 = vpack.c.b16 %v1563, %v1562
        %v1573 = vpack.c.b16 %v1565, %v1564
        %1582 = vmatprep.subr.bf16.mxu0 0
        %1583 = vmatpush1.bf16.msra.mxu0 %v1566
        %1584 = vmatprep.subr.bf16.mxu0 0
        %1585 = vmatpush1.bf16.msra.mxu0 %v1567
        %1586 = vmatprep.subr.bf16.mxu0 0
        %1587 = vmatpush1.bf16.msra.mxu0 %v1568
        %1588 = vmatprep.subr.bf16.mxu0 0
        %1589 = vmatpush1.bf16.msra.mxu0 %v1569
        %1590 = vmatprep.subr.bf16.mxu0 0
        %1591 = vmatpush1.bf16.msra.mxu0 %v1570
        %1592 = vmatprep.subr.bf16.mxu0 0
        %1593 = vmatpush1.bf16.msra.mxu0 %v1571
        %1594 = vmatprep.subr.bf16.mxu0 0
        %1595 = vmatpush1.bf16.msra.mxu0 %v1572
        %1596 = vmatprep.subr.bf16.mxu0 0
        %1597 = vmatpush1.bf16.msra.mxu0 %v1573
        %1598 = vmatprep.subr.bf16.mxu0 0
        %1599 = vmatpush1.bf16.msra.mxu0 0
        %1600 = vmatprep.subr.bf16.mxu0 0
        %1601 = vmatpush1.bf16.msra.mxu0 0
        %1602 = vmatprep.subr.bf16.mxu0 0
        %1603 = vmatpush1.bf16.msra.mxu0 0
        %1604 = vmatprep.subr.bf16.mxu0 0
        %1605 = vmatpush1.bf16.msra.mxu0 0
        %1606 = vmatprep.subr.bf16.mxu0 0
        %1607 = vmatpush1.bf16.msra.mxu0 0
        %1608 = vmatprep.subr.bf16.mxu0 0
        %1609 = vmatpush1.bf16.msra.mxu0 0
        %1610 = vmatprep.subr.bf16.mxu0 0
        %1611 = vmatpush1.bf16.msra.mxu0 0
        %1612 = vmatprep.subr.bf16.mxu0 0
        %1613 = vmatpush1.bf16.msra.mxu0 0
        %1614 = vmatprep.mubr.bf16.mxu0 0
        %1615 = vmatmul.mubr.bf16.gmra.mrb[0].mxu0 %v1533
        %v1616 = vpop.f32.mrb[0].mxu0
        %v1617 = vadd.f32 %v343, %v1616
        %v1618 = vpop.f32.mrb[0].mxu0
        %v1619 = vpop.f32.mrb[0].mxu0
        %v1620 = vpop.f32.mrb[0].mxu0
        %1621 = vdwg.mxu0
        %v1622 = vmax.f32 %v1617, 0.0
        %v1623 = vld [vmem:[#allocation10 + $0x100] sm:$0xf]
        %v1624 = vld [vmem:[#allocation10 + $0x104] sm:$0xf]
        %v1625 = vld [vmem:[#allocation10 + $0x108] sm:$0xf]
        %v1626 = vld [vmem:[#allocation10 + $0x10c] sm:$0xf]
        %v1627 = vld [vmem:[#allocation10 + $0x110] sm:$0xf]
        %v1628 = vld [vmem:[#allocation10 + $0x114] sm:$0xf]
        %v1629 = vld [vmem:[#allocation10 + $0x118] sm:$0xf]
        %v1630 = vld [vmem:[#allocation10 + $0x11c] sm:$0xf]
        %v1631 = vld [vmem:[#allocation10 + $0x120] sm:$0xf]
        %v1632 = vld [vmem:[#allocation10 + $0x124] sm:$0xf]
        %v1633 = vld [vmem:[#allocation10 + $0x128] sm:$0xf]
        %v1634 = vld [vmem:[#allocation10 + $0x12c] sm:$0xf]
        %v1635 = vld [vmem:[#allocation10 + $0x130] sm:$0xf]
        %v1636 = vld [vmem:[#allocation10 + $0x134] sm:$0xf]
        %v1637 = vld [vmem:[#allocation10 + $0x138] sm:$0xf]
        %v1638 = vld [vmem:[#allocation10 + $0x13c] sm:$0xf]
        %v1639 = vpack.c.bf16 %v1622, %v1622
        %v1656 = vunpack.c.l.b16 %v1623
        %v1657 = vunpack.c.l.b16 %v1624
        %v1658 = vunpack.c.l.b16 %v1625
        %v1659 = vunpack.c.l.b16 %v1626
        %v1660 = vunpack.c.l.b16 %v1627
        %v1661 = vunpack.c.l.b16 %v1628
        %v1662 = vunpack.c.l.b16 %v1629
        %v1663 = vunpack.c.l.b16 %v1630
        %v1664 = vunpack.c.l.b16 %v1631
        %v1665 = vunpack.c.l.b16 %v1632
        %v1666 = vunpack.c.l.b16 %v1633
        %v1667 = vunpack.c.l.b16 %v1634
        %v1668 = vunpack.c.l.b16 %v1635
        %v1669 = vunpack.c.l.b16 %v1636
        %v1670 = vunpack.c.l.b16 %v1637
        %v1671 = vunpack.c.l.b16 %v1638
        %v1672 = vpack.c.b16 %v1657, %v1656
        %v1673 = vpack.c.b16 %v1659, %v1658
        %v1674 = vpack.c.b16 %v1661, %v1660
        %v1675 = vpack.c.b16 %v1663, %v1662
        %v1676 = vpack.c.b16 %v1665, %v1664
        %v1677 = vpack.c.b16 %v1667, %v1666
        %v1678 = vpack.c.b16 %v1669, %v1668
        %v1679 = vpack.c.b16 %v1671, %v1670
        %1688 = vmatprep.subr.bf16.mxu0 0
        %1689 = vmatpush1.bf16.msra.mxu0 %v1672
        %1690 = vmatprep.subr.bf16.mxu0 0
        %1691 = vmatpush1.bf16.msra.mxu0 %v1673
        %1692 = vmatprep.subr.bf16.mxu0 0
        %1693 = vmatpush1.bf16.msra.mxu0 %v1674
        %1694 = vmatprep.subr.bf16.mxu0 0
        %1695 = vmatpush1.bf16.msra.mxu0 %v1675
        %1696 = vmatprep.subr.bf16.mxu0 0
        %1697 = vmatpush1.bf16.msra.mxu0 %v1676
        %1698 = vmatprep.subr.bf16.mxu0 0
        %1699 = vmatpush1.bf16.msra.mxu0 %v1677
        %1700 = vmatprep.subr.bf16.mxu0 0
        %1701 = vmatpush1.bf16.msra.mxu0 %v1678
        %1702 = vmatprep.subr.bf16.mxu0 0
        %1703 = vmatpush1.bf16.msra.mxu0 %v1679
        %1704 = vmatprep.subr.bf16.mxu0 0
        %1705 = vmatpush1.bf16.msra.mxu0 0
        %1706 = vmatprep.subr.bf16.mxu0 0
        %1707 = vmatpush1.bf16.msra.mxu0 0
        %1708 = vmatprep.subr.bf16.mxu0 0
        %1709 = vmatpush1.bf16.msra.mxu0 0
        %1710 = vmatprep.subr.bf16.mxu0 0
        %1711 = vmatpush1.bf16.msra.mxu0 0
        %1712 = vmatprep.subr.bf16.mxu0 0
        %1713 = vmatpush1.bf16.msra.mxu0 0
        %1714 = vmatprep.subr.bf16.mxu0 0
        %1715 = vmatpush1.bf16.msra.mxu0 0
        %1716 = vmatprep.subr.bf16.mxu0 0
        %1717 = vmatpush1.bf16.msra.mxu0 0
        %1718 = vmatprep.subr.bf16.mxu0 0
        %1719 = vmatpush1.bf16.msra.mxu0 0
        %1720 = vmatprep.mubr.bf16.mxu0 0
        %1721 = vmatmul.mubr.bf16.gmra.mrb[0].mxu0 %v1639
        %v1722 = vpop.f32.mrb[0].mxu0
        %v1723 = vadd.f32 %v344, %v1722
        %v1724 = vpop.f32.mrb[0].mxu0
        %v1725 = vpop.f32.mrb[0].mxu0
        %v1726 = vpop.f32.mrb[0].mxu0
        %1727 = vdwg.mxu0
        %1728 = vst [vmem:[%s336] sm:$0xff] %v1723
        %v1729 = vld [vmem:[#allocation8 + $0x180] sm:$0xff]
        %v1730 = vld [vmem:[#allocation8 + $0x188] sm:$0xff]
        %v1731 = vld [vmem:[#allocation8 + $0x190] sm:$0xff]
        %v1732 = vld [vmem:[#allocation8 + $0x198] sm:$0xff]
        %v1733 = vld [vmem:[#allocation8 + $0x1a0] sm:$0xff]
        %v1734 = vld [vmem:[#allocation8 + $0x1a8] sm:$0xff]
        %v1735 = vld [vmem:[#allocation8 + $0x1b0] sm:$0xff]
        %v1736 = vld [vmem:[#allocation8 + $0x1b8] sm:$0xff]
        %v1737 = vld [vmem:[#allocation8 + $0x1c0] sm:$0xff]
        %v1738 = vld [vmem:[#allocation8 + $0x1c8] sm:$0xff]
        %v1739 = vld [vmem:[#allocation8 + $0x1d0] sm:$0xff]
        %v1740 = vld [vmem:[#allocation8 + $0x1d8] sm:$0xff]
        %v1741 = vld [vmem:[#allocation8 + $0x1e0] sm:$0xff]
        %v1742 = vld [vmem:[#allocation8 + $0x1e8] sm:$0xff]
        %v1743 = vld [vmem:[#allocation8 + $0x1f0] sm:$0xff]
        %v1744 = vld [vmem:[#allocation8 + $0x1f8] sm:$0xff]
        %v1745 = vpack.c.bf16 %v1723, %v1723
        %v1746 = vlaneseq
        %v1747 = vshrl.u32 %v1746, 7
        %v1748 = vsub.s32 0, %v1747
        %v1749 = vrot.slane %v720, %v1748
        %v1750 = vlaneseq
        %v1751 = vshrl.u32 %v1750, 7
        %v1752 = vsub.s32 0, %v1751
        %v1753 = vrot.slane %v722, %v1752
        %v1770 = vunpack.c.l.b16 %v1729
        %v1771 = vunpack.c.h.b16 %v1729
        %v1772 = vunpack.c.l.b16 %v1730
        %v1773 = vunpack.c.h.b16 %v1730
        %v1774 = vunpack.c.l.b16 %v1731
        %v1775 = vunpack.c.h.b16 %v1731
        %v1776 = vunpack.c.l.b16 %v1732
        %v1777 = vunpack.c.h.b16 %v1732
        %v1778 = vunpack.c.l.b16 %v1733
        %v1779 = vunpack.c.h.b16 %v1733
        %v1780 = vunpack.c.l.b16 %v1734
        %v1781 = vunpack.c.h.b16 %v1734
        %v1782 = vunpack.c.l.b16 %v1735
        %v1783 = vunpack.c.h.b16 %v1735
        %v1784 = vunpack.c.l.b16 %v1736
        %v1785 = vunpack.c.h.b16 %v1736
        %v1786 = vunpack.c.l.b16 %v1737
        %v1787 = vunpack.c.h.b16 %v1737
        %v1788 = vunpack.c.l.b16 %v1738
        %v1789 = vunpack.c.h.b16 %v1738
        %v1790 = vunpack.c.l.b16 %v1739
        %v1791 = vunpack.c.h.b16 %v1739
        %v1792 = vunpack.c.l.b16 %v1740
        %v1793 = vunpack.c.h.b16 %v1740
        %v1794 = vunpack.c.l.b16 %v1741
        %v1795 = vunpack.c.h.b16 %v1741
        %v1796 = vunpack.c.l.b16 %v1742
        %v1797 = vunpack.c.h.b16 %v1742
        %v1798 = vunpack.c.l.b16 %v1743
        %v1799 = vunpack.c.h.b16 %v1743
        %v1800 = vunpack.c.l.b16 %v1744
        %v1801 = vunpack.c.h.b16 %v1744
        %v1802 = vpack.c.b16 %v1772, %v1770
        %v1803 = vpack.c.b16 %v1773, %v1771
        %v1804 = vpack.c.b16 %v1776, %v1774
        %v1805 = vpack.c.b16 %v1777, %v1775
        %v1806 = vpack.c.b16 %v1780, %v1778
        %v1807 = vpack.c.b16 %v1781, %v1779
        %v1808 = vpack.c.b16 %v1784, %v1782
        %v1809 = vpack.c.b16 %v1785, %v1783
        %v1810 = vpack.c.b16 %v1788, %v1786
        %v1811 = vpack.c.b16 %v1789, %v1787
        %v1812 = vpack.c.b16 %v1792, %v1790
        %v1813 = vpack.c.b16 %v1793, %v1791
        %v1814 = vpack.c.b16 %v1796, %v1794
        %v1815 = vpack.c.b16 %v1797, %v1795
        %v1816 = vpack.c.b16 %v1800, %v1798
        %v1817 = vpack.c.b16 %v1801, %v1799
        %1834 = vmatprep.subr.bf16.mxu0 %v1803
        %1835 = vmatpush1.bf16.msra.mxu0 %v1802
        %1836 = vmatprep.subr.bf16.mxu0 %v1805
        %1837 = vmatpush1.bf16.msra.mxu0 %v1804
        %1838 = vmatprep.subr.bf16.mxu0 %v1807
        %1839 = vmatpush1.bf16.msra.mxu0 %v1806
        %1840 = vmatprep.subr.bf16.mxu0 %v1809
        %1841 = vmatpush1.bf16.msra.mxu0 %v1808
        %1842 = vmatprep.subr.bf16.mxu0 %v1811
        %1843 = vmatpush1.bf16.msra.mxu0 %v1810
        %1844 = vmatprep.subr.bf16.mxu0 %v1813
        %1845 = vmatpush1.bf16.msra.mxu0 %v1812
        %1846 = vmatprep.subr.bf16.mxu0 %v1815
        %1847 = vmatpush1.bf16.msra.mxu0 %v1814
        %1848 = vmatprep.subr.bf16.mxu0 %v1817
        %1849 = vmatpush1.bf16.msra.mxu0 %v1816
        %1850 = vmatprep.subr.bf16.mxu0 0
        %1851 = vmatpush1.bf16.msra.mxu0 0
        %1852 = vmatprep.subr.bf16.mxu0 0
        %1853 = vmatpush1.bf16.msra.mxu0 0
        %1854 = vmatprep.subr.bf16.mxu0 0
        %1855 = vmatpush1.bf16.msra.mxu0 0
        %1856 = vmatprep.subr.bf16.mxu0 0
        %1857 = vmatpush1.bf16.msra.mxu0 0
        %1858 = vmatprep.subr.bf16.mxu0 0
        %1859 = vmatpush1.bf16.msra.mxu0 0
        %1860 = vmatprep.subr.bf16.mxu0 0
        %1861 = vmatpush1.bf16.msra.mxu0 0
        %1862 = vmatprep.subr.bf16.mxu0 0
        %1863 = vmatpush1.bf16.msra.mxu0 0
        %1864 = vmatprep.subr.bf16.mxu0 0
        %1865 = vmatpush1.bf16.msra.mxu0 0
        %1866 = vmatprep.mubr.bf16.mxu0 0
        %1867 = vmatmul.mubr.bf16.gmra.mrb[0].mxu0 %v1745
        %v1868 = vpop.f32.mrb[0].mxu0
        %v1869 = vadd.f32 %v1749, %v1868
        %v1870 = vpop.f32.mrb[0].mxu0
        %v1871 = vadd.f32 %v1753, %v1870
        %v1872 = vpop.f32.mrb[0].mxu0
        %v1873 = vpop.f32.mrb[0].mxu0
        %1874 = vdwg.mxu0
        %v1875 = vlaneseq
        %v1876 = vshrl.u32 %v1875, 7
        %v1877 = vsub.s32 0, %v1876
        %v1878 = vrot.slane %v761, %v1877
        %v1879 = vmax.f32 %v1869, 0.0
        %v1880 = vmax.f32 %v1871, 0.0
        %v1881 = vmax.f32 %v1878, 0.0
        %v1882 = vld [vmem:[#allocation8] sm:$0xff]
        %v1883 = vld [vmem:[#allocation8 + $0x8] sm:$0xff]
        %v1884 = vld [vmem:[#allocation8 + $0x10] sm:$0xff]
        %v1885 = vld [vmem:[#allocation8 + $0x18] sm:$0xff]
        %v1886 = vld [vmem:[#allocation8 + $0x20] sm:$0xff]
        %v1887 = vld [vmem:[#allocation8 + $0x28] sm:$0xff]
        %v1888 = vld [vmem:[#allocation8 + $0x30] sm:$0xff]
        %v1889 = vld [vmem:[#allocation8 + $0x38] sm:$0xff]
        %v1890 = vld [vmem:[#allocation8 + $0x40] sm:$0xff]
        %v1891 = vld [vmem:[#allocation8 + $0x48] sm:$0xff]
        %v1892 = vld [vmem:[#allocation8 + $0x50] sm:$0xff]
        %v1893 = vld [vmem:[#allocation8 + $0x58] sm:$0xff]
        %v1894 = vld [vmem:[#allocation8 + $0x60] sm:$0xff]
        %v1895 = vld [vmem:[#allocation8 + $0x68] sm:$0xff]
        %v1896 = vld [vmem:[#allocation8 + $0x70] sm:$0xff]
        %v1897 = vld [vmem:[#allocation8 + $0x78] sm:$0xff]
        %v1898 = vld [vmem:[#allocation8 + $0x80] sm:$0xff]
        %v1899 = vld [vmem:[#allocation8 + $0x88] sm:$0xff]
        %v1900 = vld [vmem:[#allocation8 + $0x90] sm:$0xff]
        %v1901 = vld [vmem:[#allocation8 + $0x98] sm:$0xff]
        %v1902 = vld [vmem:[#allocation8 + $0xa0] sm:$0xff]
        %v1903 = vld [vmem:[#allocation8 + $0xa8] sm:$0xff]
        %v1904 = vld [vmem:[#allocation8 + $0xb0] sm:$0xff]
        %v1905 = vld [vmem:[#allocation8 + $0xb8] sm:$0xff]
        %v1906 = vld [vmem:[#allocation8 + $0xc0] sm:$0xff]
        %v1907 = vld [vmem:[#allocation8 + $0xc8] sm:$0xff]
        %v1908 = vld [vmem:[#allocation8 + $0xd0] sm:$0xff]
        %v1909 = vld [vmem:[#allocation8 + $0xd8] sm:$0xff]
        %v1910 = vld [vmem:[#allocation8 + $0xe0] sm:$0xff]
        %v1911 = vld [vmem:[#allocation8 + $0xe8] sm:$0xff]
        %v1912 = vld [vmem:[#allocation8 + $0xf0] sm:$0xff]
        %v1913 = vld [vmem:[#allocation8 + $0xf8] sm:$0xff]
        %v1914 = vld [vmem:[#allocation8 + $0x100] sm:$0xff]
        %v1915 = vld [vmem:[#allocation8 + $0x108] sm:$0xff]
        %v1916 = vld [vmem:[#allocation8 + $0x110] sm:$0xff]
        %v1917 = vld [vmem:[#allocation8 + $0x118] sm:$0xff]
        %v1918 = vld [vmem:[#allocation8 + $0x120] sm:$0xff]
        %v1919 = vld [vmem:[#allocation8 + $0x128] sm:$0xff]
        %v1920 = vld [vmem:[#allocation8 + $0x130] sm:$0xff]
        %v1921 = vld [vmem:[#allocation8 + $0x138] sm:$0xff]
        %v1922 = vld [vmem:[#allocation8 + $0x140] sm:$0xff]
        %v1923 = vld [vmem:[#allocation8 + $0x148] sm:$0xff]
        %v1924 = vld [vmem:[#allocation8 + $0x150] sm:$0xff]
        %v1925 = vld [vmem:[#allocation8 + $0x158] sm:$0xff]
        %v1926 = vld [vmem:[#allocation8 + $0x160] sm:$0xff]
        %v1927 = vld [vmem:[#allocation8 + $0x168] sm:$0xff]
        %v1928 = vld [vmem:[#allocation8 + $0x170] sm:$0xff]
        %v1929 = vld [vmem:[#allocation8 + $0x178] sm:$0xff]
        %v1930 = vpack.c.bf16 %v1879, %v1879
        %v1931 = vpack.c.bf16 %v1880, %v1880
        %v1932 = vpack.c.bf16 %v1881, %v1881
        %v1981 = vunpack.c.l.b16 %v1882
        %v1982 = vunpack.c.h.b16 %v1882
        %v1983 = vunpack.c.l.b16 %v1883
        %v1984 = vunpack.c.h.b16 %v1883
        %v1985 = vunpack.c.l.b16 %v1884
        %v1986 = vunpack.c.h.b16 %v1884
        %v1987 = vunpack.c.l.b16 %v1885
        %v1988 = vunpack.c.h.b16 %v1885
        %v1989 = vunpack.c.l.b16 %v1886
        %v1990 = vunpack.c.h.b16 %v1886
        %v1991 = vunpack.c.l.b16 %v1887
        %v1992 = vunpack.c.h.b16 %v1887
        %v1993 = vunpack.c.l.b16 %v1888
        %v1994 = vunpack.c.h.b16 %v1888
        %v1995 = vunpack.c.l.b16 %v1889
        %v1996 = vunpack.c.h.b16 %v1889
        %v1997 = vunpack.c.l.b16 %v1890
        %v1998 = vunpack.c.h.b16 %v1890
        %v1999 = vunpack.c.l.b16 %v1891
        %v2000 = vunpack.c.h.b16 %v1891
        %v2001 = vunpack.c.l.b16 %v1892
        %v2002 = vunpack.c.h.b16 %v1892
        %v2003 = vunpack.c.l.b16 %v1893
        %v2004 = vunpack.c.h.b16 %v1893
        %v2005 = vunpack.c.l.b16 %v1894
        %v2006 = vunpack.c.h.b16 %v1894
        %v2007 = vunpack.c.l.b16 %v1895
        %v2008 = vunpack.c.h.b16 %v1895
        %v2009 = vunpack.c.l.b16 %v1896
        %v2010 = vunpack.c.h.b16 %v1896
        %v2011 = vunpack.c.l.b16 %v1897
        %v2012 = vunpack.c.h.b16 %v1897
        %v2013 = vunpack.c.l.b16 %v1898
        %v2014 = vunpack.c.h.b16 %v1898
        %v2015 = vunpack.c.l.b16 %v1899
        %v2016 = vunpack.c.h.b16 %v1899
        %v2017 = vunpack.c.l.b16 %v1900
        %v2018 = vunpack.c.h.b16 %v1900
        %v2019 = vunpack.c.l.b16 %v1901
        %v2020 = vunpack.c.h.b16 %v1901
        %v2021 = vunpack.c.l.b16 %v1902
        %v2022 = vunpack.c.h.b16 %v1902
        %v2023 = vunpack.c.l.b16 %v1903
        %v2024 = vunpack.c.h.b16 %v1903
        %v2025 = vunpack.c.l.b16 %v1904
        %v2026 = vunpack.c.h.b16 %v1904
        %v2027 = vunpack.c.l.b16 %v1905
        %v2028 = vunpack.c.h.b16 %v1905
        %v2029 = vunpack.c.l.b16 %v1906
        %v2030 = vunpack.c.h.b16 %v1906
        %v2031 = vunpack.c.l.b16 %v1907
        %v2032 = vunpack.c.h.b16 %v1907
        %v2033 = vunpack.c.l.b16 %v1908
        %v2034 = vunpack.c.h.b16 %v1908
        %v2035 = vunpack.c.l.b16 %v1909
        %v2036 = vunpack.c.h.b16 %v1909
        %v2037 = vunpack.c.l.b16 %v1910
        %v2038 = vunpack.c.h.b16 %v1910
        %v2039 = vunpack.c.l.b16 %v1911
        %v2040 = vunpack.c.h.b16 %v1911
        %v2041 = vunpack.c.l.b16 %v1912
        %v2042 = vunpack.c.h.b16 %v1912
        %v2043 = vunpack.c.l.b16 %v1913
        %v2044 = vunpack.c.h.b16 %v1913
        %v2045 = vunpack.c.l.b16 %v1914
        %v2046 = vunpack.c.h.b16 %v1914
        %v2047 = vunpack.c.l.b16 %v1915
        %v2048 = vunpack.c.h.b16 %v1915
        %v2049 = vunpack.c.l.b16 %v1916
        %v2050 = vunpack.c.h.b16 %v1916
        %v2051 = vunpack.c.l.b16 %v1917
        %v2052 = vunpack.c.h.b16 %v1917
        %v2053 = vunpack.c.l.b16 %v1918
        %v2054 = vunpack.c.h.b16 %v1918
        %v2055 = vunpack.c.l.b16 %v1919
        %v2056 = vunpack.c.h.b16 %v1919
        %v2057 = vunpack.c.l.b16 %v1920
        %v2058 = vunpack.c.h.b16 %v1920
        %v2059 = vunpack.c.l.b16 %v1921
        %v2060 = vunpack.c.h.b16 %v1921
        %v2061 = vunpack.c.l.b16 %v1922
        %v2062 = vunpack.c.h.b16 %v1922
        %v2063 = vunpack.c.l.b16 %v1923
        %v2064 = vunpack.c.h.b16 %v1923
        %v2065 = vunpack.c.l.b16 %v1924
        %v2066 = vunpack.c.h.b16 %v1924
        %v2067 = vunpack.c.l.b16 %v1925
        %v2068 = vunpack.c.h.b16 %v1925
        %v2069 = vunpack.c.l.b16 %v1926
        %v2070 = vunpack.c.h.b16 %v1926
        %v2071 = vunpack.c.l.b16 %v1927
        %v2072 = vunpack.c.h.b16 %v1927
        %v2073 = vunpack.c.l.b16 %v1928
        %v2074 = vunpack.c.h.b16 %v1928
        %v2075 = vunpack.c.l.b16 %v1929
        %v2076 = vunpack.c.h.b16 %v1929
        %v2077 = vpack.c.b16 %v1983, %v1981
        %v2078 = vpack.c.b16 %v1984, %v1982
        %v2079 = vpack.c.b16 %v1987, %v1985
        %v2080 = vpack.c.b16 %v1988, %v1986
        %v2081 = vpack.c.b16 %v1991, %v1989
        %v2082 = vpack.c.b16 %v1992, %v1990
        %v2083 = vpack.c.b16 %v1995, %v1993
        %v2084 = vpack.c.b16 %v1996, %v1994
        %v2085 = vpack.c.b16 %v1999, %v1997
        %v2086 = vpack.c.b16 %v2000, %v1998
        %v2087 = vpack.c.b16 %v2003, %v2001
        %v2088 = vpack.c.b16 %v2004, %v2002
        %v2089 = vpack.c.b16 %v2007, %v2005
        %v2090 = vpack.c.b16 %v2008, %v2006
        %v2091 = vpack.c.b16 %v2011, %v2009
        %v2092 = vpack.c.b16 %v2012, %v2010
        %v2093 = vpack.c.b16 %v2015, %v2013
        %v2094 = vpack.c.b16 %v2016, %v2014
        %v2095 = vpack.c.b16 %v2019, %v2017
        %v2096 = vpack.c.b16 %v2020, %v2018
        %v2097 = vpack.c.b16 %v2023, %v2021
        %v2098 = vpack.c.b16 %v2024, %v2022
        %v2099 = vpack.c.b16 %v2027, %v2025
        %v2100 = vpack.c.b16 %v2028, %v2026
        %v2101 = vpack.c.b16 %v2031, %v2029
        %v2102 = vpack.c.b16 %v2032, %v2030
        %v2103 = vpack.c.b16 %v2035, %v2033
        %v2104 = vpack.c.b16 %v2036, %v2034
        %v2105 = vpack.c.b16 %v2039, %v2037
        %v2106 = vpack.c.b16 %v2040, %v2038
        %v2107 = vpack.c.b16 %v2043, %v2041
        %v2108 = vpack.c.b16 %v2044, %v2042
        %v2109 = vpack.c.b16 %v2047, %v2045
        %v2110 = vpack.c.b16 %v2048, %v2046
        %v2111 = vpack.c.b16 %v2051, %v2049
        %v2112 = vpack.c.b16 %v2052, %v2050
        %v2113 = vpack.c.b16 %v2055, %v2053
        %v2114 = vpack.c.b16 %v2056, %v2054
        %v2115 = vpack.c.b16 %v2059, %v2057
        %v2116 = vpack.c.b16 %v2060, %v2058
        %v2117 = vpack.c.b16 %v2063, %v2061
        %v2118 = vpack.c.b16 %v2064, %v2062
        %v2119 = vpack.c.b16 %v2067, %v2065
        %v2120 = vpack.c.b16 %v2068, %v2066
        %v2121 = vpack.c.b16 %v2071, %v2069
        %v2122 = vpack.c.b16 %v2072, %v2070
        %v2123 = vpack.c.b16 %v2075, %v2073
        %v2124 = vpack.c.b16 %v2076, %v2074
        %2173 = vmatprep.subr.bf16.mxu0 %v2078
        %2174 = vmatpush1.bf16.msra.mxu0 %v2077
        %2175 = vmatprep.subr.bf16.mxu0 %v2080
        %2176 = vmatpush1.bf16.msra.mxu0 %v2079
        %2177 = vmatprep.subr.bf16.mxu0 %v2082
        %2178 = vmatpush1.bf16.msra.mxu0 %v2081
        %2179 = vmatprep.subr.bf16.mxu0 %v2084
        %2180 = vmatpush1.bf16.msra.mxu0 %v2083
        %2181 = vmatprep.subr.bf16.mxu0 %v2086
        %2182 = vmatpush1.bf16.msra.mxu0 %v2085
        %2183 = vmatprep.subr.bf16.mxu0 %v2088
        %2184 = vmatpush1.bf16.msra.mxu0 %v2087
        %2185 = vmatprep.subr.bf16.mxu0 %v2090
        %2186 = vmatpush1.bf16.msra.mxu0 %v2089
        %2187 = vmatprep.subr.bf16.mxu0 %v2092
        %2188 = vmatpush1.bf16.msra.mxu0 %v2091
        %2189 = vmatprep.subr.bf16.mxu0 %v2094
        %2190 = vmatpush1.bf16.msra.mxu0 %v2093
        %2191 = vmatprep.subr.bf16.mxu0 %v2096
        %2192 = vmatpush1.bf16.msra.mxu0 %v2095
        %2193 = vmatprep.subr.bf16.mxu0 %v2098
        %2194 = vmatpush1.bf16.msra.mxu0 %v2097
        %2195 = vmatprep.subr.bf16.mxu0 %v2100
        %2196 = vmatpush1.bf16.msra.mxu0 %v2099
        %2197 = vmatprep.subr.bf16.mxu0 %v2102
        %2198 = vmatpush1.bf16.msra.mxu0 %v2101
        %2199 = vmatprep.subr.bf16.mxu0 %v2104
        %2200 = vmatpush1.bf16.msra.mxu0 %v2103
        %2201 = vmatprep.subr.bf16.mxu0 %v2106
        %2202 = vmatpush1.bf16.msra.mxu0 %v2105
        %2203 = vmatprep.subr.bf16.mxu0 %v2108
        %2204 = vmatpush1.bf16.msra.mxu0 %v2107
        %2205 = vmatprep.mubr.bf16.mxu0 %v1931
        %2206 = vmatmul.mubr.bf16.gmra.mrb[0].mxu0 %v1930
        %v2207 = vpop.f32.mrb[0].mxu0
        %v2208 = vadd.f32 %v909, %v2207
        %v2209 = vpop.f32.mrb[0].mxu0
        %v2210 = vadd.f32 %v913, %v2209
        %v2211 = vpop.f32.mrb[0].mxu0
        %v2212 = vpop.f32.mrb[0].mxu0
        %2213 = vdwg.mxu0
        %2214 = vmatprep.subr.bf16.mxu0 %v2110
        %2215 = vmatpush1.bf16.msra.mxu0 %v2109
        %2216 = vmatprep.subr.bf16.mxu0 %v2112
        %2217 = vmatpush1.bf16.msra.mxu0 %v2111
        %2218 = vmatprep.subr.bf16.mxu0 %v2114
        %2219 = vmatpush1.bf16.msra.mxu0 %v2113
        %2220 = vmatprep.subr.bf16.mxu0 %v2116
        %2221 = vmatpush1.bf16.msra.mxu0 %v2115
        %2222 = vmatprep.subr.bf16.mxu0 %v2118
        %2223 = vmatpush1.bf16.msra.mxu0 %v2117
        %2224 = vmatprep.subr.bf16.mxu0 %v2120
        %2225 = vmatpush1.bf16.msra.mxu0 %v2119
        %2226 = vmatprep.subr.bf16.mxu0 %v2122
        %2227 = vmatpush1.bf16.msra.mxu0 %v2121
        %2228 = vmatprep.subr.bf16.mxu0 %v2124
        %2229 = vmatpush1.bf16.msra.mxu0 %v2123
        %2230 = vmatprep.subr.bf16.mxu0 0
        %2231 = vmatpush1.bf16.msra.mxu0 0
        %2232 = vmatprep.subr.bf16.mxu0 0
        %2233 = vmatpush1.bf16.msra.mxu0 0
        %2234 = vmatprep.subr.bf16.mxu0 0
        %2235 = vmatpush1.bf16.msra.mxu0 0
        %2236 = vmatprep.subr.bf16.mxu0 0
        %2237 = vmatpush1.bf16.msra.mxu0 0
        %2238 = vmatprep.subr.bf16.mxu0 0
        %2239 = vmatpush1.bf16.msra.mxu0 0
        %2240 = vmatprep.subr.bf16.mxu0 0
        %2241 = vmatpush1.bf16.msra.mxu0 0
        %2242 = vmatprep.subr.bf16.mxu0 0
        %2243 = vmatpush1.bf16.msra.mxu0 0
        %2244 = vmatprep.subr.bf16.mxu0 0
        %2245 = vmatpush1.bf16.msra.mxu0 0
        %2246 = vmatprep.mubr.bf16.mxu0 0
        %2247 = vmatmul.mubr.bf16.gmra.mrb[0].mxu0 %v1932
        %v2248 = vpop.f32.mrb[0].mxu0
        %v2249 = vadd.f32 %v2208, %v2248
        %v2250 = vpop.f32.mrb[0].mxu0
        %v2251 = vadd.f32 %v2210, %v2250
        %v2252 = vpop.f32.mrb[0].mxu0
        %v2253 = vpop.f32.mrb[0].mxu0
        %2254 = vdwg.mxu0
        %v2255 = vmax.f32 %v2249, 0.0
        %v2256 = vmax.f32 %v2251, 0.0
        %v2257 = vld [vmem:[#allocation10] sm:$0xf]
        %v2258 = vld [vmem:[#allocation10 + $0x4] sm:$0xf]
        %v2259 = vld [vmem:[#allocation10 + $0x8] sm:$0xf]
        %v2260 = vld [vmem:[#allocation10 + $0xc] sm:$0xf]
        %v2261 = vld [vmem:[#allocation10 + $0x10] sm:$0xf]
        %v2262 = vld [vmem:[#allocation10 + $0x14] sm:$0xf]
        %v2263 = vld [vmem:[#allocation10 + $0x18] sm:$0xf]
        %v2264 = vld [vmem:[#allocation10 + $0x1c] sm:$0xf]
        %v2265 = vld [vmem:[#allocation10 + $0x20] sm:$0xf]
        %v2266 = vld [vmem:[#allocation10 + $0x24] sm:$0xf]
        %v2267 = vld [vmem:[#allocation10 + $0x28] sm:$0xf]
        %v2268 = vld [vmem:[#allocation10 + $0x2c] sm:$0xf]
        %v2269 = vld [vmem:[#allocation10 + $0x30] sm:$0xf]
        %v2270 = vld [vmem:[#allocation10 + $0x34] sm:$0xf]
        %v2271 = vld [vmem:[#allocation10 + $0x38] sm:$0xf]
        %v2272 = vld [vmem:[#allocation10 + $0x3c] sm:$0xf]
        %v2273 = vld [vmem:[#allocation10 + $0x40] sm:$0xf]
        %v2274 = vld [vmem:[#allocation10 + $0x44] sm:$0xf]
        %v2275 = vld [vmem:[#allocation10 + $0x48] sm:$0xf]
        %v2276 = vld [vmem:[#allocation10 + $0x4c] sm:$0xf]
        %v2277 = vld [vmem:[#allocation10 + $0x50] sm:$0xf]
        %v2278 = vld [vmem:[#allocation10 + $0x54] sm:$0xf]
        %v2279 = vld [vmem:[#allocation10 + $0x58] sm:$0xf]
        %v2280 = vld [vmem:[#allocation10 + $0x5c] sm:$0xf]
        %v2281 = vld [vmem:[#allocation10 + $0x60] sm:$0xf]
        %v2282 = vld [vmem:[#allocation10 + $0x64] sm:$0xf]
        %v2283 = vld [vmem:[#allocation10 + $0x68] sm:$0xf]
        %v2284 = vld [vmem:[#allocation10 + $0x6c] sm:$0xf]
        %v2285 = vld [vmem:[#allocation10 + $0x70] sm:$0xf]
        %v2286 = vld [vmem:[#allocation10 + $0x74] sm:$0xf]
        %v2287 = vld [vmem:[#allocation10 + $0x78] sm:$0xf]
        %v2288 = vld [vmem:[#allocation10 + $0x7c] sm:$0xf]
        %v2289 = vpack.c.bf16 %v2255, %v2255
        %v2290 = vpack.c.bf16 %v2256, %v2256
        %v2323 = vunpack.c.l.b16 %v2257
        %v2324 = vunpack.c.l.b16 %v2258
        %v2325 = vunpack.c.l.b16 %v2259
        %v2326 = vunpack.c.l.b16 %v2260
        %v2327 = vunpack.c.l.b16 %v2261
        %v2328 = vunpack.c.l.b16 %v2262
        %v2329 = vunpack.c.l.b16 %v2263
        %v2330 = vunpack.c.l.b16 %v2264
        %v2331 = vunpack.c.l.b16 %v2265
        %v2332 = vunpack.c.l.b16 %v2266
        %v2333 = vunpack.c.l.b16 %v2267
        %v2334 = vunpack.c.l.b16 %v2268
        %v2335 = vunpack.c.l.b16 %v2269
        %v2336 = vunpack.c.l.b16 %v2270
        %v2337 = vunpack.c.l.b16 %v2271
        %v2338 = vunpack.c.l.b16 %v2272
        %v2339 = vunpack.c.l.b16 %v2273
        %v2340 = vunpack.c.l.b16 %v2274
        %v2341 = vunpack.c.l.b16 %v2275
        %v2342 = vunpack.c.l.b16 %v2276
        %v2343 = vunpack.c.l.b16 %v2277
        %v2344 = vunpack.c.l.b16 %v2278
        %v2345 = vunpack.c.l.b16 %v2279
        %v2346 = vunpack.c.l.b16 %v2280
        %v2347 = vunpack.c.l.b16 %v2281
        %v2348 = vunpack.c.l.b16 %v2282
        %v2349 = vunpack.c.l.b16 %v2283
        %v2350 = vunpack.c.l.b16 %v2284
        %v2351 = vunpack.c.l.b16 %v2285
        %v2352 = vunpack.c.l.b16 %v2286
        %v2353 = vunpack.c.l.b16 %v2287
        %v2354 = vunpack.c.l.b16 %v2288
        %v2355 = vpack.c.b16 %v2324, %v2323
        %v2356 = vpack.c.b16 %v2326, %v2325
        %v2357 = vpack.c.b16 %v2328, %v2327
        %v2358 = vpack.c.b16 %v2330, %v2329
        %v2359 = vpack.c.b16 %v2332, %v2331
        %v2360 = vpack.c.b16 %v2334, %v2333
        %v2361 = vpack.c.b16 %v2336, %v2335
        %v2362 = vpack.c.b16 %v2338, %v2337
        %v2363 = vpack.c.b16 %v2340, %v2339
        %v2364 = vpack.c.b16 %v2342, %v2341
        %v2365 = vpack.c.b16 %v2344, %v2343
        %v2366 = vpack.c.b16 %v2346, %v2345
        %v2367 = vpack.c.b16 %v2348, %v2347
        %v2368 = vpack.c.b16 %v2350, %v2349
        %v2369 = vpack.c.b16 %v2352, %v2351
        %v2370 = vpack.c.b16 %v2354, %v2353
        %2387 = vmatprep.subr.bf16.mxu0 0
        %2388 = vmatpush1.bf16.msra.mxu0 %v2355
        %2389 = vmatprep.subr.bf16.mxu0 0
        %2390 = vmatpush1.bf16.msra.mxu0 %v2356
        %2391 = vmatprep.subr.bf16.mxu0 0
        %2392 = vmatpush1.bf16.msra.mxu0 %v2357
        %2393 = vmatprep.subr.bf16.mxu0 0
        %2394 = vmatpush1.bf16.msra.mxu0 %v2358
        %2395 = vmatprep.subr.bf16.mxu0 0
        %2396 = vmatpush1.bf16.msra.mxu0 %v2359
        %2397 = vmatprep.subr.bf16.mxu0 0
        %2398 = vmatpush1.bf16.msra.mxu0 %v2360
        %2399 = vmatprep.subr.bf16.mxu0 0
        %2400 = vmatpush1.bf16.msra.mxu0 %v2361
        %2401 = vmatprep.subr.bf16.mxu0 0
        %2402 = vmatpush1.bf16.msra.mxu0 %v2362
        %2403 = vmatprep.subr.bf16.mxu0 0
        %2404 = vmatpush1.bf16.msra.mxu0 %v2363
        %2405 = vmatprep.subr.bf16.mxu0 0
        %2406 = vmatpush1.bf16.msra.mxu0 %v2364
        %2407 = vmatprep.subr.bf16.mxu0 0
        %2408 = vmatpush1.bf16.msra.mxu0 %v2365
        %2409 = vmatprep.subr.bf16.mxu0 0
        %2410 = vmatpush1.bf16.msra.mxu0 %v2366
        %2411 = vmatprep.subr.bf16.mxu0 0
        %2412 = vmatpush1.bf16.msra.mxu0 %v2367
        %2413 = vmatprep.subr.bf16.mxu0 0
        %2414 = vmatpush1.bf16.msra.mxu0 %v2368
        %2415 = vmatprep.subr.bf16.mxu0 0
        %2416 = vmatpush1.bf16.msra.mxu0 %v2369
        %2417 = vmatprep.subr.bf16.mxu0 0
        %2418 = vmatpush1.bf16.msra.mxu0 %v2370
        %2419 = vmatprep.mubr.bf16.mxu0 %v2290
        %2420 = vmatmul.mubr.bf16.gmra.mrb[0].mxu0 %v2289
        %v2421 = vpop.f32.mrb[0].mxu0
        %v2422 = vadd.f32 %v341, %v2421
        %v2423 = vpop.f32.mrb[0].mxu0
        %v2424 = vpop.f32.mrb[0].mxu0
        %v2425 = vpop.f32.mrb[0].mxu0
        %2426 = vdwg.mxu0
        %v2427 = vmax.f32 %v2422, 0.0
        %v2428 = vld [vmem:[#allocation10 + $0x80] sm:$0xf]
        %v2429 = vld [vmem:[#allocation10 + $0x84] sm:$0xf]
        %v2430 = vld [vmem:[#allocation10 + $0x88] sm:$0xf]
        %v2431 = vld [vmem:[#allocation10 + $0x8c] sm:$0xf]
        %v2432 = vld [vmem:[#allocation10 + $0x90] sm:$0xf]
        %v2433 = vld [vmem:[#allocation10 + $0x94] sm:$0xf]
        %v2434 = vld [vmem:[#allocation10 + $0x98] sm:$0xf]
        %v2435 = vld [vmem:[#allocation10 + $0x9c] sm:$0xf]
        %v2436 = vld [vmem:[#allocation10 + $0xa0] sm:$0xf]
        %v2437 = vld [vmem:[#allocation10 + $0xa4] sm:$0xf]
        %v2438 = vld [vmem:[#allocation10 + $0xa8] sm:$0xf]
        %v2439 = vld [vmem:[#allocation10 + $0xac] sm:$0xf]
        %v2440 = vld [vmem:[#allocation10 + $0xb0] sm:$0xf]
        %v2441 = vld [vmem:[#allocation10 + $0xb4] sm:$0xf]
        %v2442 = vld [vmem:[#allocation10 + $0xb8] sm:$0xf]
        %v2443 = vld [vmem:[#allocation10 + $0xbc] sm:$0xf]
        %v2444 = vpack.c.bf16 %v2427, %v2427
        %v2461 = vunpack.c.l.b16 %v2428
        %v2462 = vunpack.c.l.b16 %v2429
        %v2463 = vunpack.c.l.b16 %v2430
        %v2464 = vunpack.c.l.b16 %v2431
        %v2465 = vunpack.c.l.b16 %v2432
        %v2466 = vunpack.c.l.b16 %v2433
        %v2467 = vunpack.c.l.b16 %v2434
        %v2468 = vunpack.c.l.b16 %v2435
        %v2469 = vunpack.c.l.b16 %v2436
        %v2470 = vunpack.c.l.b16 %v2437
        %v2471 = vunpack.c.l.b16 %v2438
        %v2472 = vunpack.c.l.b16 %v2439
        %v2473 = vunpack.c.l.b16 %v2440
        %v2474 = vunpack.c.l.b16 %v2441
        %v2475 = vunpack.c.l.b16 %v2442
        %v2476 = vunpack.c.l.b16 %v2443
        %v2477 = vpack.c.b16 %v2462, %v2461
        %v2478 = vpack.c.b16 %v2464, %v2463
        %v2479 = vpack.c.b16 %v2466, %v2465
        %v2480 = vpack.c.b16 %v2468, %v2467
        %v2481 = vpack.c.b16 %v2470, %v2469
        %v2482 = vpack.c.b16 %v2472, %v2471
        %v2483 = vpack.c.b16 %v2474, %v2473
        %v2484 = vpack.c.b16 %v2476, %v2475
        %2493 = vmatprep.subr.bf16.mxu0 0
        %2494 = vmatpush1.bf16.msra.mxu0 %v2477
        %2495 = vmatprep.subr.bf16.mxu0 0
        %2496 = vmatpush1.bf16.msra.mxu0 %v2478
        %2497 = vmatprep.subr.bf16.mxu0 0
        %2498 = vmatpush1.bf16.msra.mxu0 %v2479
        %2499 = vmatprep.subr.bf16.mxu0 0
        %2500 = vmatpush1.bf16.msra.mxu0 %v2480
        %2501 = vmatprep.subr.bf16.mxu0 0
        %2502 = vmatpush1.bf16.msra.mxu0 %v2481
        %2503 = vmatprep.subr.bf16.mxu0 0
        %2504 = vmatpush1.bf16.msra.mxu0 %v2482
        %2505 = vmatprep.subr.bf16.mxu0 0
        %2506 = vmatpush1.bf16.msra.mxu0 %v2483
        %2507 = vmatprep.subr.bf16.mxu0 0
        %2508 = vmatpush1.bf16.msra.mxu0 %v2484
        %2509 = vmatprep.subr.bf16.mxu0 0
        %2510 = vmatpush1.bf16.msra.mxu0 0
        %2511 = vmatprep.subr.bf16.mxu0 0
        %2512 = vmatpush1.bf16.msra.mxu0 0
        %2513 = vmatprep.subr.bf16.mxu0 0
        %2514 = vmatpush1.bf16.msra.mxu0 0
        %2515 = vmatprep.subr.bf16.mxu0 0
        %2516 = vmatpush1.bf16.msra.mxu0 0
        %2517 = vmatprep.subr.bf16.mxu0 0
        %2518 = vmatpush1.bf16.msra.mxu0 0
        %2519 = vmatprep.subr.bf16.mxu0 0
        %2520 = vmatpush1.bf16.msra.mxu0 0
        %2521 = vmatprep.subr.bf16.mxu0 0
        %2522 = vmatpush1.bf16.msra.mxu0 0
        %2523 = vmatprep.subr.bf16.mxu0 0
        %2524 = vmatpush1.bf16.msra.mxu0 0
        %2525 = vmatprep.mubr.bf16.mxu0 0
        %2526 = vmatmul.mubr.bf16.gmra.mrb[0].mxu0 %v2444
        %v2527 = vpop.f32.mrb[0].mxu0
        %v2528 = vadd.f32 %v342, %v2527
        %v2529 = vpop.f32.mrb[0].mxu0
        %v2530 = vpop.f32.mrb[0].mxu0
        %v2531 = vpop.f32.mrb[0].mxu0
        %2532 = vdwg.mxu0
        %v2533 = vmax.f32 %v2528, 0.0
        %v2534 = vld [vmem:[#allocation10 + $0xc0] sm:$0xf]
        %v2535 = vld [vmem:[#allocation10 + $0xc4] sm:$0xf]
        %v2536 = vld [vmem:[#allocation10 + $0xc8] sm:$0xf]
        %v2537 = vld [vmem:[#allocation10 + $0xcc] sm:$0xf]
        %v2538 = vld [vmem:[#allocation10 + $0xd0] sm:$0xf]
        %v2539 = vld [vmem:[#allocation10 + $0xd4] sm:$0xf]
        %v2540 = vld [vmem:[#allocation10 + $0xd8] sm:$0xf]
        %v2541 = vld [vmem:[#allocation10 + $0xdc] sm:$0xf]
        %v2542 = vld [vmem:[#allocation10 + $0xe0] sm:$0xf]
        %v2543 = vld [vmem:[#allocation10 + $0xe4] sm:$0xf]
        %v2544 = vld [vmem:[#allocation10 + $0xe8] sm:$0xf]
        %v2545 = vld [vmem:[#allocation10 + $0xec] sm:$0xf]
        %v2546 = vld [vmem:[#allocation10 + $0xf0] sm:$0xf]
        %v2547 = vld [vmem:[#allocation10 + $0xf4] sm:$0xf]
        %v2548 = vld [vmem:[#allocation10 + $0xf8] sm:$0xf]
        %v2549 = vld [vmem:[#allocation10 + $0xfc] sm:$0xf]
        %v2550 = vpack.c.bf16 %v2533, %v2533
        %v2567 = vunpack.c.l.b16 %v2534
        %v2568 = vunpack.c.l.b16 %v2535
        %v2569 = vunpack.c.l.b16 %v2536
        %v2570 = vunpack.c.l.b16 %v2537
        %v2571 = vunpack.c.l.b16 %v2538
        %v2572 = vunpack.c.l.b16 %v2539
        %v2573 = vunpack.c.l.b16 %v2540
        %v2574 = vunpack.c.l.b16 %v2541
        %v2575 = vunpack.c.l.b16 %v2542
        %v2576 = vunpack.c.l.b16 %v2543
        %v2577 = vunpack.c.l.b16 %v2544
        %v2578 = vunpack.c.l.b16 %v2545
        %v2579 = vunpack.c.l.b16 %v2546
        %v2580 = vunpack.c.l.b16 %v2547
        %v2581 = vunpack.c.l.b16 %v2548
        %v2582 = vunpack.c.l.b16 %v2549
        %v2583 = vpack.c.b16 %v2568, %v2567
        %v2584 = vpack.c.b16 %v2570, %v2569
        %v2585 = vpack.c.b16 %v2572, %v2571
        %v2586 = vpack.c.b16 %v2574, %v2573
        %v2587 = vpack.c.b16 %v2576, %v2575
        %v2588 = vpack.c.b16 %v2578, %v2577
        %v2589 = vpack.c.b16 %v2580, %v2579
        %v2590 = vpack.c.b16 %v2582, %v2581
        %2599 = vmatprep.subr.bf16.mxu0 0
        %2600 = vmatpush1.bf16.msra.mxu0 %v2583
        %2601 = vmatprep.subr.bf16.mxu0 0
        %2602 = vmatpush1.bf16.msra.mxu0 %v2584
        %2603 = vmatprep.subr.bf16.mxu0 0
        %2604 = vmatpush1.bf16.msra.mxu0 %v2585
        %2605 = vmatprep.subr.bf16.mxu0 0
        %2606 = vmatpush1.bf16.msra.mxu0 %v2586
        %2607 = vmatprep.subr.bf16.mxu0 0
        %2608 = vmatpush1.bf16.msra.mxu0 %v2587
        %2609 = vmatprep.subr.bf16.mxu0 0
        %2610 = vmatpush1.bf16.msra.mxu0 %v2588
        %2611 = vmatprep.subr.bf16.mxu0 0
        %2612 = vmatpush1.bf16.msra.mxu0 %v2589
        %2613 = vmatprep.subr.bf16.mxu0 0
        %2614 = vmatpush1.bf16.msra.mxu0 %v2590
        %2615 = vmatprep.subr.bf16.mxu0 0
        %2616 = vmatpush1.bf16.msra.mxu0 0
        %2617 = vmatprep.subr.bf16.mxu0 0
        %2618 = vmatpush1.bf16.msra.mxu0 0
        %2619 = vmatprep.subr.bf16.mxu0 0
        %2620 = vmatpush1.bf16.msra.mxu0 0
        %2621 = vmatprep.subr.bf16.mxu0 0
        %2622 = vmatpush1.bf16.msra.mxu0 0
        %2623 = vmatprep.subr.bf16.mxu0 0
        %2624 = vmatpush1.bf16.msra.mxu0 0
        %2625 = vmatprep.subr.bf16.mxu0 0
        %2626 = vmatpush1.bf16.msra.mxu0 0
        %2627 = vmatprep.subr.bf16.mxu0 0
        %2628 = vmatpush1.bf16.msra.mxu0 0
        %2629 = vmatprep.subr.bf16.mxu0 0
        %2630 = vmatpush1.bf16.msra.mxu0 0
        %2631 = vmatprep.mubr.bf16.mxu0 0
        %2632 = vmatmul.mubr.bf16.gmra.mrb[0].mxu0 %v2550
        %v2633 = vpop.f32.mrb[0].mxu0
        %v2634 = vadd.f32 %v343, %v2633
        %v2635 = vpop.f32.mrb[0].mxu0
        %v2636 = vpop.f32.mrb[0].mxu0
        %v2637 = vpop.f32.mrb[0].mxu0
        %2638 = vdwg.mxu0
        %v2639 = vmax.f32 %v2634, 0.0
        %v2640 = vld [vmem:[#allocation10 + $0x100] sm:$0xf]
        %v2641 = vld [vmem:[#allocation10 + $0x104] sm:$0xf]
        %v2642 = vld [vmem:[#allocation10 + $0x108] sm:$0xf]
        %v2643 = vld [vmem:[#allocation10 + $0x10c] sm:$0xf]
        %v2644 = vld [vmem:[#allocation10 + $0x110] sm:$0xf]
        %v2645 = vld [vmem:[#allocation10 + $0x114] sm:$0xf]
        %v2646 = vld [vmem:[#allocation10 + $0x118] sm:$0xf]
        %v2647 = vld [vmem:[#allocation10 + $0x11c] sm:$0xf]
        %v2648 = vld [vmem:[#allocation10 + $0x120] sm:$0xf]
        %v2649 = vld [vmem:[#allocation10 + $0x124] sm:$0xf]
        %v2650 = vld [vmem:[#allocation10 + $0x128] sm:$0xf]
        %v2651 = vld [vmem:[#allocation10 + $0x12c] sm:$0xf]
        %v2652 = vld [vmem:[#allocation10 + $0x130] sm:$0xf]
        %v2653 = vld [vmem:[#allocation10 + $0x134] sm:$0xf]
        %v2654 = vld [vmem:[#allocation10 + $0x138] sm:$0xf]
        %v2655 = vld [vmem:[#allocation10 + $0x13c] sm:$0xf]
        %v2656 = vpack.c.bf16 %v2639, %v2639
        %v2673 = vunpack.c.l.b16 %v2640
        %v2674 = vunpack.c.l.b16 %v2641
        %v2675 = vunpack.c.l.b16 %v2642
        %v2676 = vunpack.c.l.b16 %v2643
        %v2677 = vunpack.c.l.b16 %v2644
        %v2678 = vunpack.c.l.b16 %v2645
        %v2679 = vunpack.c.l.b16 %v2646
        %v2680 = vunpack.c.l.b16 %v2647
        %v2681 = vunpack.c.l.b16 %v2648
        %v2682 = vunpack.c.l.b16 %v2649
        %v2683 = vunpack.c.l.b16 %v2650
        %v2684 = vunpack.c.l.b16 %v2651
        %v2685 = vunpack.c.l.b16 %v2652
        %v2686 = vunpack.c.l.b16 %v2653
        %v2687 = vunpack.c.l.b16 %v2654
        %v2688 = vunpack.c.l.b16 %v2655
        %v2689 = vpack.c.b16 %v2674, %v2673
        %v2690 = vpack.c.b16 %v2676, %v2675
        %v2691 = vpack.c.b16 %v2678, %v2677
        %v2692 = vpack.c.b16 %v2680, %v2679
        %v2693 = vpack.c.b16 %v2682, %v2681
        %v2694 = vpack.c.b16 %v2684, %v2683
        %v2695 = vpack.c.b16 %v2686, %v2685
        %v2696 = vpack.c.b16 %v2688, %v2687
        %2705 = vmatprep.subr.bf16.mxu0 0
        %2706 = vmatpush1.bf16.msra.mxu0 %v2689
        %2707 = vmatprep.subr.bf16.mxu0 0
        %2708 = vmatpush1.bf16.msra.mxu0 %v2690
        %2709 = vmatprep.subr.bf16.mxu0 0
        %2710 = vmatpush1.bf16.msra.mxu0 %v2691
        %2711 = vmatprep.subr.bf16.mxu0 0
        %2712 = vmatpush1.bf16.msra.mxu0 %v2692
        %2713 = vmatprep.subr.bf16.mxu0 0
        %2714 = vmatpush1.bf16.msra.mxu0 %v2693
        %2715 = vmatprep.subr.bf16.mxu0 0
        %2716 = vmatpush1.bf16.msra.mxu0 %v2694
        %2717 = vmatprep.subr.bf16.mxu0 0
        %2718 = vmatpush1.bf16.msra.mxu0 %v2695
        %2719 = vmatprep.subr.bf16.mxu0 0
        %2720 = vmatpush1.bf16.msra.mxu0 %v2696
        %2721 = vmatprep.subr.bf16.mxu0 0
        %2722 = vmatpush1.bf16.msra.mxu0 0
        %2723 = vmatprep.subr.bf16.mxu0 0
        %2724 = vmatpush1.bf16.msra.mxu0 0
        %2725 = vmatprep.subr.bf16.mxu0 0
        %2726 = vmatpush1.bf16.msra.mxu0 0
        %2727 = vmatprep.subr.bf16.mxu0 0
        %2728 = vmatpush1.bf16.msra.mxu0 0
        %2729 = vmatprep.subr.bf16.mxu0 0
        %2730 = vmatpush1.bf16.msra.mxu0 0
        %2731 = vmatprep.subr.bf16.mxu0 0
        %2732 = vmatpush1.bf16.msra.mxu0 0
        %2733 = vmatprep.subr.bf16.mxu0 0
        %2734 = vmatpush1.bf16.msra.mxu0 0
        %2735 = vmatprep.subr.bf16.mxu0 0
        %2736 = vmatpush1.bf16.msra.mxu0 0
        %2737 = vmatprep.mubr.bf16.mxu0 0
        %2738 = vmatmul.mubr.bf16.gmra.mrb[0].mxu0 %v2656
        %v2739 = vpop.f32.mrb[0].mxu0
        %v2740 = vadd.f32 %v344, %v2739
        %v2741 = vpop.f32.mrb[0].mxu0
        %v2742 = vpop.f32.mrb[0].mxu0
        %v2743 = vpop.f32.mrb[0].mxu0
        %2744 = vdwg.mxu0
        %2745 = vst [vmem:[%s336 + $0x8] sm:$0xff] %v2740
        %v2746 = vld [vmem:[#allocation8 + $0x180] sm:$0xff]
        %v2747 = vld [vmem:[#allocation8 + $0x188] sm:$0xff]
        %v2748 = vld [vmem:[#allocation8 + $0x190] sm:$0xff]
        %v2749 = vld [vmem:[#allocation8 + $0x198] sm:$0xff]
        %v2750 = vld [vmem:[#allocation8 + $0x1a0] sm:$0xff]
        %v2751 = vld [vmem:[#allocation8 + $0x1a8] sm:$0xff]
        %v2752 = vld [vmem:[#allocation8 + $0x1b0] sm:$0xff]
        %v2753 = vld [vmem:[#allocation8 + $0x1b8] sm:$0xff]
        %v2754 = vld [vmem:[#allocation8 + $0x1c0] sm:$0xff]
        %v2755 = vld [vmem:[#allocation8 + $0x1c8] sm:$0xff]
        %v2756 = vld [vmem:[#allocation8 + $0x1d0] sm:$0xff]
        %v2757 = vld [vmem:[#allocation8 + $0x1d8] sm:$0xff]
        %v2758 = vld [vmem:[#allocation8 + $0x1e0] sm:$0xff]
        %v2759 = vld [vmem:[#allocation8 + $0x1e8] sm:$0xff]
        %v2760 = vld [vmem:[#allocation8 + $0x1f0] sm:$0xff]
        %v2761 = vld [vmem:[#allocation8 + $0x1f8] sm:$0xff]
        %v2762 = vpack.c.bf16 %v2740, %v2740
        %v2763 = vlaneseq
        %v2764 = vshrl.u32 %v2763, 7
        %v2765 = vsub.s32 1, %v2764
        %v2766 = vrot.slane %v720, %v2765
        %v2767 = vlaneseq
        %v2768 = vshrl.u32 %v2767, 7
        %v2769 = vsub.s32 1, %v2768
        %v2770 = vrot.slane %v722, %v2769
        %v2787 = vunpack.c.l.b16 %v2746
        %v2788 = vunpack.c.h.b16 %v2746
        %v2789 = vunpack.c.l.b16 %v2747
        %v2790 = vunpack.c.h.b16 %v2747
        %v2791 = vunpack.c.l.b16 %v2748
        %v2792 = vunpack.c.h.b16 %v2748
        %v2793 = vunpack.c.l.b16 %v2749
        %v2794 = vunpack.c.h.b16 %v2749
        %v2795 = vunpack.c.l.b16 %v2750
        %v2796 = vunpack.c.h.b16 %v2750
        %v2797 = vunpack.c.l.b16 %v2751
        %v2798 = vunpack.c.h.b16 %v2751
        %v2799 = vunpack.c.l.b16 %v2752
        %v2800 = vunpack.c.h.b16 %v2752
        %v2801 = vunpack.c.l.b16 %v2753
        %v2802 = vunpack.c.h.b16 %v2753
        %v2803 = vunpack.c.l.b16 %v2754
        %v2804 = vunpack.c.h.b16 %v2754
        %v2805 = vunpack.c.l.b16 %v2755
        %v2806 = vunpack.c.h.b16 %v2755
        %v2807 = vunpack.c.l.b16 %v2756
        %v2808 = vunpack.c.h.b16 %v2756
        %v2809 = vunpack.c.l.b16 %v2757
        %v2810 = vunpack.c.h.b16 %v2757
        %v2811 = vunpack.c.l.b16 %v2758
        %v2812 = vunpack.c.h.b16 %v2758
        %v2813 = vunpack.c.l.b16 %v2759
        %v2814 = vunpack.c.h.b16 %v2759
        %v2815 = vunpack.c.l.b16 %v2760
        %v2816 = vunpack.c.h.b16 %v2760
        %v2817 = vunpack.c.l.b16 %v2761
        %v2818 = vunpack.c.h.b16 %v2761
        %v2819 = vpack.c.b16 %v2789, %v2787
        %v2820 = vpack.c.b16 %v2790, %v2788
        %v2821 = vpack.c.b16 %v2793, %v2791
        %v2822 = vpack.c.b16 %v2794, %v2792
        %v2823 = vpack.c.b16 %v2797, %v2795
        %v2824 = vpack.c.b16 %v2798, %v2796
        %v2825 = vpack.c.b16 %v2801, %v2799
        %v2826 = vpack.c.b16 %v2802, %v2800
        %v2827 = vpack.c.b16 %v2805, %v2803
        %v2828 = vpack.c.b16 %v2806, %v2804
        %v2829 = vpack.c.b16 %v2809, %v2807
        %v2830 = vpack.c.b16 %v2810, %v2808
        %v2831 = vpack.c.b16 %v2813, %v2811
        %v2832 = vpack.c.b16 %v2814, %v2812
        %v2833 = vpack.c.b16 %v2817, %v2815
        %v2834 = vpack.c.b16 %v2818, %v2816
        %2851 = vmatprep.subr.bf16.mxu0 %v2820
        %2852 = vmatpush1.bf16.msra.mxu0 %v2819
        %2853 = vmatprep.subr.bf16.mxu0 %v2822
        %2854 = vmatpush1.bf16.msra.mxu0 %v2821
        %2855 = vmatprep.subr.bf16.mxu0 %v2824
        %2856 = vmatpush1.bf16.msra.mxu0 %v2823
        %2857 = vmatprep.subr.bf16.mxu0 %v2826
        %2858 = vmatpush1.bf16.msra.mxu0 %v2825
        %2859 = vmatprep.subr.bf16.mxu0 %v2828
        %2860 = vmatpush1.bf16.msra.mxu0 %v2827
        %2861 = vmatprep.subr.bf16.mxu0 %v2830
        %2862 = vmatpush1.bf16.msra.mxu0 %v2829
        %2863 = vmatprep.subr.bf16.mxu0 %v2832
        %2864 = vmatpush1.bf16.msra.mxu0 %v2831
        %2865 = vmatprep.subr.bf16.mxu0 %v2834
        %2866 = vmatpush1.bf16.msra.mxu0 %v2833
        %2867 = vmatprep.subr.bf16.mxu0 0
        %2868 = vmatpush1.bf16.msra.mxu0 0
        %2869 = vmatprep.subr.bf16.mxu0 0
        %2870 = vmatpush1.bf16.msra.mxu0 0
        %2871 = vmatprep.subr.bf16.mxu0 0
        %2872 = vmatpush1.bf16.msra.mxu0 0
        %2873 = vmatprep.subr.bf16.mxu0 0
        %2874 = vmatpush1.bf16.msra.mxu0 0
        %2875 = vmatprep.subr.bf16.mxu0 0
        %2876 = vmatpush1.bf16.msra.mxu0 0
        %2877 = vmatprep.subr.bf16.mxu0 0
        %2878 = vmatpush1.bf16.msra.mxu0 0
        %2879 = vmatprep.subr.bf16.mxu0 0
        %2880 = vmatpush1.bf16.msra.mxu0 0
        %2881 = vmatprep.subr.bf16.mxu0 0
        %2882 = vmatpush1.bf16.msra.mxu0 0
        %2883 = vmatprep.mubr.bf16.mxu0 0
        %2884 = vmatmul.mubr.bf16.gmra.mrb[0].mxu0 %v2762
        %v2885 = vpop.f32.mrb[0].mxu0
        %v2886 = vadd.f32 %v2766, %v2885
        %v2887 = vpop.f32.mrb[0].mxu0
        %v2888 = vadd.f32 %v2770, %v2887
        %v2889 = vpop.f32.mrb[0].mxu0
        %v2890 = vpop.f32.mrb[0].mxu0
        %2891 = vdwg.mxu0
        %v2892 = vlaneseq
        %v2893 = vshrl.u32 %v2892, 7
        %v2894 = vsub.s32 1, %v2893
        %v2895 = vrot.slane %v761, %v2894
        %v2896 = vmax.f32 %v2886, 0.0
        %v2897 = vmax.f32 %v2888, 0.0
        %v2898 = vmax.f32 %v2895, 0.0
        %v2899 = vld [vmem:[#allocation8] sm:$0xff]
        %v2900 = vld [vmem:[#allocation8 + $0x8] sm:$0xff]
        %v2901 = vld [vmem:[#allocation8 + $0x10] sm:$0xff]
        %v2902 = vld [vmem:[#allocation8 + $0x18] sm:$0xff]
        %v2903 = vld [vmem:[#allocation8 + $0x20] sm:$0xff]
        %v2904 = vld [vmem:[#allocation8 + $0x28] sm:$0xff]
        %v2905 = vld [vmem:[#allocation8 + $0x30] sm:$0xff]
        %v2906 = vld [vmem:[#allocation8 + $0x38] sm:$0xff]
        %v2907 = vld [vmem:[#allocation8 + $0x40] sm:$0xff]
        %v2908 = vld [vmem:[#allocation8 + $0x48] sm:$0xff]
        %v2909 = vld [vmem:[#allocation8 + $0x50] sm:$0xff]
        %v2910 = vld [vmem:[#allocation8 + $0x58] sm:$0xff]
        %v2911 = vld [vmem:[#allocation8 + $0x60] sm:$0xff]
        %v2912 = vld [vmem:[#allocation8 + $0x68] sm:$0xff]
        %v2913 = vld [vmem:[#allocation8 + $0x70] sm:$0xff]
        %v2914 = vld [vmem:[#allocation8 + $0x78] sm:$0xff]
        %v2915 = vld [vmem:[#allocation8 + $0x80] sm:$0xff]
        %v2916 = vld [vmem:[#allocation8 + $0x88] sm:$0xff]
        %v2917 = vld [vmem:[#allocation8 + $0x90] sm:$0xff]
        %v2918 = vld [vmem:[#allocation8 + $0x98] sm:$0xff]
        %v2919 = vld [vmem:[#allocation8 + $0xa0] sm:$0xff]
        %v2920 = vld [vmem:[#allocation8 + $0xa8] sm:$0xff]
        %v2921 = vld [vmem:[#allocation8 + $0xb0] sm:$0xff]
        %v2922 = vld [vmem:[#allocation8 + $0xb8] sm:$0xff]
        %v2923 = vld [vmem:[#allocation8 + $0xc0] sm:$0xff]
        %v2924 = vld [vmem:[#allocation8 + $0xc8] sm:$0xff]
        %v2925 = vld [vmem:[#allocation8 + $0xd0] sm:$0xff]
        %v2926 = vld [vmem:[#allocation8 + $0xd8] sm:$0xff]
        %v2927 = vld [vmem:[#allocation8 + $0xe0] sm:$0xff]
        %v2928 = vld [vmem:[#allocation8 + $0xe8] sm:$0xff]
        %v2929 = vld [vmem:[#allocation8 + $0xf0] sm:$0xff]
        %v2930 = vld [vmem:[#allocation8 + $0xf8] sm:$0xff]
        %v2931 = vld [vmem:[#allocation8 + $0x100] sm:$0xff]
        %v2932 = vld [vmem:[#allocation8 + $0x108] sm:$0xff]
        %v2933 = vld [vmem:[#allocation8 + $0x110] sm:$0xff]
        %v2934 = vld [vmem:[#allocation8 + $0x118] sm:$0xff]
        %v2935 = vld [vmem:[#allocation8 + $0x120] sm:$0xff]
        %v2936 = vld [vmem:[#allocation8 + $0x128] sm:$0xff]
        %v2937 = vld [vmem:[#allocation8 + $0x130] sm:$0xff]
        %v2938 = vld [vmem:[#allocation8 + $0x138] sm:$0xff]
        %v2939 = vld [vmem:[#allocation8 + $0x140] sm:$0xff]
        %v2940 = vld [vmem:[#allocation8 + $0x148] sm:$0xff]
        %v2941 = vld [vmem:[#allocation8 + $0x150] sm:$0xff]
        %v2942 = vld [vmem:[#allocation8 + $0x158] sm:$0xff]
        %v2943 = vld [vmem:[#allocation8 + $0x160] sm:$0xff]
        %v2944 = vld [vmem:[#allocation8 + $0x168] sm:$0xff]
        %v2945 = vld [vmem:[#allocation8 + $0x170] sm:$0xff]
        %v2946 = vld [vmem:[#allocation8 + $0x178] sm:$0xff]
        %v2947 = vpack.c.bf16 %v2896, %v2896
        %v2948 = vpack.c.bf16 %v2897, %v2897
        %v2949 = vpack.c.bf16 %v2898, %v2898
        %v2998 = vunpack.c.l.b16 %v2899
        %v2999 = vunpack.c.h.b16 %v2899
        %v3000 = vunpack.c.l.b16 %v2900
        %v3001 = vunpack.c.h.b16 %v2900
        %v3002 = vunpack.c.l.b16 %v2901
        %v3003 = vunpack.c.h.b16 %v2901
        %v3004 = vunpack.c.l.b16 %v2902
        %v3005 = vunpack.c.h.b16 %v2902
        %v3006 = vunpack.c.l.b16 %v2903
        %v3007 = vunpack.c.h.b16 %v2903
        %v3008 = vunpack.c.l.b16 %v2904
        %v3009 = vunpack.c.h.b16 %v2904
        %v3010 = vunpack.c.l.b16 %v2905
        %v3011 = vunpack.c.h.b16 %v2905
        %v3012 = vunpack.c.l.b16 %v2906
        %v3013 = vunpack.c.h.b16 %v2906
        %v3014 = vunpack.c.l.b16 %v2907
        %v3015 = vunpack.c.h.b16 %v2907
        %v3016 = vunpack.c.l.b16 %v2908
        %v3017 = vunpack.c.h.b16 %v2908
        %v3018 = vunpack.c.l.b16 %v2909
        %v3019 = vunpack.c.h.b16 %v2909
        %v3020 = vunpack.c.l.b16 %v2910
        %v3021 = vunpack.c.h.b16 %v2910
        %v3022 = vunpack.c.l.b16 %v2911
        %v3023 = vunpack.c.h.b16 %v2911
        %v3024 = vunpack.c.l.b16 %v2912
        %v3025 = vunpack.c.h.b16 %v2912
        %v3026 = vunpack.c.l.b16 %v2913
        %v3027 = vunpack.c.h.b16 %v2913
        %v3028 = vunpack.c.l.b16 %v2914
        %v3029 = vunpack.c.h.b16 %v2914
        %v3030 = vunpack.c.l.b16 %v2915
        %v3031 = vunpack.c.h.b16 %v2915
        %v3032 = vunpack.c.l.b16 %v2916
        %v3033 = vunpack.c.h.b16 %v2916
        %v3034 = vunpack.c.l.b16 %v2917
        %v3035 = vunpack.c.h.b16 %v2917
        %v3036 = vunpack.c.l.b16 %v2918
        %v3037 = vunpack.c.h.b16 %v2918
        %v3038 = vunpack.c.l.b16 %v2919
        %v3039 = vunpack.c.h.b16 %v2919
        %v3040 = vunpack.c.l.b16 %v2920
        %v3041 = vunpack.c.h.b16 %v2920
        %v3042 = vunpack.c.l.b16 %v2921
        %v3043 = vunpack.c.h.b16 %v2921
        %v3044 = vunpack.c.l.b16 %v2922
        %v3045 = vunpack.c.h.b16 %v2922
        %v3046 = vunpack.c.l.b16 %v2923
        %v3047 = vunpack.c.h.b16 %v2923
        %v3048 = vunpack.c.l.b16 %v2924
        %v3049 = vunpack.c.h.b16 %v2924
        %v3050 = vunpack.c.l.b16 %v2925
        %v3051 = vunpack.c.h.b16 %v2925
        %v3052 = vunpack.c.l.b16 %v2926
        %v3053 = vunpack.c.h.b16 %v2926
        %v3054 = vunpack.c.l.b16 %v2927
        %v3055 = vunpack.c.h.b16 %v2927
        %v3056 = vunpack.c.l.b16 %v2928
        %v3057 = vunpack.c.h.b16 %v2928
        %v3058 = vunpack.c.l.b16 %v2929
        %v3059 = vunpack.c.h.b16 %v2929
        %v3060 = vunpack.c.l.b16 %v2930
        %v3061 = vunpack.c.h.b16 %v2930
        %v3062 = vunpack.c.l.b16 %v2931
        %v3063 = vunpack.c.h.b16 %v2931
        %v3064 = vunpack.c.l.b16 %v2932
        %v3065 = vunpack.c.h.b16 %v2932
        %v3066 = vunpack.c.l.b16 %v2933
        %v3067 = vunpack.c.h.b16 %v2933
        %v3068 = vunpack.c.l.b16 %v2934
        %v3069 = vunpack.c.h.b16 %v2934
        %v3070 = vunpack.c.l.b16 %v2935
        %v3071 = vunpack.c.h.b16 %v2935
        %v3072 = vunpack.c.l.b16 %v2936
        %v3073 = vunpack.c.h.b16 %v2936
        %v3074 = vunpack.c.l.b16 %v2937
        %v3075 = vunpack.c.h.b16 %v2937
        %v3076 = vunpack.c.l.b16 %v2938
        %v3077 = vunpack.c.h.b16 %v2938
        %v3078 = vunpack.c.l.b16 %v2939
        %v3079 = vunpack.c.h.b16 %v2939
        %v3080 = vunpack.c.l.b16 %v2940
        %v3081 = vunpack.c.h.b16 %v2940
        %v3082 = vunpack.c.l.b16 %v2941
        %v3083 = vunpack.c.h.b16 %v2941
        %v3084 = vunpack.c.l.b16 %v2942
        %v3085 = vunpack.c.h.b16 %v2942
        %v3086 = vunpack.c.l.b16 %v2943
        %v3087 = vunpack.c.h.b16 %v2943
        %v3088 = vunpack.c.l.b16 %v2944
        %v3089 = vunpack.c.h.b16 %v2944
        %v3090 = vunpack.c.l.b16 %v2945
        %v3091 = vunpack.c.h.b16 %v2945
        %v3092 = vunpack.c.l.b16 %v2946
        %v3093 = vunpack.c.h.b16 %v2946
        %v3094 = vpack.c.b16 %v3000, %v2998
        %v3095 = vpack.c.b16 %v3001, %v2999
        %v3096 = vpack.c.b16 %v3004, %v3002
        %v3097 = vpack.c.b16 %v3005, %v3003
        %v3098 = vpack.c.b16 %v3008, %v3006
        %v3099 = vpack.c.b16 %v3009, %v3007
        %v3100 = vpack.c.b16 %v3012, %v3010
        %v3101 = vpack.c.b16 %v3013, %v3011
        %v3102 = vpack.c.b16 %v3016, %v3014
        %v3103 = vpack.c.b16 %v3017, %v3015
        %v3104 = vpack.c.b16 %v3020, %v3018
        %v3105 = vpack.c.b16 %v3021, %v3019
        %v3106 = vpack.c.b16 %v3024, %v3022
        %v3107 = vpack.c.b16 %v3025, %v3023
        %v3108 = vpack.c.b16 %v3028, %v3026
        %v3109 = vpack.c.b16 %v3029, %v3027
        %v3110 = vpack.c.b16 %v3032, %v3030
        %v3111 = vpack.c.b16 %v3033, %v3031
        %v3112 = vpack.c.b16 %v3036, %v3034
        %v3113 = vpack.c.b16 %v3037, %v3035
        %v3114 = vpack.c.b16 %v3040, %v3038
        %v3115 = vpack.c.b16 %v3041, %v3039
        %v3116 = vpack.c.b16 %v3044, %v3042
        %v3117 = vpack.c.b16 %v3045, %v3043
        %v3118 = vpack.c.b16 %v3048, %v3046
        %v3119 = vpack.c.b16 %v3049, %v3047
        %v3120 = vpack.c.b16 %v3052, %v3050
        %v3121 = vpack.c.b16 %v3053, %v3051
        %v3122 = vpack.c.b16 %v3056, %v3054
        %v3123 = vpack.c.b16 %v3057, %v3055
        %v3124 = vpack.c.b16 %v3060, %v3058
        %v3125 = vpack.c.b16 %v3061, %v3059
        %v3126 = vpack.c.b16 %v3064, %v3062
        %v3127 = vpack.c.b16 %v3065, %v3063
        %v3128 = vpack.c.b16 %v3068, %v3066
        %v3129 = vpack.c.b16 %v3069, %v3067
        %v3130 = vpack.c.b16 %v3072, %v3070
        %v3131 = vpack.c.b16 %v3073, %v3071
        %v3132 = vpack.c.b16 %v3076, %v3074
        %v3133 = vpack.c.b16 %v3077, %v3075
        %v3134 = vpack.c.b16 %v3080, %v3078
        %v3135 = vpack.c.b16 %v3081, %v3079
        %v3136 = vpack.c.b16 %v3084, %v3082
        %v3137 = vpack.c.b16 %v3085, %v3083
        %v3138 = vpack.c.b16 %v3088, %v3086
        %v3139 = vpack.c.b16 %v3089, %v3087
        %v3140 = vpack.c.b16 %v3092, %v3090
        %v3141 = vpack.c.b16 %v3093, %v3091
        %3190 = vmatprep.subr.bf16.mxu0 %v3095
        %3191 = vmatpush1.bf16.msra.mxu0 %v3094
        %3192 = vmatprep.subr.bf16.mxu0 %v3097
        %3193 = vmatpush1.bf16.msra.mxu0 %v3096
        %3194 = vmatprep.subr.bf16.mxu0 %v3099
        %3195 = vmatpush1.bf16.msra.mxu0 %v3098
        %3196 = vmatprep.subr.bf16.mxu0 %v3101
        %3197 = vmatpush1.bf16.msra.mxu0 %v3100
        %3198 = vmatprep.subr.bf16.mxu0 %v3103
        %3199 = vmatpush1.bf16.msra.mxu0 %v3102
        %3200 = vmatprep.subr.bf16.mxu0 %v3105
        %3201 = vmatpush1.bf16.msra.mxu0 %v3104
        %3202 = vmatprep.subr.bf16.mxu0 %v3107
        %3203 = vmatpush1.bf16.msra.mxu0 %v3106
        %3204 = vmatprep.subr.bf16.mxu0 %v3109
        %3205 = vmatpush1.bf16.msra.mxu0 %v3108
        %3206 = vmatprep.subr.bf16.mxu0 %v3111
        %3207 = vmatpush1.bf16.msra.mxu0 %v3110
        %3208 = vmatprep.subr.bf16.mxu0 %v3113
        %3209 = vmatpush1.bf16.msra.mxu0 %v3112
        %3210 = vmatprep.subr.bf16.mxu0 %v3115
        %3211 = vmatpush1.bf16.msra.mxu0 %v3114
        %3212 = vmatprep.subr.bf16.mxu0 %v3117
        %3213 = vmatpush1.bf16.msra.mxu0 %v3116
        %3214 = vmatprep.subr.bf16.mxu0 %v3119
        %3215 = vmatpush1.bf16.msra.mxu0 %v3118
        %3216 = vmatprep.subr.bf16.mxu0 %v3121
        %3217 = vmatpush1.bf16.msra.mxu0 %v3120
        %3218 = vmatprep.subr.bf16.mxu0 %v3123
        %3219 = vmatpush1.bf16.msra.mxu0 %v3122
        %3220 = vmatprep.subr.bf16.mxu0 %v3125
        %3221 = vmatpush1.bf16.msra.mxu0 %v3124
        %3222 = vmatprep.mubr.bf16.mxu0 %v2948
        %3223 = vmatmul.mubr.bf16.gmra.mrb[0].mxu0 %v2947
        %v3224 = vpop.f32.mrb[0].mxu0
        %v3225 = vadd.f32 %v909, %v3224
        %v3226 = vpop.f32.mrb[0].mxu0
        %v3227 = vadd.f32 %v913, %v3226
        %v3228 = vpop.f32.mrb[0].mxu0
        %v3229 = vpop.f32.mrb[0].mxu0
        %3230 = vdwg.mxu0
        %3231 = vmatprep.subr.bf16.mxu0 %v3127
        %3232 = vmatpush1.bf16.msra.mxu0 %v3126
        %3233 = vmatprep.subr.bf16.mxu0 %v3129
        %3234 = vmatpush1.bf16.msra.mxu0 %v3128
        %3235 = vmatprep.subr.bf16.mxu0 %v3131
        %3236 = vmatpush1.bf16.msra.mxu0 %v3130
        %3237 = vmatprep.subr.bf16.mxu0 %v3133
        %3238 = vmatpush1.bf16.msra.mxu0 %v3132
        %3239 = vmatprep.subr.bf16.mxu0 %v3135
        %3240 = vmatpush1.bf16.msra.mxu0 %v3134
        %3241 = vmatprep.subr.bf16.mxu0 %v3137
        %3242 = vmatpush1.bf16.msra.mxu0 %v3136
        %3243 = vmatprep.subr.bf16.mxu0 %v3139
        %3244 = vmatpush1.bf16.msra.mxu0 %v3138
        %3245 = vmatprep.subr.bf16.mxu0 %v3141
        %3246 = vmatpush1.bf16.msra.mxu0 %v3140
        %3247 = vmatprep.subr.bf16.mxu0 0
        %3248 = vmatpush1.bf16.msra.mxu0 0
        %3249 = vmatprep.subr.bf16.mxu0 0
        %3250 = vmatpush1.bf16.msra.mxu0 0
        %3251 = vmatprep.subr.bf16.mxu0 0
        %3252 = vmatpush1.bf16.msra.mxu0 0
        %3253 = vmatprep.subr.bf16.mxu0 0
        %3254 = vmatpush1.bf16.msra.mxu0 0
        %3255 = vmatprep.subr.bf16.mxu0 0
        %3256 = vmatpush1.bf16.msra.mxu0 0
        %3257 = vmatprep.subr.bf16.mxu0 0
        %3258 = vmatpush1.bf16.msra.mxu0 0
        %3259 = vmatprep.subr.bf16.mxu0 0
        %3260 = vmatpush1.bf16.msra.mxu0 0
        %3261 = vmatprep.subr.bf16.mxu0 0
        %3262 = vmatpush1.bf16.msra.mxu0 0
        %3263 = vmatprep.mubr.bf16.mxu0 0
        %3264 = vmatmul.mubr.bf16.gmra.mrb[0].mxu0 %v2949
        %v3265 = vpop.f32.mrb[0].mxu0
        %v3266 = vadd.f32 %v3225, %v3265
        %v3267 = vpop.f32.mrb[0].mxu0
        %v3268 = vadd.f32 %v3227, %v3267
        %v3269 = vpop.f32.mrb[0].mxu0
        %v3270 = vpop.f32.mrb[0].mxu0
        %3271 = vdwg.mxu0
        %v3272 = vmax.f32 %v3266, 0.0
        %v3273 = vmax.f32 %v3268, 0.0
        %v3274 = vld [vmem:[#allocation10] sm:$0xf]
        %v3275 = vld [vmem:[#allocation10 + $0x4] sm:$0xf]
        %v3276 = vld [vmem:[#allocation10 + $0x8] sm:$0xf]
        %v3277 = vld [vmem:[#allocation10 + $0xc] sm:$0xf]
        %v3278 = vld [vmem:[#allocation10 + $0x10] sm:$0xf]
        %v3279 = vld [vmem:[#allocation10 + $0x14] sm:$0xf]
        %v3280 = vld [vmem:[#allocation10 + $0x18] sm:$0xf]
        %v3281 = vld [vmem:[#allocation10 + $0x1c] sm:$0xf]
        %v3282 = vld [vmem:[#allocation10 + $0x20] sm:$0xf]
        %v3283 = vld [vmem:[#allocation10 + $0x24] sm:$0xf]
        %v3284 = vld [vmem:[#allocation10 + $0x28] sm:$0xf]
        %v3285 = vld [vmem:[#allocation10 + $0x2c] sm:$0xf]
        %v3286 = vld [vmem:[#allocation10 + $0x30] sm:$0xf]
        %v3287 = vld [vmem:[#allocation10 + $0x34] sm:$0xf]
        %v3288 = vld [vmem:[#allocation10 + $0x38] sm:$0xf]
        %v3289 = vld [vmem:[#allocation10 + $0x3c] sm:$0xf]
        %v3290 = vld [vmem:[#allocation10 + $0x40] sm:$0xf]
        %v3291 = vld [vmem:[#allocation10 + $0x44] sm:$0xf]
        %v3292 = vld [vmem:[#allocation10 + $0x48] sm:$0xf]
        %v3293 = vld [vmem:[#allocation10 + $0x4c] sm:$0xf]
        %v3294 = vld [vmem:[#allocation10 + $0x50] sm:$0xf]
        %v3295 = vld [vmem:[#allocation10 + $0x54] sm:$0xf]
        %v3296 = vld [vmem:[#allocation10 + $0x58] sm:$0xf]
        %v3297 = vld [vmem:[#allocation10 + $0x5c] sm:$0xf]
        %v3298 = vld [vmem:[#allocation10 + $0x60] sm:$0xf]
        %v3299 = vld [vmem:[#allocation10 + $0x64] sm:$0xf]
        %v3300 = vld [vmem:[#allocation10 + $0x68] sm:$0xf]
        %v3301 = vld [vmem:[#allocation10 + $0x6c] sm:$0xf]
        %v3302 = vld [vmem:[#allocation10 + $0x70] sm:$0xf]
        %v3303 = vld [vmem:[#allocation10 + $0x74] sm:$0xf]
        %v3304 = vld [vmem:[#allocation10 + $0x78] sm:$0xf]
        %v3305 = vld [vmem:[#allocation10 + $0x7c] sm:$0xf]
        %v3306 = vpack.c.bf16 %v3272, %v3272
        %v3307 = vpack.c.bf16 %v3273, %v3273
        %v3340 = vunpack.c.l.b16 %v3274
        %v3341 = vunpack.c.l.b16 %v3275
        %v3342 = vunpack.c.l.b16 %v3276
        %v3343 = vunpack.c.l.b16 %v3277
        %v3344 = vunpack.c.l.b16 %v3278
        %v3345 = vunpack.c.l.b16 %v3279
        %v3346 = vunpack.c.l.b16 %v3280
        %v3347 = vunpack.c.l.b16 %v3281
        %v3348 = vunpack.c.l.b16 %v3282
        %v3349 = vunpack.c.l.b16 %v3283
        %v3350 = vunpack.c.l.b16 %v3284
        %v3351 = vunpack.c.l.b16 %v3285
        %v3352 = vunpack.c.l.b16 %v3286
        %v3353 = vunpack.c.l.b16 %v3287
        %v3354 = vunpack.c.l.b16 %v3288
        %v3355 = vunpack.c.l.b16 %v3289
        %v3356 = vunpack.c.l.b16 %v3290
        %v3357 = vunpack.c.l.b16 %v3291
        %v3358 = vunpack.c.l.b16 %v3292
        %v3359 = vunpack.c.l.b16 %v3293
        %v3360 = vunpack.c.l.b16 %v3294
        %v3361 = vunpack.c.l.b16 %v3295
        %v3362 = vunpack.c.l.b16 %v3296
        %v3363 = vunpack.c.l.b16 %v3297
        %v3364 = vunpack.c.l.b16 %v3298
        %v3365 = vunpack.c.l.b16 %v3299
        %v3366 = vunpack.c.l.b16 %v3300
        %v3367 = vunpack.c.l.b16 %v3301
        %v3368 = vunpack.c.l.b16 %v3302
        %v3369 = vunpack.c.l.b16 %v3303
        %v3370 = vunpack.c.l.b16 %v3304
        %v3371 = vunpack.c.l.b16 %v3305
        %v3372 = vpack.c.b16 %v3341, %v3340
        %v3373 = vpack.c.b16 %v3343, %v3342
        %v3374 = vpack.c.b16 %v3345, %v3344
        %v3375 = vpack.c.b16 %v3347, %v3346
        %v3376 = vpack.c.b16 %v3349, %v3348
        %v3377 = vpack.c.b16 %v3351, %v3350
        %v3378 = vpack.c.b16 %v3353, %v3352
        %v3379 = vpack.c.b16 %v3355, %v3354
        %v3380 = vpack.c.b16 %v3357, %v3356
        %v3381 = vpack.c.b16 %v3359, %v3358
        %v3382 = vpack.c.b16 %v3361, %v3360
        %v3383 = vpack.c.b16 %v3363, %v3362
        %v3384 = vpack.c.b16 %v3365, %v3364
        %v3385 = vpack.c.b16 %v3367, %v3366
        %v3386 = vpack.c.b16 %v3369, %v3368
        %v3387 = vpack.c.b16 %v3371, %v3370
        %3404 = vmatprep.subr.bf16.mxu0 0
        %3405 = vmatpush1.bf16.msra.mxu0 %v3372
        %3406 = vmatprep.subr.bf16.mxu0 0
        %3407 = vmatpush1.bf16.msra.mxu0 %v3373
        %3408 = vmatprep.subr.bf16.mxu0 0
        %3409 = vmatpush1.bf16.msra.mxu0 %v3374
        %3410 = vmatprep.subr.bf16.mxu0 0
        %3411 = vmatpush1.bf16.msra.mxu0 %v3375
        %3412 = vmatprep.subr.bf16.mxu0 0
        %3413 = vmatpush1.bf16.msra.mxu0 %v3376
        %3414 = vmatprep.subr.bf16.mxu0 0
        %3415 = vmatpush1.bf16.msra.mxu0 %v3377
        %3416 = vmatprep.subr.bf16.mxu0 0
        %3417 = vmatpush1.bf16.msra.mxu0 %v3378
        %3418 = vmatprep.subr.bf16.mxu0 0
        %3419 = vmatpush1.bf16.msra.mxu0 %v3379
        %3420 = vmatprep.subr.bf16.mxu0 0
        %3421 = vmatpush1.bf16.msra.mxu0 %v3380
        %3422 = vmatprep.subr.bf16.mxu0 0
        %3423 = vmatpush1.bf16.msra.mxu0 %v3381
        %3424 = vmatprep.subr.bf16.mxu0 0
        %3425 = vmatpush1.bf16.msra.mxu0 %v3382
        %3426 = vmatprep.subr.bf16.mxu0 0
        %3427 = vmatpush1.bf16.msra.mxu0 %v3383
        %3428 = vmatprep.subr.bf16.mxu0 0
        %3429 = vmatpush1.bf16.msra.mxu0 %v3384
        %3430 = vmatprep.subr.bf16.mxu0 0
        %3431 = vmatpush1.bf16.msra.mxu0 %v3385
        %3432 = vmatprep.subr.bf16.mxu0 0
        %3433 = vmatpush1.bf16.msra.mxu0 %v3386
        %3434 = vmatprep.subr.bf16.mxu0 0
        %3435 = vmatpush1.bf16.msra.mxu0 %v3387
        %3436 = vmatprep.mubr.bf16.mxu0 %v3307
        %3437 = vmatmul.mubr.bf16.gmra.mrb[0].mxu0 %v3306
        %v3438 = vpop.f32.mrb[0].mxu0
        %v3439 = vadd.f32 %v341, %v3438
        %v3440 = vpop.f32.mrb[0].mxu0
        %v3441 = vpop.f32.mrb[0].mxu0
        %v3442 = vpop.f32.mrb[0].mxu0
        %3443 = vdwg.mxu0
        %v3444 = vmax.f32 %v3439, 0.0
        %v3445 = vld [vmem:[#allocation10 + $0x80] sm:$0xf]
        %v3446 = vld [vmem:[#allocation10 + $0x84] sm:$0xf]
        %v3447 = vld [vmem:[#allocation10 + $0x88] sm:$0xf]
        %v3448 = vld [vmem:[#allocation10 + $0x8c] sm:$0xf]
        %v3449 = vld [vmem:[#allocation10 + $0x90] sm:$0xf]
        %v3450 = vld [vmem:[#allocation10 + $0x94] sm:$0xf]
        %v3451 = vld [vmem:[#allocation10 + $0x98] sm:$0xf]
        %v3452 = vld [vmem:[#allocation10 + $0x9c] sm:$0xf]
        %v3453 = vld [vmem:[#allocation10 + $0xa0] sm:$0xf]
        %v3454 = vld [vmem:[#allocation10 + $0xa4] sm:$0xf]
        %v3455 = vld [vmem:[#allocation10 + $0xa8] sm:$0xf]
        %v3456 = vld [vmem:[#allocation10 + $0xac] sm:$0xf]
        %v3457 = vld [vmem:[#allocation10 + $0xb0] sm:$0xf]
        %v3458 = vld [vmem:[#allocation10 + $0xb4] sm:$0xf]
        %v3459 = vld [vmem:[#allocation10 + $0xb8] sm:$0xf]
        %v3460 = vld [vmem:[#allocation10 + $0xbc] sm:$0xf]
        %v3461 = vpack.c.bf16 %v3444, %v3444
        %v3478 = vunpack.c.l.b16 %v3445
        %v3479 = vunpack.c.l.b16 %v3446
        %v3480 = vunpack.c.l.b16 %v3447
        %v3481 = vunpack.c.l.b16 %v3448
        %v3482 = vunpack.c.l.b16 %v3449
        %v3483 = vunpack.c.l.b16 %v3450
        %v3484 = vunpack.c.l.b16 %v3451
        %v3485 = vunpack.c.l.b16 %v3452
        %v3486 = vunpack.c.l.b16 %v3453
        %v3487 = vunpack.c.l.b16 %v3454
        %v3488 = vunpack.c.l.b16 %v3455
        %v3489 = vunpack.c.l.b16 %v3456
        %v3490 = vunpack.c.l.b16 %v3457
        %v3491 = vunpack.c.l.b16 %v3458
        %v3492 = vunpack.c.l.b16 %v3459
        %v3493 = vunpack.c.l.b16 %v3460
        %v3494 = vpack.c.b16 %v3479, %v3478
        %v3495 = vpack.c.b16 %v3481, %v3480
        %v3496 = vpack.c.b16 %v3483, %v3482
        %v3497 = vpack.c.b16 %v3485, %v3484
        %v3498 = vpack.c.b16 %v3487, %v3486
        %v3499 = vpack.c.b16 %v3489, %v3488
        %v3500 = vpack.c.b16 %v3491, %v3490
        %v3501 = vpack.c.b16 %v3493, %v3492
        %3510 = vmatprep.subr.bf16.mxu0 0
        %3511 = vmatpush1.bf16.msra.mxu0 %v3494
        %3512 = vmatprep.subr.bf16.mxu0 0
        %3513 = vmatpush1.bf16.msra.mxu0 %v3495
        %3514 = vmatprep.subr.bf16.mxu0 0
        %3515 = vmatpush1.bf16.msra.mxu0 %v3496
        %3516 = vmatprep.subr.bf16.mxu0 0
        %3517 = vmatpush1.bf16.msra.mxu0 %v3497
        %3518 = vmatprep.subr.bf16.mxu0 0
        %3519 = vmatpush1.bf16.msra.mxu0 %v3498
        %3520 = vmatprep.subr.bf16.mxu0 0
        %3521 = vmatpush1.bf16.msra.mxu0 %v3499
        %3522 = vmatprep.subr.bf16.mxu0 0
        %3523 = vmatpush1.bf16.msra.mxu0 %v3500
        %3524 = vmatprep.subr.bf16.mxu0 0
        %3525 = vmatpush1.bf16.msra.mxu0 %v3501
        %3526 = vmatprep.subr.bf16.mxu0 0
        %3527 = vmatpush1.bf16.msra.mxu0 0
        %3528 = vmatprep.subr.bf16.mxu0 0
        %3529 = vmatpush1.bf16.msra.mxu0 0
        %3530 = vmatprep.subr.bf16.mxu0 0
        %3531 = vmatpush1.bf16.msra.mxu0 0
        %3532 = vmatprep.subr.bf16.mxu0 0
        %3533 = vmatpush1.bf16.msra.mxu0 0
        %3534 = vmatprep.subr.bf16.mxu0 0
        %3535 = vmatpush1.bf16.msra.mxu0 0
        %3536 = vmatprep.subr.bf16.mxu0 0
        %3537 = vmatpush1.bf16.msra.mxu0 0
        %3538 = vmatprep.subr.bf16.mxu0 0
        %3539 = vmatpush1.bf16.msra.mxu0 0
        %3540 = vmatprep.subr.bf16.mxu0 0
        %3541 = vmatpush1.bf16.msra.mxu0 0
        %3542 = vmatprep.mubr.bf16.mxu0 0
        %3543 = vmatmul.mubr.bf16.gmra.mrb[0].mxu0 %v3461
        %v3544 = vpop.f32.mrb[0].mxu0
        %v3545 = vadd.f32 %v342, %v3544
        %v3546 = vpop.f32.mrb[0].mxu0
        %v3547 = vpop.f32.mrb[0].mxu0
        %v3548 = vpop.f32.mrb[0].mxu0
        %3549 = vdwg.mxu0
        %v3550 = vmax.f32 %v3545, 0.0
        %v3551 = vld [vmem:[#allocation10 + $0xc0] sm:$0xf]
        %v3552 = vld [vmem:[#allocation10 + $0xc4] sm:$0xf]
        %v3553 = vld [vmem:[#allocation10 + $0xc8] sm:$0xf]
        %v3554 = vld [vmem:[#allocation10 + $0xcc] sm:$0xf]
        %v3555 = vld [vmem:[#allocation10 + $0xd0] sm:$0xf]
        %v3556 = vld [vmem:[#allocation10 + $0xd4] sm:$0xf]
        %v3557 = vld [vmem:[#allocation10 + $0xd8] sm:$0xf]
        %v3558 = vld [vmem:[#allocation10 + $0xdc] sm:$0xf]
        %v3559 = vld [vmem:[#allocation10 + $0xe0] sm:$0xf]
        %v3560 = vld [vmem:[#allocation10 + $0xe4] sm:$0xf]
        %v3561 = vld [vmem:[#allocation10 + $0xe8] sm:$0xf]
        %v3562 = vld [vmem:[#allocation10 + $0xec] sm:$0xf]
        %v3563 = vld [vmem:[#allocation10 + $0xf0] sm:$0xf]
        %v3564 = vld [vmem:[#allocation10 + $0xf4] sm:$0xf]
        %v3565 = vld [vmem:[#allocation10 + $0xf8] sm:$0xf]
        %v3566 = vld [vmem:[#allocation10 + $0xfc] sm:$0xf]
        %v3567 = vpack.c.bf16 %v3550, %v3550
        %v3584 = vunpack.c.l.b16 %v3551
        %v3585 = vunpack.c.l.b16 %v3552
        %v3586 = vunpack.c.l.b16 %v3553
        %v3587 = vunpack.c.l.b16 %v3554
        %v3588 = vunpack.c.l.b16 %v3555
        %v3589 = vunpack.c.l.b16 %v3556
        %v3590 = vunpack.c.l.b16 %v3557
        %v3591 = vunpack.c.l.b16 %v3558
        %v3592 = vunpack.c.l.b16 %v3559
        %v3593 = vunpack.c.l.b16 %v3560
        %v3594 = vunpack.c.l.b16 %v3561
        %v3595 = vunpack.c.l.b16 %v3562
        %v3596 = vunpack.c.l.b16 %v3563
        %v3597 = vunpack.c.l.b16 %v3564
        %v3598 = vunpack.c.l.b16 %v3565
        %v3599 = vunpack.c.l.b16 %v3566
        %v3600 = vpack.c.b16 %v3585, %v3584
        %v3601 = vpack.c.b16 %v3587, %v3586
        %v3602 = vpack.c.b16 %v3589, %v3588
        %v3603 = vpack.c.b16 %v3591, %v3590
        %v3604 = vpack.c.b16 %v3593, %v3592
        %v3605 = vpack.c.b16 %v3595, %v3594
        %v3606 = vpack.c.b16 %v3597, %v3596
        %v3607 = vpack.c.b16 %v3599, %v3598
        %3616 = vmatprep.subr.bf16.mxu0 0
        %3617 = vmatpush1.bf16.msra.mxu0 %v3600
        %3618 = vmatprep.subr.bf16.mxu0 0
        %3619 = vmatpush1.bf16.msra.mxu0 %v3601
        %3620 = vmatprep.subr.bf16.mxu0 0
        %3621 = vmatpush1.bf16.msra.mxu0 %v3602
        %3622 = vmatprep.subr.bf16.mxu0 0
        %3623 = vmatpush1.bf16.msra.mxu0 %v3603
        %3624 = vmatprep.subr.bf16.mxu0 0
        %3625 = vmatpush1.bf16.msra.mxu0 %v3604
        %3626 = vmatprep.subr.bf16.mxu0 0
        %3627 = vmatpush1.bf16.msra.mxu0 %v3605
        %3628 = vmatprep.subr.bf16.mxu0 0
        %3629 = vmatpush1.bf16.msra.mxu0 %v3606
        %3630 = vmatprep.subr.bf16.mxu0 0
        %3631 = vmatpush1.bf16.msra.mxu0 %v3607
        %3632 = vmatprep.subr.bf16.mxu0 0
        %3633 = vmatpush1.bf16.msra.mxu0 0
        %3634 = vmatprep.subr.bf16.mxu0 0
        %3635 = vmatpush1.bf16.msra.mxu0 0
        %3636 = vmatprep.subr.bf16.mxu0 0
        %3637 = vmatpush1.bf16.msra.mxu0 0
        %3638 = vmatprep.subr.bf16.mxu0 0
        %3639 = vmatpush1.bf16.msra.mxu0 0
        %3640 = vmatprep.subr.bf16.mxu0 0
        %3641 = vmatpush1.bf16.msra.mxu0 0
        %3642 = vmatprep.subr.bf16.mxu0 0
        %3643 = vmatpush1.bf16.msra.mxu0 0
        %3644 = vmatprep.subr.bf16.mxu0 0
        %3645 = vmatpush1.bf16.msra.mxu0 0
        %3646 = vmatprep.subr.bf16.mxu0 0
        %3647 = vmatpush1.bf16.msra.mxu0 0
        %3648 = vmatprep.mubr.bf16.mxu0 0
        %3649 = vmatmul.mubr.bf16.gmra.mrb[0].mxu0 %v3567
        %v3650 = vpop.f32.mrb[0].mxu0
        %v3651 = vadd.f32 %v343, %v3650
        %v3652 = vpop.f32.mrb[0].mxu0
        %v3653 = vpop.f32.mrb[0].mxu0
        %v3654 = vpop.f32.mrb[0].mxu0
        %3655 = vdwg.mxu0
        %v3656 = vmax.f32 %v3651, 0.0
        %v3657 = vld [vmem:[#allocation10 + $0x100] sm:$0xf]
        %v3658 = vld [vmem:[#allocation10 + $0x104] sm:$0xf]
        %v3659 = vld [vmem:[#allocation10 + $0x108] sm:$0xf]
        %v3660 = vld [vmem:[#allocation10 + $0x10c] sm:$0xf]
        %v3661 = vld [vmem:[#allocation10 + $0x110] sm:$0xf]
        %v3662 = vld [vmem:[#allocation10 + $0x114] sm:$0xf]
        %v3663 = vld [vmem:[#allocation10 + $0x118] sm:$0xf]
        %v3664 = vld [vmem:[#allocation10 + $0x11c] sm:$0xf]
        %v3665 = vld [vmem:[#allocation10 + $0x120] sm:$0xf]
        %v3666 = vld [vmem:[#allocation10 + $0x124] sm:$0xf]
        %v3667 = vld [vmem:[#allocation10 + $0x128] sm:$0xf]
        %v3668 = vld [vmem:[#allocation10 + $0x12c] sm:$0xf]
        %v3669 = vld [vmem:[#allocation10 + $0x130] sm:$0xf]
        %v3670 = vld [vmem:[#allocation10 + $0x134] sm:$0xf]
        %v3671 = vld [vmem:[#allocation10 + $0x138] sm:$0xf]
        %v3672 = vld [vmem:[#allocation10 + $0x13c] sm:$0xf]
        %v3673 = vpack.c.bf16 %v3656, %v3656
        %v3690 = vunpack.c.l.b16 %v3657
        %v3691 = vunpack.c.l.b16 %v3658
        %v3692 = vunpack.c.l.b16 %v3659
        %v3693 = vunpack.c.l.b16 %v3660
        %v3694 = vunpack.c.l.b16 %v3661
        %v3695 = vunpack.c.l.b16 %v3662
        %v3696 = vunpack.c.l.b16 %v3663
        %v3697 = vunpack.c.l.b16 %v3664
        %v3698 = vunpack.c.l.b16 %v3665
        %v3699 = vunpack.c.l.b16 %v3666
        %v3700 = vunpack.c.l.b16 %v3667
        %v3701 = vunpack.c.l.b16 %v3668
        %v3702 = vunpack.c.l.b16 %v3669
        %v3703 = vunpack.c.l.b16 %v3670
        %v3704 = vunpack.c.l.b16 %v3671
        %v3705 = vunpack.c.l.b16 %v3672
        %v3706 = vpack.c.b16 %v3691, %v3690
        %v3707 = vpack.c.b16 %v3693, %v3692
        %v3708 = vpack.c.b16 %v3695, %v3694
        %v3709 = vpack.c.b16 %v3697, %v3696
        %v3710 = vpack.c.b16 %v3699, %v3698
        %v3711 = vpack.c.b16 %v3701, %v3700
        %v3712 = vpack.c.b16 %v3703, %v3702
        %v3713 = vpack.c.b16 %v3705, %v3704
        %3722 = vmatprep.subr.bf16.mxu0 0
        %3723 = vmatpush1.bf16.msra.mxu0 %v3706
        %3724 = vmatprep.subr.bf16.mxu0 0
        %3725 = vmatpush1.bf16.msra.mxu0 %v3707
        %3726 = vmatprep.subr.bf16.mxu0 0
        %3727 = vmatpush1.bf16.msra.mxu0 %v3708
        %3728 = vmatprep.subr.bf16.mxu0 0
        %3729 = vmatpush1.bf16.msra.mxu0 %v3709
        %3730 = vmatprep.subr.bf16.mxu0 0
        %3731 = vmatpush1.bf16.msra.mxu0 %v3710
        %3732 = vmatprep.subr.bf16.mxu0 0
        %3733 = vmatpush1.bf16.msra.mxu0 %v3711
        %3734 = vmatprep.subr.bf16.mxu0 0
        %3735 = vmatpush1.bf16.msra.mxu0 %v3712
        %3736 = vmatprep.subr.bf16.mxu0 0
        %3737 = vmatpush1.bf16.msra.mxu0 %v3713
        %3738 = vmatprep.subr.bf16.mxu0 0
        %3739 = vmatpush1.bf16.msra.mxu0 0
        %3740 = vmatprep.subr.bf16.mxu0 0
        %3741 = vmatpush1.bf16.msra.mxu0 0
        %3742 = vmatprep.subr.bf16.mxu0 0
        %3743 = vmatpush1.bf16.msra.mxu0 0
        %3744 = vmatprep.subr.bf16.mxu0 0
        %3745 = vmatpush1.bf16.msra.mxu0 0
        %3746 = vmatprep.subr.bf16.mxu0 0
        %3747 = vmatpush1.bf16.msra.mxu0 0
        %3748 = vmatprep.subr.bf16.mxu0 0
        %3749 = vmatpush1.bf16.msra.mxu0 0
        %3750 = vmatprep.subr.bf16.mxu0 0
        %3751 = vmatpush1.bf16.msra.mxu0 0
        %3752 = vmatprep.subr.bf16.mxu0 0
        %3753 = vmatpush1.bf16.msra.mxu0 0
        %3754 = vmatprep.mubr.bf16.mxu0 0
        %3755 = vmatmul.mubr.bf16.gmra.mrb[0].mxu0 %v3673
        %v3756 = vpop.f32.mrb[0].mxu0
        %v3757 = vadd.f32 %v344, %v3756
        %v3758 = vpop.f32.mrb[0].mxu0
        %v3759 = vpop.f32.mrb[0].mxu0
        %v3760 = vpop.f32.mrb[0].mxu0
        %3761 = vdwg.mxu0
        %3762 = vst [vmem:[%s336 + $0x10] sm:$0xff] %v3757
        %s3763 = sand.u32 %s165, 1
        %s3764 = scalar_lea.sflag [#allocation4], %s3763
        %s3765 = sand.u32 %s165, 1
        %s3766 = smul.addr %s3765, 24
        %s3767 = scalar_lea.vmem [#allocation13], %s3766
        // Predicated region
        $region69: #{tpu_custom_call.1} parent=43 // pred_check
          %p3768 = pneg %p175
        $region70: #{tpu_custom_call.1} parent=43 // pred_check_branch
          %3770 = sbr.rel (%p3768) target = $region72
        $region71: #{tpu_custom_call.1} parent=43 // pred_region
          %s3772 = ssub.s32 384, 384
          %3773 = vsyncadd %s3764, %s3772
          %s3774 = smul.addr %s26, 3
          %s3775 = smul.addr %s3774, 128
          %s3776 = scalar_lea.hbm %s6, %s3775
          %s3778 = sshll.u32 %s3767, 4
          %s3779 = int_to_ptr.vmem [resolvable:$true] %s3778
          %3781 = dma.vmem_to_hbm [thread:$0]  %s3779, 384, %s3776, %s3764
        $region72: #{tpu_custom_call.1} parent=43 // pred_fallthru
          _
      $region44: #{tpu_custom_call.1} parent=5 // pred_fallthru
        _
      %p3782 = scmp.le.s32.totalorder 2, %s21
      // Predicated region
      $region73: #{tpu_custom_call.1} parent=5 // pred_check
        %p3783 = pneg %p3782
      $region74: #{tpu_custom_call.1} parent=5 // pred_check_branch
        %3785 = sbr.rel (%p3783) target = $region76
      $region75: #{tpu_custom_call.1} parent=5 // pred_region
        %s3786 = ssub.s32 %s21, 2
        // Predicated region
        $region77: #{tpu_custom_call.1} parent=75 // pred_check
          %p3787 = pneg %p181
        $region78: #{tpu_custom_call.1} parent=75 // pred_check_branch
          %3789 = sbr.rel (%p3787) target = $region80
        $region79: #{tpu_custom_call.1} parent=75 // pred_region
          %s3790 = sand.u32 %s166, 1
          %s3791 = scalar_lea.sflag [#allocation4], %s3790
          %s3792 = sand.u32 %s166, 1
          %s3793 = smul.addr %s3792, 24
          %s3794 = scalar_lea.vmem [#allocation13], %s3793
          %3795 = dma.done %s3791, 384
        $region80: #{tpu_custom_call.1} parent=75 // pred_fallthru
          _
      $region76: #{tpu_custom_call.1} parent=5 // pred_fallthru
        _
    $region6: #{tpu_custom_call.1} parent=1 // loop_footer
      %s25 = sadd.s32 1, %s21
    $region7: #{tpu_custom_call.1} parent=1 // loop_footer_branch
      %20 = sbr.rel target = $region3
    $region8: #{tpu_custom_call.1} parent=1 // loop_exit
      _
    %3796 = vsyncpa [#allocation3], 1
    %s3797 = scalar_lea.sflag [#allocation3], 1
    %3798 = vsyncpa %s3797, 1
    %3799 = vsyncpa [#allocation6], 1
    %3800 = vsyncpa [#allocation9], 1
    %3801 = vsyncpa [#allocation12], 1
    %3802 = vsyncpa [#allocation4], 1
    %s3803 = scalar_lea.sflag [#allocation4], 1
    %3804 = vsyncpa %s3803, 1

</llo_original>
